<compile_context>
chip_gen: v7x
topology: tpu7x:2x2x1
jax: 0.10.0
libtpu: 0.0.40
codegen_flags: <defaults>
</compile_context>

<pallas_src>
import functools

import jax
import jax.numpy as jnp
import numpy as np
from jax import lax
from jax.experimental import pallas as pl
from jax.experimental.pallas import tpu as pltpu

EPS = 1e-5
NEG_SLOPE = 0.01   # F.leaky_relu default
LANE = 128         # vreg lane width


def _round_up(x, m):
    return (x + m - 1) // m * m


# ----------------------------- Pallas kernel ------------------------------- #
def _mlp_stats_max_kernel(x_ref, w1t_ref, g1_ref, be1_ref, w2t_ref,
                          smax_ref, sum2_ref, sq2_ref,
                          sum1, sq1, sc1, sh1,
                          *, K, TBS, BS, M):
    """x_ref: [K, C_in, TBS] bf16 -> smax [C2, TBS] + BN2 sum/sumsq [C2, 1]."""
    s = pl.program_id(0)          # sweep: 0 = BN1 stats, 1 = BN2 stats + h2 max
    j = pl.program_id(1)          # row tile along the B*S (lane) axis
    T = pl.num_programs(1)
    NC = TBS // LANE
    inv_m = 1.0 / M               # true (unpadded) number of BN locations = K * B * S
    padded = (BS % TBS) != 0      # static: only the last tile has invalid lanes

    @pl.when((s == 0) & (j == 0))
    def _init_bn1():
        sum1[...] = jnp.zeros_like(sum1)
        sq1[...] = jnp.zeros_like(sq1)

    @pl.when((s == 1) & (j == 0))
    def _init_bn2():
        # sum2/sq2 block index never changes -> resident output accumulators.
        sum2_ref[...] = jnp.zeros_like(sum2_ref)
        sq2_ref[...] = jnp.zeros_like(sq2_ref)

    w1t = w1t_ref[...]            # [C1, C_in] bf16 (conv bias omitted: BN cancels it)

    def h1_of(k, c):
        xk = x_ref[k, :, c * LANE:(c + 1) * LANE]            # [C_in, LANE] bf16
        return jnp.dot(w1t, xk, preferred_element_type=jnp.float32)   # [C1, LANE]

    @pl.when(s == 0)
    def _sweep0():
        # Padded lanes are exact zeros -> h1 == 0 -> no mask needed for BN1 stats.
        s1 = None
        q1 = None
        for c in range(NC):
            h = h1_of(0, c)
            sa, qa = h, h * h
            for k in range(1, K):
                h = h1_of(k, c)
                sa = sa + h
                qa = qa + h * h
            cs = jnp.sum(sa, axis=1, keepdims=True)
            cq = jnp.sum(qa, axis=1, keepdims=True)
            s1 = cs if s1 is None else s1 + cs
            q1 = cq if q1 is None else q1 + cq
        sum1[...] += s1
        sq1[...] += q1

        @pl.when(j == T - 1)
        def _finalize_bn1():
            mean = sum1[...] * inv_m
            var = jnp.maximum(sq1[...] * inv_m - mean * mean, 0.0)   # guard cancellation
            scale = g1_ref[...] * lax.rsqrt(var + EPS)
            sc1[...] = scale
            sh1[...] = be1_ref[...] - mean * scale         # folded BN1: h*scale + shift

    @pl.when(s == 1)
    def _sweep1():
        scale1 = sc1[...]
        shift1 = sh1[...]
        w2t = w2t_ref[...]                                  # [C2, C1], rows sign-folded
        s2 = None
        q2 = None
        for c in range(NC):
            def h2_of(k, c=c):
                a = h1_of(k, c) * scale1 + shift1
                a = jnp.maximum(a, NEG_SLOPE * a)           # LeakyReLU: mul + max
                return jnp.dot(w2t, a, preferred_element_type=jnp.float32)  # [C2, LANE]

            h = h2_of(0)
            mx, sa, qa = h, h, h * h
            for k in range(1, K):
                h = h2_of(k)
                mx = jnp.maximum(mx, h)
                sa = sa + h
                qa = qa + h * h
            smax_ref[:, c * LANE:(c + 1) * LANE] = mx       # lane-dense full-vreg store
            if padded:                                      # mask padded lanes in stats
                lane = lax.broadcasted_iota(jnp.int32, (1, LANE), 1)
                mask = ((j * TBS + c * LANE + lane) < BS).astype(jnp.float32)
                sa = sa * mask
                qa = qa * mask
            cs = jnp.sum(sa, axis=1, keepdims=True)
            cq = jnp.sum(qa, axis=1, keepdims=True)
            s2 = cs if s2 is None else s2 + cs
            q2 = cq if q2 is None else q2 + cq
        sum2_ref[...] += s2
        sq2_ref[...] += q2


def make_mlp_call(K, BS, C_in, C1, C2, tile_bs=512):
    """Build the pallas_call.  Returns (callable, TBS, BS_pad)."""
    TBS = min(_round_up(BS, LANE), _round_up(tile_bs, LANE))   # lane-aligned row tile
    BS_pad = _round_up(BS, TBS)
    T = BS_pad // TBS
    M = K * BS                                    # true BN-statistics count

    kernel = functools.partial(_mlp_stats_max_kernel, K=K, TBS=TBS, BS=BS, M=M)

    vec1 = pl.BlockSpec((C1, 1), lambda s, j: (0, 0))
    call = pl.pallas_call(
        kernel,
        out_shape=(
            jax.ShapeDtypeStruct((C2, BS_pad), jnp.float32),   # max_k of sign-flipped h2
            jax.ShapeDtypeStruct((C2, 1), jnp.float32),        # sum   of h2 (BN2 stats)
            jax.ShapeDtypeStruct((C2, 1), jnp.float32),        # sumsq of h2 (BN2 stats)
        ),
        grid_spec=pltpu.PrefetchScalarGridSpec(
            num_scalar_prefetch=0,
            grid=(2, T),                                       # (sweep, row tile)
            in_specs=[
                pl.BlockSpec((K, C_in, TBS), lambda s, j: (0, 0, j)),   # x (bf16)
                pl.BlockSpec((C1, C_in), lambda s, j: (0, 0)),          # W1^T (bf16)
                vec1, vec1,                                             # gamma1, beta1
                pl.BlockSpec((C2, C1), lambda s, j: (0, 0)),            # W2^T (sign-folded)
            ],
            out_specs=[
                # stays at block 0 during sweep 0 (never flushed with garbage), walks
                # the row tiles only in sweep 1 -> each output block written once.
                pl.BlockSpec((C2, TBS), lambda s, j: (0, j * s)),
                pl.BlockSpec((C2, 1), lambda s, j: (0, 0)),
                pl.BlockSpec((C2, 1), lambda s, j: (0, 0)),
            ],
            scratch_shapes=[pltpu.VMEM((C1, 1), jnp.float32)] * 4,  # sum1, sq1, sc1, sh1
        ),
        compiler_params=pltpu.CompilerParams(
            # Both axes carry cross-step state (sweep order + stat accumulators).
            dimension_semantics=("arbitrary", "arbitrary"),
        ),
    )
    return call, TBS, BS_pad


# ------------------------------ JAX glue ----------------------------------- #
def farthest_point_sample(xyz, npoint):
    # NOTE: torch uses randint for the initial farthest point; we deterministically
    # start at index 0 (the algorithm is otherwise identical).
    B, N, _ = xyz.shape
    centroids0 = jnp.zeros((B, npoint), jnp.int32)
    distance0 = jnp.full((B, N), 1e10, jnp.float32)
    farthest0 = jnp.zeros((B,), jnp.int32)

    def body(i, state):
        centroids, distance, farthest = state
        centroids = centroids.at[:, i].set(farthest)
        centroid = jnp.take_along_axis(xyz, farthest[:, None, None], axis=1)  # [B,1,3]
        dist = jnp.sum((xyz - centroid) ** 2, axis=-1)
        distance = jnp.minimum(distance, dist)
        farthest = jnp.argmax(distance, axis=-1).astype(jnp.int32)
        return centroids, distance, farthest

    centroids, _, _ = lax.fori_loop(0, npoint, body,
                                    (centroids0, distance0, farthest0))
    return centroids


def index_points(points, idx):
    B = points.shape[0]
    flat = idx.reshape(B, -1)
    out = jnp.take_along_axis(points, flat[..., None], axis=1)
    return out.reshape(*idx.shape, points.shape[-1])


def square_distance(src, dst):
    return jnp.sum((src[:, :, None, :] - dst[:, None, :, :]) ** 2, axis=-1)


def group_features(xyz, points, npoint, nsample):
    """sample_and_group (knn=True).  Returns new_xyz [B,S,3] and feats [B,S,K,C_in]."""
    fps_idx = farthest_point_sample(xyz, npoint)                   # [B, S]
    new_xyz = index_points(xyz, fps_idx)                           # [B, S, 3]
    dists = square_distance(new_xyz, xyz)                          # [B, S, N]
    _, idx = lax.top_k(-dists, nsample)                            # k nearest (no full sort)
    grouped_xyz = index_points(xyz, idx) - new_xyz[:, :, None, :]  # [B, S, K, 3]
    grouped_points = index_points(points, idx)                     # [B, S, K, D]
    feats = jnp.concatenate([grouped_xyz, grouped_points], -1)     # [B, S, K, C_in]
    return new_xyz, feats


def transition_down_forward(xyz, points, params, npoint, nsample, tile_bs=512):
    """xyz: [B, N, 3], points: [B, N, D] -> (new_xyz [B,S,3], new_points [B,S,C2])."""
    B = xyz.shape[0]
    S, K = npoint, nsample
    (w1, g1, be1), (w2, g2, be2) = params        # conv biases dropped (BN cancels them)
    C_in, C1 = w1.shape
    C2 = w2.shape[1]
    BS = B * S

    new_xyz, feats = group_features(xyz, points, npoint, nsample)
    # lane-dense, channel-major layout [K, C_in, B*S]; bf16 halves the dominant DMA.
    x = jnp.transpose(feats, (2, 3, 0, 1)).reshape(K, C_in, BS).astype(jnp.bfloat16)

    call, _, BS_pad = make_mlp_call(K, BS, C_in, C1, C2, tile_bs=tile_bs)
    if BS_pad != BS:
        x = jnp.pad(x, ((0, 0), (0, 0), (0, BS_pad - BS)))    # zero lanes, masked in-kernel

    # Fold sign(gamma2) into W2^T rows: the kernel's running max of the sign-flipped h2
    # is the per-channel max (gamma2>=0) or min (gamma2<0) of the real h2, which is
    # exactly what the monotone LeakyReLU(BN2(.)) + max-over-K needs.
    sgn2 = jnp.where(g2 >= 0, 1.0, -1.0)                      # [C2]
    w1t = w1.T.astype(jnp.bfloat16)                           # [C1, C_in]
    w2t = (w2 * sgn2[None, :]).T.astype(jnp.float32)          # [C2, C1], rows sign-flipped
    g1c = g1.reshape(C1, 1).astype(jnp.float32)
    be1c = be1.reshape(C1, 1).astype(jnp.float32)

    smax, sum2, sq2 = call(x, w1t, g1c, be1c, w2t)            # [C2,BS_pad], [C2,1], [C2,1]

    # BN2 + LeakyReLU epilogue on the tiny [C2, BS] result.
    M = K * BS
    sum2 = sum2[:, 0]
    sq2 = sq2[:, 0]
    mean2 = sgn2 * (sum2 / M)                                  # un-flip the mean
    var2 = jnp.maximum(sq2 / M - (sum2 / M) ** 2, 0.0)         # sign drops out of var
    scale2 = g2 * lax.rsqrt(var2 + EPS)
    shift2 = be2 - mean2 * scale2
    h = scale2[:, None] * (sgn2[:, None] * smax) + shift2[:, None]
    h = jnp.maximum(h, NEG_SLOPE * h)                          # LeakyReLU
    out = h[:, :BS].T.reshape(B, S, C2)
    return new_xyz, out


def _mlp_max_ref(feats, full_params):
    """Pure-JAX reference of the original math (conv bias, two-pass BN, max over K)."""
    B, S, K, C = feats.shape
    h = feats.reshape(-1, C)
    for (w, b, g, be) in full_params:
        h = h @ w + b
        mean = h.mean(0, keepdims=True)
        var = ((h - mean) ** 2).mean(0, keepdims=True)
        h = (h - mean) / jnp.sqrt(var + EPS) * g + be
        h = jnp.where(h >= 0, h, NEG_SLOPE * h)
    return h.reshape(B, S, K, -1).max(axis=2)                  # [B, S, C2]


# ------------------------------- main --------------------------------------- #
if __name__ == "__main__":
    # TransitionDown(k=72, nneighbor=8, channels=[7, 32, 32]) => points carry 4 feats.
    # B*npoint = 144: tile_bs=128 forces two row tiles with a padded tail (multi-tile
    # stats + lane mask); tile_bs=512 gives the single-tile (T=1, x DMA'd once) path.
    B, N, D = 2, 96, 4
    k_npoint, nneighbor = 72, 8
    C_in, C1, C2 = D + 3, 32, 32

    key = jax.random.PRNGKey(0)
    kx, kp, kw1, kb1, kw2, kb2, kg2 = jax.random.split(key, 7)

    xyz = jax.random.normal(kx, (B, N, 3), jnp.float32)
    points = jax.random.normal(kp, (B, N, D), jnp.float32)

    # Conv2d(1x1) params as matmul weights; BatchNorm2d init (gamma2 gets some negative
    # entries to exercise the negative-BN-scale / min-of-h2 path).
    def conv_init(kw, kb, cin, cout):
        bound = 1.0 / np.sqrt(cin)
        w = jax.random.uniform(kw, (cin, cout), jnp.float32, -bound, bound)
        b = jax.random.uniform(kb, (cout,), jnp.float32, -bound, bound)
        return w, b

    w1, b1 = conv_init(kw1, kb1, C_in, C1)
    w2, b2 = conv_init(kw2, kb2, C1, C2)
    g1, be1 = jnp.ones((C1,), jnp.float32), jnp.zeros((C1,), jnp.float32)
    g2 = jnp.where(jax.random.uniform(kg2, (C2,)) < 0.25, -1.0, 1.0)
    be2 = jnp.zeros((C2,), jnp.float32)

    # Kernel params exclude the conv biases (exactly cancelled by BN mean-subtraction).
    params = ((w1, g1, be1), (w2, g2, be2))

    outs = []
    for tb in (128, 512):
        new_xyz, new_points = transition_down_forward(xyz, points, params,
                                                      k_npoint, nneighbor, tile_bs=tb)
        jax.block_until_ready((new_xyz, new_points))
        outs.append(new_points)

    # Correctness: original module math (incl. conv bias) applied to the same
    # bf16-quantized features / first-layer weights the kernel consumes.
    _, feats = group_features(xyz, points, k_npoint, nneighbor)
    feats_q = feats.astype(jnp.bfloat16).astype(jnp.float32)
    w1_q = w1.astype(jnp.bfloat16).astype(jnp.float32)
    ref = _mlp_max_ref(feats_q, ((w1_q, b1, g1, be1), (w2, b2, g2, be2)))

    for got in outs:
        np.testing.assert_allclose(np.asarray(got), np.asarray(ref),
                                   rtol=2e-4, atol=2e-4)
    print("KERNEL_OK")
</pallas_src>

<mosaic_0001>
module attributes {stable_mosaic.version = 11 : i64} {
  func.func @_mlp_stats_max_kernel(%arg0: i32, %arg1: i32, %arg2: memref<8x7x128xbf16, #tpu.memory_space<vmem>>, %arg3: memref<32x7xbf16, #tpu.memory_space<vmem>>, %arg4: memref<32x1xf32, #tpu.memory_space<vmem>>, %arg5: memref<32x1xf32, #tpu.memory_space<vmem>>, %arg6: memref<32x32xf32, #tpu.memory_space<vmem>>, %arg7: memref<32x128xf32, #tpu.memory_space<vmem>>, %arg8: memref<32x1xf32, #tpu.memory_space<vmem>>, %arg9: memref<32x1xf32, #tpu.memory_space<vmem>>, %arg10: memref<32x1xf32, #tpu.memory_space<vmem>>, %arg11: memref<32x1xf32, #tpu.memory_space<vmem>>, %arg12: memref<32x1xf32, #tpu.memory_space<vmem>>, %arg13: memref<32x1xf32, #tpu.memory_space<vmem>>) attributes {dimension_semantics = [#tpu.dimension_semantics<arbitrary>, #tpu.dimension_semantics<arbitrary>], iteration_bounds = array<i64: 2, 2>, scalar_prefetch = 0 : i64, scratch_operands = 4 : i64, tpu.core_type = #tpu.core_type<tc>, window_params = [{transform_indices = @transform_0, window_bounds = array<i64: 8, 7, 128>}, {pipeline_mode = #tpu.pipeline_mode<synchronous>, transform_indices = @transform_1, window_bounds = array<i64: 32, 7>}, {pipeline_mode = #tpu.pipeline_mode<synchronous>, transform_indices = @transform_2, window_bounds = array<i64: 32, 1>}, {pipeline_mode = #tpu.pipeline_mode<synchronous>, transform_indices = @transform_3, window_bounds = array<i64: 32, 1>}, {pipeline_mode = #tpu.pipeline_mode<synchronous>, transform_indices = @transform_4, window_bounds = array<i64: 32, 32>}, {transform_indices = @transform_5, window_bounds = array<i64: 32, 128>}, {pipeline_mode = #tpu.pipeline_mode<synchronous>, transform_indices = @transform_6, window_bounds = array<i64: 32, 1>}, {pipeline_mode = #tpu.pipeline_mode<synchronous>, transform_indices = @transform_7, window_bounds = array<i64: 32, 1>}]} {
    %c0_i32 = arith.constant 0 : i32
    %0 = arith.cmpi eq, %arg0, %c0_i32 : i32
    %c0_i32_0 = arith.constant 0 : i32
    %1 = arith.cmpi eq, %arg1, %c0_i32_0 : i32
    %2 = arith.andi %0, %1 : i1
    %3 = arith.extui %2 : i1 to i32
    %c0_i32_1 = arith.constant 0 : i32
    %4 = arith.cmpi ne, %3, %c0_i32_1 : i32
    scf.if %4 {
      %cst = arith.constant 0.000000e+00 : f32
      %17 = vector.broadcast %cst : f32 to vector<32x1xf32>
      %c0_9 = arith.constant 0 : index
      %c0_10 = arith.constant 0 : index
      %18 = vector.load %arg10[%c0_9, %c0_10] : memref<32x1xf32, #tpu.memory_space<vmem>>, vector<32x1xf32>
      tpu.vector_store %arg10[%c0_9, %c0_10], %17 {strides = array<i32>} : memref<32x1xf32, #tpu.memory_space<vmem>>, vector<32x1xf32>,
      %cst_11 = arith.constant 0.000000e+00 : f32
      %19 = vector.broadcast %cst_11 : f32 to vector<32x1xf32>
      %c0_12 = arith.constant 0 : index
      %c0_13 = arith.constant 0 : index
      %20 = vector.load %arg11[%c0_12, %c0_13] : memref<32x1xf32, #tpu.memory_space<vmem>>, vector<32x1xf32>
      tpu.vector_store %arg11[%c0_12, %c0_13], %19 {strides = array<i32>} : memref<32x1xf32, #tpu.memory_space<vmem>>, vector<32x1xf32>,
    } else {
    }
    %c1_i32 = arith.constant 1 : i32
    %5 = arith.cmpi eq, %arg0, %c1_i32 : i32
    %c0_i32_2 = arith.constant 0 : i32
    %6 = arith.cmpi eq, %arg1, %c0_i32_2 : i32
    %7 = arith.andi %5, %6 : i1
    %8 = arith.extui %7 : i1 to i32
    %c0_i32_3 = arith.constant 0 : i32
    %9 = arith.cmpi ne, %8, %c0_i32_3 : i32
    scf.if %9 {
      %cst = arith.constant 0.000000e+00 : f32
      %17 = vector.broadcast %cst : f32 to vector<32x1xf32>
      %c0_9 = arith.constant 0 : index
      %c0_10 = arith.constant 0 : index
      %18 = vector.load %arg8[%c0_9, %c0_10] : memref<32x1xf32, #tpu.memory_space<vmem>>, vector<32x1xf32>
      tpu.vector_store %arg8[%c0_9, %c0_10], %17 {strides = array<i32>} : memref<32x1xf32, #tpu.memory_space<vmem>>, vector<32x1xf32>,
      %cst_11 = arith.constant 0.000000e+00 : f32
      %19 = vector.broadcast %cst_11 : f32 to vector<32x1xf32>
      %c0_12 = arith.constant 0 : index
      %c0_13 = arith.constant 0 : index
      %20 = vector.load %arg9[%c0_12, %c0_13] : memref<32x1xf32, #tpu.memory_space<vmem>>, vector<32x1xf32>
      tpu.vector_store %arg9[%c0_12, %c0_13], %19 {strides = array<i32>} : memref<32x1xf32, #tpu.memory_space<vmem>>, vector<32x1xf32>,
    } else {
    }
    %c0 = arith.constant 0 : index
    %c0_4 = arith.constant 0 : index
    %10 = vector.load %arg3[%c0, %c0_4] : memref<32x7xbf16, #tpu.memory_space<vmem>>, vector<32x7xbf16>
    %c0_i32_5 = arith.constant 0 : i32
    %11 = arith.cmpi eq, %arg0, %c0_i32_5 : i32
    %12 = arith.extui %11 : i1 to i32
    %c0_i32_6 = arith.constant 0 : i32
    %13 = arith.cmpi ne, %12, %c0_i32_6 : i32
    scf.if %13 {
      %c0_9 = arith.constant 0 : index
      %c0_10 = arith.constant 0 : index
      %c0_11 = arith.constant 0 : index
      %17 = vector.load %arg2[%c0_9, %c0_10, %c0_11] : memref<8x7x128xbf16, #tpu.memory_space<vmem>>, vector<1x7x128xbf16>
      %18 = vector.shape_cast %17 : vector<1x7x128xbf16> to vector<7x128xbf16>
      %cst = arith.constant dense<0.000000e+00> : vector<32x128xf32>
      %19 = tpu.matmul %10, %18, %cst {dimension_numbers = #tpu.dot_dimension_numbers<[1], [0], [0], [1], [0, 0, 1, 1], [], []>} : vector<32x7xbf16>, vector<7x128xbf16>, vector<32x128xf32> -> vector<32x128xf32>
      %20 = arith.mulf %19, %19 : vector<32x128xf32>
      %c1 = arith.constant 1 : index
      %c0_12 = arith.constant 0 : index
      %c0_13 = arith.constant 0 : index
      %21 = vector.load %arg2[%c1, %c0_12, %c0_13] : memref<8x7x128xbf16, #tpu.memory_space<vmem>>, vector<1x7x128xbf16>
      %22 = vector.shape_cast %21 : vector<1x7x128xbf16> to vector<7x128xbf16>
      %cst_14 = arith.constant dense<0.000000e+00> : vector<32x128xf32>
      %23 = tpu.matmul %10, %22, %cst_14 {dimension_numbers = #tpu.dot_dimension_numbers<[1], [0], [0], [1], [0, 0, 1, 1], [], []>} : vector<32x7xbf16>, vector<7x128xbf16>, vector<32x128xf32> -> vector<32x128xf32>
      %24 = arith.addf %19, %23 : vector<32x128xf32>
      %25 = arith.mulf %23, %23 : vector<32x128xf32>
      %26 = arith.addf %20, %25 : vector<32x128xf32>
      %c2 = arith.constant 2 : index
      %c0_15 = arith.constant 0 : index
      %c0_16 = arith.constant 0 : index
      %27 = vector.load %arg2[%c2, %c0_15, %c0_16] : memref<8x7x128xbf16, #tpu.memory_space<vmem>>, vector<1x7x128xbf16>
      %28 = vector.shape_cast %27 : vector<1x7x128xbf16> to vector<7x128xbf16>
      %cst_17 = arith.constant dense<0.000000e+00> : vector<32x128xf32>
      %29 = tpu.matmul %10, %28, %cst_17 {dimension_numbers = #tpu.dot_dimension_numbers<[1], [0], [0], [1], [0, 0, 1, 1], [], []>} : vector<32x7xbf16>, vector<7x128xbf16>, vector<32x128xf32> -> vector<32x128xf32>
      %30 = arith.addf %24, %29 : vector<32x128xf32>
      %31 = arith.mulf %29, %29 : vector<32x128xf32>
      %32 = arith.addf %26, %31 : vector<32x128xf32>
      %c3 = arith.constant 3 : index
      %c0_18 = arith.constant 0 : index
      %c0_19 = arith.constant 0 : index
      %33 = vector.load %arg2[%c3, %c0_18, %c0_19] : memref<8x7x128xbf16, #tpu.memory_space<vmem>>, vector<1x7x128xbf16>
      %34 = vector.shape_cast %33 : vector<1x7x128xbf16> to vector<7x128xbf16>
      %cst_20 = arith.constant dense<0.000000e+00> : vector<32x128xf32>
      %35 = tpu.matmul %10, %34, %cst_20 {dimension_numbers = #tpu.dot_dimension_numbers<[1], [0], [0], [1], [0, 0, 1, 1], [], []>} : vector<32x7xbf16>, vector<7x128xbf16>, vector<32x128xf32> -> vector<32x128xf32>
      %36 = arith.addf %30, %35 : vector<32x128xf32>
      %37 = arith.mulf %35, %35 : vector<32x128xf32>
      %38 = arith.addf %32, %37 : vector<32x128xf32>
      %c4 = arith.constant 4 : index
      %c0_21 = arith.constant 0 : index
      %c0_22 = arith.constant 0 : index
      %39 = vector.load %arg2[%c4, %c0_21, %c0_22] : memref<8x7x128xbf16, #tpu.memory_space<vmem>>, vector<1x7x128xbf16>
      %40 = vector.shape_cast %39 : vector<1x7x128xbf16> to vector<7x128xbf16>
      %cst_23 = arith.constant dense<0.000000e+00> : vector<32x128xf32>
      %41 = tpu.matmul %10, %40, %cst_23 {dimension_numbers = #tpu.dot_dimension_numbers<[1], [0], [0], [1], [0, 0, 1, 1], [], []>} : vector<32x7xbf16>, vector<7x128xbf16>, vector<32x128xf32> -> vector<32x128xf32>
      %42 = arith.addf %36, %41 : vector<32x128xf32>
      %43 = arith.mulf %41, %41 : vector<32x128xf32>
      %44 = arith.addf %38, %43 : vector<32x128xf32>
      %c5 = arith.constant 5 : index
      %c0_24 = arith.constant 0 : index
      %c0_25 = arith.constant 0 : index
      %45 = vector.load %arg2[%c5, %c0_24, %c0_25] : memref<8x7x128xbf16, #tpu.memory_space<vmem>>, vector<1x7x128xbf16>
      %46 = vector.shape_cast %45 : vector<1x7x128xbf16> to vector<7x128xbf16>
      %cst_26 = arith.constant dense<0.000000e+00> : vector<32x128xf32>
      %47 = tpu.matmul %10, %46, %cst_26 {dimension_numbers = #tpu.dot_dimension_numbers<[1], [0], [0], [1], [0, 0, 1, 1], [], []>} : vector<32x7xbf16>, vector<7x128xbf16>, vector<32x128xf32> -> vector<32x128xf32>
      %48 = arith.addf %42, %47 : vector<32x128xf32>
      %49 = arith.mulf %47, %47 : vector<32x128xf32>
      %50 = arith.addf %44, %49 : vector<32x128xf32>
      %c6 = arith.constant 6 : index
      %c0_27 = arith.constant 0 : index
      %c0_28 = arith.constant 0 : index
      %51 = vector.load %arg2[%c6, %c0_27, %c0_28] : memref<8x7x128xbf16, #tpu.memory_space<vmem>>, vector<1x7x128xbf16>
      %52 = vector.shape_cast %51 : vector<1x7x128xbf16> to vector<7x128xbf16>
      %cst_29 = arith.constant dense<0.000000e+00> : vector<32x128xf32>
      %53 = tpu.matmul %10, %52, %cst_29 {dimension_numbers = #tpu.dot_dimension_numbers<[1], [0], [0], [1], [0, 0, 1, 1], [], []>} : vector<32x7xbf16>, vector<7x128xbf16>, vector<32x128xf32> -> vector<32x128xf32>
      %54 = arith.addf %48, %53 : vector<32x128xf32>
      %55 = arith.mulf %53, %53 : vector<32x128xf32>
      %56 = arith.addf %50, %55 : vector<32x128xf32>
      %c7 = arith.constant 7 : index
      %c0_30 = arith.constant 0 : index
      %c0_31 = arith.constant 0 : index
      %57 = vector.load %arg2[%c7, %c0_30, %c0_31] : memref<8x7x128xbf16, #tpu.memory_space<vmem>>, vector<1x7x128xbf16>
      %58 = vector.shape_cast %57 : vector<1x7x128xbf16> to vector<7x128xbf16>
      %cst_32 = arith.constant dense<0.000000e+00> : vector<32x128xf32>
      %59 = tpu.matmul %10, %58, %cst_32 {dimension_numbers = #tpu.dot_dimension_numbers<[1], [0], [0], [1], [0, 0, 1, 1], [], []>} : vector<32x7xbf16>, vector<7x128xbf16>, vector<32x128xf32> -> vector<32x128xf32>
      %60 = arith.addf %54, %59 : vector<32x128xf32>
      %61 = arith.mulf %59, %59 : vector<32x128xf32>
      %62 = arith.addf %56, %61 : vector<32x128xf32>
      %cst_33 = arith.constant dense<0.000000e+00> : vector<32xf32>
      %63 = vector.multi_reduction <add>, %60, %cst_33 [1] : vector<32x128xf32> to vector<32xf32>
      %64 = vector.shape_cast %63 : vector<32xf32> to vector<32x1xf32>
      %cst_34 = arith.constant dense<0.000000e+00> : vector<32xf32>
      %65 = vector.multi_reduction <add>, %62, %cst_34 [1] : vector<32x128xf32> to vector<32xf32>
      %66 = vector.shape_cast %65 : vector<32xf32> to vector<32x1xf32>
      %c0_35 = arith.constant 0 : index
      %c0_36 = arith.constant 0 : index
      %67 = vector.load %arg10[%c0_35, %c0_36] : memref<32x1xf32, #tpu.memory_space<vmem>>, vector<32x1xf32>
      %68 = arith.addf %67, %64 : vector<32x1xf32>
      %c0_37 = arith.constant 0 : index
      %c0_38 = arith.constant 0 : index
      %69 = vector.load %arg10[%c0_37, %c0_38] : memref<32x1xf32, #tpu.memory_space<vmem>>, vector<32x1xf32>
      tpu.vector_store %arg10[%c0_37, %c0_38], %68 {strides = array<i32>} : memref<32x1xf32, #tpu.memory_space<vmem>>, vector<32x1xf32>,
      %c0_39 = arith.constant 0 : index
      %c0_40 = arith.constant 0 : index
      %70 = vector.load %arg11[%c0_39, %c0_40] : memref<32x1xf32, #tpu.memory_space<vmem>>, vector<32x1xf32>
      %71 = arith.addf %70, %66 : vector<32x1xf32>
      %c0_41 = arith.constant 0 : index
      %c0_42 = arith.constant 0 : index
      %72 = vector.load %arg11[%c0_41, %c0_42] : memref<32x1xf32, #tpu.memory_space<vmem>>, vector<32x1xf32>
      tpu.vector_store %arg11[%c0_41, %c0_42], %71 {strides = array<i32>} : memref<32x1xf32, #tpu.memory_space<vmem>>, vector<32x1xf32>,
      %c1_i32_43 = arith.constant 1 : i32
      %73 = arith.cmpi eq, %arg1, %c1_i32_43 : i32
      %74 = arith.extui %73 : i1 to i32
      %c0_i32_44 = arith.constant 0 : i32
      %75 = arith.cmpi ne, %74, %c0_i32_44 : i32
      scf.if %75 {
        %c0_45 = arith.constant 0 : index
        %c0_46 = arith.constant 0 : index
        %76 = vector.load %arg10[%c0_45, %c0_46] : memref<32x1xf32, #tpu.memory_space<vmem>>, vector<32x1xf32>
        %cst_47 = arith.constant 8.68055562E-4 : f32
        %77 = vector.broadcast %cst_47 : f32 to vector<32x1xf32>
        %78 = arith.mulf %76, %77 : vector<32x1xf32>
        %c0_48 = arith.constant 0 : index
        %c0_49 = arith.constant 0 : index
        %79 = vector.load %arg11[%c0_48, %c0_49] : memref<32x1xf32, #tpu.memory_space<vmem>>, vector<32x1xf32>
        %cst_50 = arith.constant 8.68055562E-4 : f32
        %80 = vector.broadcast %cst_50 : f32 to vector<32x1xf32>
        %81 = arith.mulf %79, %80 : vector<32x1xf32>
        %82 = arith.mulf %78, %78 : vector<32x1xf32>
        %83 = arith.subf %81, %82 : vector<32x1xf32>
        %cst_51 = arith.constant 0.000000e+00 : f32
        %84 = vector.broadcast %cst_51 : f32 to vector<32x1xf32>
        %85 = arith.maximumf %83, %84 : vector<32x1xf32>
        %c0_52 = arith.constant 0 : index
        %c0_53 = arith.constant 0 : index
        %86 = vector.load %arg4[%c0_52, %c0_53] : memref<32x1xf32, #tpu.memory_space<vmem>>, vector<32x1xf32>
        %cst_54 = arith.constant 9.99999974E-6 : f32
        %87 = vector.broadcast %cst_54 : f32 to vector<32x1xf32>
        %88 = arith.addf %85, %87 : vector<32x1xf32>
        %89 = math.rsqrt %88 : vector<32x1xf32>
        %90 = arith.mulf %86, %89 : vector<32x1xf32>
        %c0_55 = arith.constant 0 : index
        %c0_56 = arith.constant 0 : index
        %91 = vector.load %arg12[%c0_55, %c0_56] : memref<32x1xf32, #tpu.memory_space<vmem>>, vector<32x1xf32>
        tpu.vector_store %arg12[%c0_55, %c0_56], %90 {strides = array<i32>} : memref<32x1xf32, #tpu.memory_space<vmem>>, vector<32x1xf32>,
        %c0_57 = arith.constant 0 : index
        %c0_58 = arith.constant 0 : index
        %92 = vector.load %arg5[%c0_57, %c0_58] : memref<32x1xf32, #tpu.memory_space<vmem>>, vector<32x1xf32>
        %93 = arith.mulf %78, %90 : vector<32x1xf32>
        %94 = arith.subf %92, %93 : vector<32x1xf32>
        %c0_59 = arith.constant 0 : index
        %c0_60 = arith.constant 0 : index
        %95 = vector.load %arg13[%c0_59, %c0_60] : memref<32x1xf32, #tpu.memory_space<vmem>>, vector<32x1xf32>
        tpu.vector_store %arg13[%c0_59, %c0_60], %94 {strides = array<i32>} : memref<32x1xf32, #tpu.memory_space<vmem>>, vector<32x1xf32>,
      } else {
      }
    } else {
    }
    %c1_i32_7 = arith.constant 1 : i32
    %14 = arith.cmpi eq, %arg0, %c1_i32_7 : i32
    %15 = arith.extui %14 : i1 to i32
    %c0_i32_8 = arith.constant 0 : i32
    %16 = arith.cmpi ne, %15, %c0_i32_8 : i32
    scf.if %16 {
      %c0_9 = arith.constant 0 : index
      %c0_10 = arith.constant 0 : index
      %17 = vector.load %arg12[%c0_9, %c0_10] : memref<32x1xf32, #tpu.memory_space<vmem>>, vector<32x1xf32>
      %c0_11 = arith.constant 0 : index
      %c0_12 = arith.constant 0 : index
      %18 = vector.load %arg13[%c0_11, %c0_12] : memref<32x1xf32, #tpu.memory_space<vmem>>, vector<32x1xf32>
      %c0_13 = arith.constant 0 : index
      %c0_14 = arith.constant 0 : index
      %19 = vector.load %arg6[%c0_13, %c0_14] : memref<32x32xf32, #tpu.memory_space<vmem>>, vector<32x32xf32>
      %c0_15 = arith.constant 0 : index
      %c0_16 = arith.constant 0 : index
      %c0_17 = arith.constant 0 : index
      %20 = vector.load %arg2[%c0_15, %c0_16, %c0_17] : memref<8x7x128xbf16, #tpu.memory_space<vmem>>, vector<1x7x128xbf16>
      %21 = vector.shape_cast %20 : vector<1x7x128xbf16> to vector<7x128xbf16>
      %cst = arith.constant dense<0.000000e+00> : vector<32x128xf32>
      %22 = tpu.matmul %10, %21, %cst {dimension_numbers = #tpu.dot_dimension_numbers<[1], [0], [0], [1], [0, 0, 1, 1], [], []>} : vector<32x7xbf16>, vector<7x128xbf16>, vector<32x128xf32> -> vector<32x128xf32>
      %23 = vector.broadcast %17 : vector<32x1xf32> to vector<32x128xf32>
      %24 = arith.mulf %22, %23 : vector<32x128xf32>
      %25 = vector.broadcast %18 : vector<32x1xf32> to vector<32x128xf32>
      %26 = arith.addf %24, %25 : vector<32x128xf32>
      %cst_18 = arith.constant 0.00999999977 : f32
      %27 = vector.broadcast %cst_18 : f32 to vector<32x128xf32>
      %28 = arith.mulf %27, %26 : vector<32x128xf32>
      %29 = arith.maximumf %26, %28 : vector<32x128xf32>
      %cst_19 = arith.constant dense<0.000000e+00> : vector<32x128xf32>
      %30 = tpu.matmul %19, %29, %cst_19 {dimension_numbers = #tpu.dot_dimension_numbers<[1], [0], [0], [1], [0, 0, 1, 1], [], []>} : vector<32x32xf32>, vector<32x128xf32>, vector<32x128xf32> -> vector<32x128xf32>
      %31 = arith.mulf %30, %30 : vector<32x128xf32>
      %c1 = arith.constant 1 : index
      %c0_20 = arith.constant 0 : index
      %c0_21 = arith.constant 0 : index
      %32 = vector.load %arg2[%c1, %c0_20, %c0_21] : memref<8x7x128xbf16, #tpu.memory_space<vmem>>, vector<1x7x128xbf16>
      %33 = vector.shape_cast %32 : vector<1x7x128xbf16> to vector<7x128xbf16>
      %cst_22 = arith.constant dense<0.000000e+00> : vector<32x128xf32>
      %34 = tpu.matmul %10, %33, %cst_22 {dimension_numbers = #tpu.dot_dimension_numbers<[1], [0], [0], [1], [0, 0, 1, 1], [], []>} : vector<32x7xbf16>, vector<7x128xbf16>, vector<32x128xf32> -> vector<32x128xf32>
      %35 = vector.broadcast %17 : vector<32x1xf32> to vector<32x128xf32>
      %36 = arith.mulf %34, %35 : vector<32x128xf32>
      %37 = vector.broadcast %18 : vector<32x1xf32> to vector<32x128xf32>
      %38 = arith.addf %36, %37 : vector<32x128xf32>
      %cst_23 = arith.constant 0.00999999977 : f32
      %39 = vector.broadcast %cst_23 : f32 to vector<32x128xf32>
      %40 = arith.mulf %39, %38 : vector<32x128xf32>
      %41 = arith.maximumf %38, %40 : vector<32x128xf32>
      %cst_24 = arith.constant dense<0.000000e+00> : vector<32x128xf32>
      %42 = tpu.matmul %19, %41, %cst_24 {dimension_numbers = #tpu.dot_dimension_numbers<[1], [0], [0], [1], [0, 0, 1, 1], [], []>} : vector<32x32xf32>, vector<32x128xf32>, vector<32x128xf32> -> vector<32x128xf32>
      %43 = arith.maximumf %30, %42 : vector<32x128xf32>
      %44 = arith.addf %30, %42 : vector<32x128xf32>
      %45 = arith.mulf %42, %42 : vector<32x128xf32>
      %46 = arith.addf %31, %45 : vector<32x128xf32>
      %c2 = arith.constant 2 : index
      %c0_25 = arith.constant 0 : index
      %c0_26 = arith.constant 0 : index
      %47 = vector.load %arg2[%c2, %c0_25, %c0_26] : memref<8x7x128xbf16, #tpu.memory_space<vmem>>, vector<1x7x128xbf16>
      %48 = vector.shape_cast %47 : vector<1x7x128xbf16> to vector<7x128xbf16>
      %cst_27 = arith.constant dense<0.000000e+00> : vector<32x128xf32>
      %49 = tpu.matmul %10, %48, %cst_27 {dimension_numbers = #tpu.dot_dimension_numbers<[1], [0], [0], [1], [0, 0, 1, 1], [], []>} : vector<32x7xbf16>, vector<7x128xbf16>, vector<32x128xf32> -> vector<32x128xf32>
      %50 = vector.broadcast %17 : vector<32x1xf32> to vector<32x128xf32>
      %51 = arith.mulf %49, %50 : vector<32x128xf32>
      %52 = vector.broadcast %18 : vector<32x1xf32> to vector<32x128xf32>
      %53 = arith.addf %51, %52 : vector<32x128xf32>
      %cst_28 = arith.constant 0.00999999977 : f32
      %54 = vector.broadcast %cst_28 : f32 to vector<32x128xf32>
      %55 = arith.mulf %54, %53 : vector<32x128xf32>
      %56 = arith.maximumf %53, %55 : vector<32x128xf32>
      %cst_29 = arith.constant dense<0.000000e+00> : vector<32x128xf32>
      %57 = tpu.matmul %19, %56, %cst_29 {dimension_numbers = #tpu.dot_dimension_numbers<[1], [0], [0], [1], [0, 0, 1, 1], [], []>} : vector<32x32xf32>, vector<32x128xf32>, vector<32x128xf32> -> vector<32x128xf32>
      %58 = arith.maximumf %43, %57 : vector<32x128xf32>
      %59 = arith.addf %44, %57 : vector<32x128xf32>
      %60 = arith.mulf %57, %57 : vector<32x128xf32>
      %61 = arith.addf %46, %60 : vector<32x128xf32>
      %c3 = arith.constant 3 : index
      %c0_30 = arith.constant 0 : index
      %c0_31 = arith.constant 0 : index
      %62 = vector.load %arg2[%c3, %c0_30, %c0_31] : memref<8x7x128xbf16, #tpu.memory_space<vmem>>, vector<1x7x128xbf16>
      %63 = vector.shape_cast %62 : vector<1x7x128xbf16> to vector<7x128xbf16>
      %cst_32 = arith.constant dense<0.000000e+00> : vector<32x128xf32>
      %64 = tpu.matmul %10, %63, %cst_32 {dimension_numbers = #tpu.dot_dimension_numbers<[1], [0], [0], [1], [0, 0, 1, 1], [], []>} : vector<32x7xbf16>, vector<7x128xbf16>, vector<32x128xf32> -> vector<32x128xf32>
      %65 = vector.broadcast %17 : vector<32x1xf32> to vector<32x128xf32>
      %66 = arith.mulf %64, %65 : vector<32x128xf32>
      %67 = vector.broadcast %18 : vector<32x1xf32> to vector<32x128xf32>
      %68 = arith.addf %66, %67 : vector<32x128xf32>
      %cst_33 = arith.constant 0.00999999977 : f32
      %69 = vector.broadcast %cst_33 : f32 to vector<32x128xf32>
      %70 = arith.mulf %69, %68 : vector<32x128xf32>
      %71 = arith.maximumf %68, %70 : vector<32x128xf32>
      %cst_34 = arith.constant dense<0.000000e+00> : vector<32x128xf32>
      %72 = tpu.matmul %19, %71, %cst_34 {dimension_numbers = #tpu.dot_dimension_numbers<[1], [0], [0], [1], [0, 0, 1, 1], [], []>} : vector<32x32xf32>, vector<32x128xf32>, vector<32x128xf32> -> vector<32x128xf32>
      %73 = arith.maximumf %58, %72 : vector<32x128xf32>
      %74 = arith.addf %59, %72 : vector<32x128xf32>
      %75 = arith.mulf %72, %72 : vector<32x128xf32>
      %76 = arith.addf %61, %75 : vector<32x128xf32>
      %c4 = arith.constant 4 : index
      %c0_35 = arith.constant 0 : index
      %c0_36 = arith.constant 0 : index
      %77 = vector.load %arg2[%c4, %c0_35, %c0_36] : memref<8x7x128xbf16, #tpu.memory_space<vmem>>, vector<1x7x128xbf16>
      %78 = vector.shape_cast %77 : vector<1x7x128xbf16> to vector<7x128xbf16>
      %cst_37 = arith.constant dense<0.000000e+00> : vector<32x128xf32>
      %79 = tpu.matmul %10, %78, %cst_37 {dimension_numbers = #tpu.dot_dimension_numbers<[1], [0], [0], [1], [0, 0, 1, 1], [], []>} : vector<32x7xbf16>, vector<7x128xbf16>, vector<32x128xf32> -> vector<32x128xf32>
      %80 = vector.broadcast %17 : vector<32x1xf32> to vector<32x128xf32>
      %81 = arith.mulf %79, %80 : vector<32x128xf32>
      %82 = vector.broadcast %18 : vector<32x1xf32> to vector<32x128xf32>
      %83 = arith.addf %81, %82 : vector<32x128xf32>
      %cst_38 = arith.constant 0.00999999977 : f32
      %84 = vector.broadcast %cst_38 : f32 to vector<32x128xf32>
      %85 = arith.mulf %84, %83 : vector<32x128xf32>
      %86 = arith.maximumf %83, %85 : vector<32x128xf32>
      %cst_39 = arith.constant dense<0.000000e+00> : vector<32x128xf32>
      %87 = tpu.matmul %19, %86, %cst_39 {dimension_numbers = #tpu.dot_dimension_numbers<[1], [0], [0], [1], [0, 0, 1, 1], [], []>} : vector<32x32xf32>, vector<32x128xf32>, vector<32x128xf32> -> vector<32x128xf32>
      %88 = arith.maximumf %73, %87 : vector<32x128xf32>
      %89 = arith.addf %74, %87 : vector<32x128xf32>
      %90 = arith.mulf %87, %87 : vector<32x128xf32>
      %91 = arith.addf %76, %90 : vector<32x128xf32>
      %c5 = arith.constant 5 : index
      %c0_40 = arith.constant 0 : index
      %c0_41 = arith.constant 0 : index
      %92 = vector.load %arg2[%c5, %c0_40, %c0_41] : memref<8x7x128xbf16, #tpu.memory_space<vmem>>, vector<1x7x128xbf16>
      %93 = vector.shape_cast %92 : vector<1x7x128xbf16> to vector<7x128xbf16>
      %cst_42 = arith.constant dense<0.000000e+00> : vector<32x128xf32>
      %94 = tpu.matmul %10, %93, %cst_42 {dimension_numbers = #tpu.dot_dimension_numbers<[1], [0], [0], [1], [0, 0, 1, 1], [], []>} : vector<32x7xbf16>, vector<7x128xbf16>, vector<32x128xf32> -> vector<32x128xf32>
      %95 = vector.broadcast %17 : vector<32x1xf32> to vector<32x128xf32>
      %96 = arith.mulf %94, %95 : vector<32x128xf32>
      %97 = vector.broadcast %18 : vector<32x1xf32> to vector<32x128xf32>
      %98 = arith.addf %96, %97 : vector<32x128xf32>
      %cst_43 = arith.constant 0.00999999977 : f32
      %99 = vector.broadcast %cst_43 : f32 to vector<32x128xf32>
      %100 = arith.mulf %99, %98 : vector<32x128xf32>
      %101 = arith.maximumf %98, %100 : vector<32x128xf32>
      %cst_44 = arith.constant dense<0.000000e+00> : vector<32x128xf32>
      %102 = tpu.matmul %19, %101, %cst_44 {dimension_numbers = #tpu.dot_dimension_numbers<[1], [0], [0], [1], [0, 0, 1, 1], [], []>} : vector<32x32xf32>, vector<32x128xf32>, vector<32x128xf32> -> vector<32x128xf32>
      %103 = arith.maximumf %88, %102 : vector<32x128xf32>
      %104 = arith.addf %89, %102 : vector<32x128xf32>
      %105 = arith.mulf %102, %102 : vector<32x128xf32>
      %106 = arith.addf %91, %105 : vector<32x128xf32>
      %c6 = arith.constant 6 : index
      %c0_45 = arith.constant 0 : index
      %c0_46 = arith.constant 0 : index
      %107 = vector.load %arg2[%c6, %c0_45, %c0_46] : memref<8x7x128xbf16, #tpu.memory_space<vmem>>, vector<1x7x128xbf16>
      %108 = vector.shape_cast %107 : vector<1x7x128xbf16> to vector<7x128xbf16>
      %cst_47 = arith.constant dense<0.000000e+00> : vector<32x128xf32>
      %109 = tpu.matmul %10, %108, %cst_47 {dimension_numbers = #tpu.dot_dimension_numbers<[1], [0], [0], [1], [0, 0, 1, 1], [], []>} : vector<32x7xbf16>, vector<7x128xbf16>, vector<32x128xf32> -> vector<32x128xf32>
      %110 = vector.broadcast %17 : vector<32x1xf32> to vector<32x128xf32>
      %111 = arith.mulf %109, %110 : vector<32x128xf32>
      %112 = vector.broadcast %18 : vector<32x1xf32> to vector<32x128xf32>
      %113 = arith.addf %111, %112 : vector<32x128xf32>
      %cst_48 = arith.constant 0.00999999977 : f32
      %114 = vector.broadcast %cst_48 : f32 to vector<32x128xf32>
      %115 = arith.mulf %114, %113 : vector<32x128xf32>
      %116 = arith.maximumf %113, %115 : vector<32x128xf32>
      %cst_49 = arith.constant dense<0.000000e+00> : vector<32x128xf32>
      %117 = tpu.matmul %19, %116, %cst_49 {dimension_numbers = #tpu.dot_dimension_numbers<[1], [0], [0], [1], [0, 0, 1, 1], [], []>} : vector<32x32xf32>, vector<32x128xf32>, vector<32x128xf32> -> vector<32x128xf32>
      %118 = arith.maximumf %103, %117 : vector<32x128xf32>
      %119 = arith.addf %104, %117 : vector<32x128xf32>
      %120 = arith.mulf %117, %117 : vector<32x128xf32>
      %121 = arith.addf %106, %120 : vector<32x128xf32>
      %c7 = arith.constant 7 : index
      %c0_50 = arith.constant 0 : index
      %c0_51 = arith.constant 0 : index
      %122 = vector.load %arg2[%c7, %c0_50, %c0_51] : memref<8x7x128xbf16, #tpu.memory_space<vmem>>, vector<1x7x128xbf16>
      %123 = vector.shape_cast %122 : vector<1x7x128xbf16> to vector<7x128xbf16>
      %cst_52 = arith.constant dense<0.000000e+00> : vector<32x128xf32>
      %124 = tpu.matmul %10, %123, %cst_52 {dimension_numbers = #tpu.dot_dimension_numbers<[1], [0], [0], [1], [0, 0, 1, 1], [], []>} : vector<32x7xbf16>, vector<7x128xbf16>, vector<32x128xf32> -> vector<32x128xf32>
      %125 = vector.broadcast %17 : vector<32x1xf32> to vector<32x128xf32>
      %126 = arith.mulf %124, %125 : vector<32x128xf32>
      %127 = vector.broadcast %18 : vector<32x1xf32> to vector<32x128xf32>
      %128 = arith.addf %126, %127 : vector<32x128xf32>
      %cst_53 = arith.constant 0.00999999977 : f32
      %129 = vector.broadcast %cst_53 : f32 to vector<32x128xf32>
      %130 = arith.mulf %129, %128 : vector<32x128xf32>
      %131 = arith.maximumf %128, %130 : vector<32x128xf32>
      %cst_54 = arith.constant dense<0.000000e+00> : vector<32x128xf32>
      %132 = tpu.matmul %19, %131, %cst_54 {dimension_numbers = #tpu.dot_dimension_numbers<[1], [0], [0], [1], [0, 0, 1, 1], [], []>} : vector<32x32xf32>, vector<32x128xf32>, vector<32x128xf32> -> vector<32x128xf32>
      %133 = arith.maximumf %118, %132 : vector<32x128xf32>
      %134 = arith.addf %119, %132 : vector<32x128xf32>
      %135 = arith.mulf %132, %132 : vector<32x128xf32>
      %136 = arith.addf %121, %135 : vector<32x128xf32>
      %c0_55 = arith.constant 0 : index
      %c0_56 = arith.constant 0 : index
      %137 = vector.load %arg7[%c0_55, %c0_56] : memref<32x128xf32, #tpu.memory_space<vmem>>, vector<32x128xf32>
      tpu.vector_store %arg7[%c0_55, %c0_56], %133 {strides = array<i32>} : memref<32x128xf32, #tpu.memory_space<vmem>>, vector<32x128xf32>,
      %138 = tpu.iota {dimensions = array<i32: 1>} : vector<1x128xi32>
      %c128_i32 = arith.constant 128 : i32
      %139 = arith.muli %arg1, %c128_i32 : i32
      %c0_i32_57 = arith.constant 0 : i32
      %140 = arith.addi %139, %c0_i32_57 : i32
      %141 = vector.broadcast %140 : i32 to vector<1x128xi32>
      %142 = arith.addi %141, %138 : vector<1x128xi32>
      %c144_i32 = arith.constant 144 : i32
      %143 = vector.broadcast %c144_i32 : i32 to vector<1x128xi32>
      %144 = arith.cmpi slt, %142, %143 : vector<1x128xi32>
      %145 = arith.extui %144 : vector<1x128xi1> to vector<1x128xi32>
      %146 = arith.sitofp %145 : vector<1x128xi32> to vector<1x128xf32>
      %147 = vector.broadcast %146 : vector<1x128xf32> to vector<32x128xf32>
      %148 = arith.mulf %134, %147 : vector<32x128xf32>
      %149 = vector.broadcast %146 : vector<1x128xf32> to vector<32x128xf32>
      %150 = arith.mulf %136, %149 : vector<32x128xf32>
      %cst_58 = arith.constant dense<0.000000e+00> : vector<32xf32>
      %151 = vector.multi_reduction <add>, %148, %cst_58 [1] : vector<32x128xf32> to vector<32xf32>
      %152 = vector.shape_cast %151 : vector<32xf32> to vector<32x1xf32>
      %cst_59 = arith.constant dense<0.000000e+00> : vector<32xf32>
      %153 = vector.multi_reduction <add>, %150, %cst_59 [1] : vector<32x128xf32> to vector<32xf32>
      %154 = vector.shape_cast %153 : vector<32xf32> to vector<32x1xf32>
      %c0_60 = arith.constant 0 : index
      %c0_61 = arith.constant 0 : index
      %155 = vector.load %arg8[%c0_60, %c0_61] : memref<32x1xf32, #tpu.memory_space<vmem>>, vector<32x1xf32>
      %156 = arith.addf %155, %152 : vector<32x1xf32>
      %c0_62 = arith.constant 0 : index
      %c0_63 = arith.constant 0 : index
      %157 = vector.load %arg8[%c0_62, %c0_63] : memref<32x1xf32, #tpu.memory_space<vmem>>, vector<32x1xf32>
      tpu.vector_store %arg8[%c0_62, %c0_63], %156 {strides = array<i32>} : memref<32x1xf32, #tpu.memory_space<vmem>>, vector<32x1xf32>,
      %c0_64 = arith.constant 0 : index
      %c0_65 = arith.constant 0 : index
      %158 = vector.load %arg9[%c0_64, %c0_65] : memref<32x1xf32, #tpu.memory_space<vmem>>, vector<32x1xf32>
      %159 = arith.addf %158, %154 : vector<32x1xf32>
      %c0_66 = arith.constant 0 : index
      %c0_67 = arith.constant 0 : index
      %160 = vector.load %arg9[%c0_66, %c0_67] : memref<32x1xf32, #tpu.memory_space<vmem>>, vector<32x1xf32>
      tpu.vector_store %arg9[%c0_66, %c0_67], %159 {strides = array<i32>} : memref<32x1xf32, #tpu.memory_space<vmem>>, vector<32x1xf32>,
    } else {
    }
    return
  }
  func.func @transform_0(%arg0: i32, %arg1: i32) -> (i32, i32, i32) {
    %c0_i32 = arith.constant 0 : i32
    %c0_i32_0 = arith.constant 0 : i32
    %c0_i32_1 = arith.constant 0 : i32
    return %c0_i32, %c0_i32_0, %arg1 : i32, i32, i32
  }
  func.func @transform_1(%arg0: i32, %arg1: i32) -> (i32, i32) {
    %c0_i32 = arith.constant 0 : i32
    %c0_i32_0 = arith.constant 0 : i32
    %c0_i32_1 = arith.constant 0 : i32
    return %c0_i32, %c0_i32_0 : i32, i32
  }
  func.func @transform_2(%arg0: i32, %arg1: i32) -> (i32, i32) {
    %c0_i32 = arith.constant 0 : i32
    %c0_i32_0 = arith.constant 0 : i32
    %c0_i32_1 = arith.constant 0 : i32
    return %c0_i32, %c0_i32_0 : i32, i32
  }
  func.func @transform_3(%arg0: i32, %arg1: i32) -> (i32, i32) {
    %c0_i32 = arith.constant 0 : i32
    %c0_i32_0 = arith.constant 0 : i32
    %c0_i32_1 = arith.constant 0 : i32
    return %c0_i32, %c0_i32_0 : i32, i32
  }
  func.func @transform_4(%arg0: i32, %arg1: i32) -> (i32, i32) {
    %c0_i32 = arith.constant 0 : i32
    %c0_i32_0 = arith.constant 0 : i32
    %c0_i32_1 = arith.constant 0 : i32
    return %c0_i32, %c0_i32_0 : i32, i32
  }
  func.func @transform_5(%arg0: i32, %arg1: i32) -> (i32, i32) {
    %0 = arith.muli %arg1, %arg0 : i32
    %c0_i32 = arith.constant 0 : i32
    %c0_i32_0 = arith.constant 0 : i32
    return %c0_i32, %0 : i32, i32
  }
  func.func @transform_6(%arg0: i32, %arg1: i32) -> (i32, i32) {
    %c0_i32 = arith.constant 0 : i32
    %c0_i32_0 = arith.constant 0 : i32
    %c0_i32_1 = arith.constant 0 : i32
    return %c0_i32, %c0_i32_0 : i32, i32
  }
  func.func @transform_7(%arg0: i32, %arg1: i32) -> (i32, i32) {
    %c0_i32 = arith.constant 0 : i32
    %c0_i32_0 = arith.constant 0 : i32
    %c0_i32_1 = arith.constant 0 : i32
    return %c0_i32, %c0_i32_0 : i32, i32
  }
}

</mosaic_0001>

<llo_original>
// kernel: tpu_custom_call.1
$region0: #{tpu_custom_call.1}
  #allocation0 [shape = 'u32[]', space=smem, size = 0x4, offset = 0x4, fixed_abs, tag = 'smem constant byte address 0x4 - core index']
  #allocation1 [shape = 'u32[144,128]{1,0:T(1,128)}', space=vmem, size = 0x12000, scoped, tag = 'internal scratch']
  #allocation2 [shape = 'f32[32,1]{1,0:T(8,128)}', space=vmem, size = 0x4000, scoped, tag = 'scratch operand']
  #allocation3 [shape = 'f32[32,1]{1,0:T(8,128)}', space=vmem, size = 0x4000, scoped, tag = 'scratch operand']
  #allocation4 [shape = 'f32[32,1]{1,0:T(8,128)}', space=vmem, size = 0x4000, scoped, tag = 'scratch operand']
  #allocation5 [shape = 'f32[32,1]{1,0:T(8,128)}', space=vmem, size = 0x4000, scoped, tag = 'scratch operand']
  %s0 = inlined_call_operand.vmem [shape: bf16[8,7,256], index: 0, kind: input, shape index: {}]
  %s1 = inlined_call_operand.vmem [shape: bf16[32,7], index: 1, kind: input, shape index: {}]
  %s2 = inlined_call_operand.vmem [shape: f32[32,1], index: 2, kind: input, shape index: {}]
  %s3 = inlined_call_operand.vmem [shape: f32[32,1], index: 3, kind: input, shape index: {}]
  %s4 = inlined_call_operand.vmem [shape: f32[32,32], index: 4, kind: input, shape index: {}]
  %s5 = inlined_call_operand.hbm [shape: f32[32,256], index: 5, kind: output, shape index: {0}]
  %s6 = inlined_call_operand.vmem [shape: f32[32,1], index: 6, kind: output, shape index: {1}]
  %s7 = inlined_call_operand.vmem [shape: f32[32,1], index: 7, kind: output, shape index: {2}]
  %8 = xla_tuple %s5, %s6, %s7
  %s9 = sld [smem:[#allocation0]]
  $region130: #{tpu_custom_call.1} parent=0
    _
  %s11 = ssub.s32 1, %s9
  %s12 = scalar_select 0, %s11, %s9
  $region1: #{tpu_custom_call.1} parent=0
    #allocation6 [shape = 'u8[32768]{0}', space=vmem, size = 0x8000, scoped, tag = 'input window, operand 0']
    #allocation7 [shape = 'u8[32768]{0}', space=vmem, size = 0x8000, scoped, tag = 'output window, operand 0']
    #allocation8 [shape = 's32[2]{0}', space=sflag, size = 0x8, scoped, tag = 'scoped memory for tpu_custom_call.1']
    %13 = vsyncpa [#allocation8], 0
    %s14 = scalar_lea.sflag [#allocation8], 1
    %15 = vsyncpa %s14, 0
    loop: start=0, step=1, limit=6
    $region2: #{tpu_custom_call.1} parent=1 // loop_pre_header
      _
    $region3: #{tpu_custom_call.1} parent=1 // loop_header
      %s17 = sphi 0, %s21
      %p18 = scmp.ge.s32.totalorder %s17, 6
      %s24 = sphi 0, %s36
      %s25 = sphi 0, %s32
      %s26 = sphi 0, %s24
      %s27 = sphi 0, %s25
      %s28 = sphi 0, %s26
      %s29 = sphi 0, %s27
      %s39 = sphi 0, %s41
      %s42 = sphi 0, %s39
      %s43 = sphi 0, %s42
      %s59 = sphi 0, %s43
      %s63 = sphi 0, %s63
      %s65 = sphi 0, %s63
      %s66 = sphi 0, %s65
      %s80 = sphi 0, %s66
      %s84 = sphi 0, %s84
      %s86 = sphi 0, %s84
      %s87 = sphi 0, %s86
      %s101 = sphi 0, %s87
      %s105 = sphi 0, %s105
      %s107 = sphi 0, %s105
      %s108 = sphi 0, %s107
      %s122 = sphi 0, %s108
      %s126 = sphi 0, %s126
      %s128 = sphi 0, %s126
      %s129 = sphi 0, %s128
      %s143 = sphi 0, %s129
      %s151 = sphi 0, %s153
      %s154 = sphi 0, %s151
      %s155 = sphi 0, %s154
      %s171 = sphi 0, %s155
      %s175 = sphi 0, %s175
      %s177 = sphi 0, %s175
      %s178 = sphi 0, %s177
      %s192 = sphi 0, %s178
      %s196 = sphi 0, %s196
      %s198 = sphi 0, %s196
      %s199 = sphi 0, %s198
      %s213 = sphi 0, %s199
    $region4: #{tpu_custom_call.1} parent=1 // loop_header_branch
      %20 = sbr.rel (%p18) target = $region8
    $region5: #{tpu_custom_call.1} parent=1 // loop_body
      %s22 = ssub.s32 %s17, 1
      %s23 = ssub.s32 %s17, 2
      %s30 = sadd.s32 1, %s25
      %p31 = scmp.ge.s32.totalorder %s30, 2
      %s32 = scalar_select %p31, 0, %s30
      %s33 = sadd.s32 1, %s24
      %s34 = scalar_select %p31, %s33, %s24
      %p35 = scmp.ge.s32.totalorder %s34, 2
      %s36 = scalar_select %p35, 0, %s34
      %s37 = ssub.s32 %s25, %s32
      %p38 = scmp.eq.s32.totalorder %s37, 0
      %s40 = sadd.s32 %s39, 1
      %s41 = scalar_select %p38, %s39, %s40
      %p44 = pneg %p38
      %p45 = scmp.eq.s32.totalorder %s17, 3
      %p46 = por %p44, %p45
      %p47 = scmp.ne.s32.totalorder %s39, %s42
      %p48 = scmp.eq.s32.totalorder %s17, 0
      %p49 = por %p47, %p48
      %p50 = scmp.ne.s32.totalorder %s39, %s42
      %p51 = scmp.eq.s32.totalorder %s22, 3
      %p52 = por %p50, %p51
      %p53 = scmp.ne.s32.totalorder %s42, %s43
      %p54 = scmp.eq.s32.totalorder %s22, 0
      %p55 = por %p53, %p54
      %p56 = scmp.ne.s32.totalorder %s42, %s43
      %p57 = scmp.eq.s32.totalorder %s23, 3
      %p58 = por %p56, %p57
      %p60 = scmp.ne.s32.totalorder %s43, %s59
      %p61 = scmp.eq.s32.totalorder %s23, 0
      %p62 = por %p60, %p61
      %s64 = sadd.s32 %s63, 1
      %p67 = scmp.eq.s32.totalorder %s17, 3
      %p68 = scmp.ne.s32.totalorder %s63, %s65
      %p69 = scmp.eq.s32.totalorder %s17, 0
      %p70 = por %p68, %p69
      %p71 = scmp.ne.s32.totalorder %s63, %s65
      %p72 = scmp.eq.s32.totalorder %s22, 3
      %p73 = por %p71, %p72
      %p74 = scmp.ne.s32.totalorder %s65, %s66
      %p75 = scmp.eq.s32.totalorder %s22, 0
      %p76 = por %p74, %p75
      %p77 = scmp.ne.s32.totalorder %s65, %s66
      %p78 = scmp.eq.s32.totalorder %s23, 3
      %p79 = por %p77, %p78
      %p81 = scmp.ne.s32.totalorder %s66, %s80
      %p82 = scmp.eq.s32.totalorder %s23, 0
      %p83 = por %p81, %p82
      %s85 = sadd.s32 %s84, 1
      %p88 = scmp.eq.s32.totalorder %s17, 3
      %p89 = scmp.ne.s32.totalorder %s84, %s86
      %p90 = scmp.eq.s32.totalorder %s17, 0
      %p91 = por %p89, %p90
      %p92 = scmp.ne.s32.totalorder %s84, %s86
      %p93 = scmp.eq.s32.totalorder %s22, 3
      %p94 = por %p92, %p93
      %p95 = scmp.ne.s32.totalorder %s86, %s87
      %p96 = scmp.eq.s32.totalorder %s22, 0
      %p97 = por %p95, %p96
      %p98 = scmp.ne.s32.totalorder %s86, %s87
      %p99 = scmp.eq.s32.totalorder %s23, 3
      %p100 = por %p98, %p99
      %p102 = scmp.ne.s32.totalorder %s87, %s101
      %p103 = scmp.eq.s32.totalorder %s23, 0
      %p104 = por %p102, %p103
      %s106 = sadd.s32 %s105, 1
      %p109 = scmp.eq.s32.totalorder %s17, 3
      %p110 = scmp.ne.s32.totalorder %s105, %s107
      %p111 = scmp.eq.s32.totalorder %s17, 0
      %p112 = por %p110, %p111
      %p113 = scmp.ne.s32.totalorder %s105, %s107
      %p114 = scmp.eq.s32.totalorder %s22, 3
      %p115 = por %p113, %p114
      %p116 = scmp.ne.s32.totalorder %s107, %s108
      %p117 = scmp.eq.s32.totalorder %s22, 0
      %p118 = por %p116, %p117
      %p119 = scmp.ne.s32.totalorder %s107, %s108
      %p120 = scmp.eq.s32.totalorder %s23, 3
      %p121 = por %p119, %p120
      %p123 = scmp.ne.s32.totalorder %s108, %s122
      %p124 = scmp.eq.s32.totalorder %s23, 0
      %p125 = por %p123, %p124
      %s127 = sadd.s32 %s126, 1
      %p130 = scmp.eq.s32.totalorder %s17, 3
      %p131 = scmp.ne.s32.totalorder %s126, %s128
      %p132 = scmp.eq.s32.totalorder %s17, 0
      %p133 = por %p131, %p132
      %p134 = scmp.ne.s32.totalorder %s126, %s128
      %p135 = scmp.eq.s32.totalorder %s22, 3
      %p136 = por %p134, %p135
      %p137 = scmp.ne.s32.totalorder %s128, %s129
      %p138 = scmp.eq.s32.totalorder %s22, 0
      %p139 = por %p137, %p138
      %p140 = scmp.ne.s32.totalorder %s128, %s129
      %p141 = scmp.eq.s32.totalorder %s23, 3
      %p142 = por %p140, %p141
      %p144 = scmp.ne.s32.totalorder %s129, %s143
      %p145 = scmp.eq.s32.totalorder %s23, 0
      %p146 = por %p144, %p145
      %s147 = smul.u32 %s25, %s24
      %s148 = smul.u32 %s32, %s36
      %s149 = ssub.s32 %s147, %s148
      %p150 = scmp.eq.s32.totalorder %s149, 0
      %s152 = sadd.s32 %s151, 1
      %s153 = scalar_select %p150, %s151, %s152
      %p156 = pneg %p150
      %p157 = scmp.eq.s32.totalorder %s17, 3
      %p158 = por %p156, %p157
      %p159 = scmp.ne.s32.totalorder %s151, %s154
      %p160 = scmp.eq.s32.totalorder %s17, 0
      %p161 = por %p159, %p160
      %p162 = scmp.ne.s32.totalorder %s151, %s154
      %p163 = scmp.eq.s32.totalorder %s22, 3
      %p164 = por %p162, %p163
      %p165 = scmp.ne.s32.totalorder %s154, %s155
      %p166 = scmp.eq.s32.totalorder %s22, 0
      %p167 = por %p165, %p166
      %p168 = scmp.ne.s32.totalorder %s154, %s155
      %p169 = scmp.eq.s32.totalorder %s23, 3
      %p170 = por %p168, %p169
      %p172 = scmp.ne.s32.totalorder %s155, %s171
      %p173 = scmp.eq.s32.totalorder %s23, 0
      %p174 = por %p172, %p173
      %s176 = sadd.s32 %s175, 1
      %p179 = scmp.eq.s32.totalorder %s17, 3
      %p180 = scmp.ne.s32.totalorder %s175, %s177
      %p181 = scmp.eq.s32.totalorder %s17, 0
      %p182 = por %p180, %p181
      %p183 = scmp.ne.s32.totalorder %s175, %s177
      %p184 = scmp.eq.s32.totalorder %s22, 3
      %p185 = por %p183, %p184
      %p186 = scmp.ne.s32.totalorder %s177, %s178
      %p187 = scmp.eq.s32.totalorder %s22, 0
      %p188 = por %p186, %p187
      %p189 = scmp.ne.s32.totalorder %s177, %s178
      %p190 = scmp.eq.s32.totalorder %s23, 3
      %p191 = por %p189, %p190
      %p193 = scmp.ne.s32.totalorder %s178, %s192
      %p194 = scmp.eq.s32.totalorder %s23, 0
      %p195 = por %p193, %p194
      %s197 = sadd.s32 %s196, 1
      %p200 = scmp.eq.s32.totalorder %s17, 3
      %p201 = scmp.ne.s32.totalorder %s196, %s198
      %p202 = scmp.eq.s32.totalorder %s17, 0
      %p203 = por %p201, %p202
      %p204 = scmp.ne.s32.totalorder %s196, %s198
      %p205 = scmp.eq.s32.totalorder %s22, 3
      %p206 = por %p204, %p205
      %p207 = scmp.ne.s32.totalorder %s198, %s199
      %p208 = scmp.eq.s32.totalorder %s22, 0
      %p209 = por %p207, %p208
      %p210 = scmp.ne.s32.totalorder %s198, %s199
      %p211 = scmp.eq.s32.totalorder %s23, 3
      %p212 = por %p210, %p211
      %p214 = scmp.ne.s32.totalorder %s199, %s213
      %p215 = scmp.eq.s32.totalorder %s23, 0
      %p216 = por %p214, %p215
      %p217 = scmp.le.s32.totalorder 1, %s17
      %p218 = scmp.lt.s32.totalorder %s17, 5
      %p219 = pnand %p217, %p218
      %p220 = pneg %p219
      // Predicated region
      $region9: #{tpu_custom_call.1} parent=5 // pred_check
        _
      $region10: #{tpu_custom_call.1} parent=5 // pred_check_branch
        %222 = sbr.rel (%p219) target = $region12
      $region11: #{tpu_custom_call.1} parent=5 // pred_region
        %s223 = ssub.s32 %s17, 1
        // Predicated region
        $region13: #{tpu_custom_call.1} parent=11 // pred_check
          %p224 = pneg %p76
        $region14: #{tpu_custom_call.1} parent=11 // pred_check_branch
          %226 = sbr.rel (%p224) target = $region16
        $region15: #{tpu_custom_call.1} parent=11 // pred_region
          _
        $region16: #{tpu_custom_call.1} parent=11 // pred_fallthru
          _
        // Predicated region
        $region17: #{tpu_custom_call.1} parent=11 // pred_check
          %p227 = pneg %p97
        $region18: #{tpu_custom_call.1} parent=11 // pred_check_branch
          %229 = sbr.rel (%p227) target = $region20
        $region19: #{tpu_custom_call.1} parent=11 // pred_region
          _
        $region20: #{tpu_custom_call.1} parent=11 // pred_fallthru
          _
        // Predicated region
        $region21: #{tpu_custom_call.1} parent=11 // pred_check
          %p230 = pneg %p118
        $region22: #{tpu_custom_call.1} parent=11 // pred_check_branch
          %232 = sbr.rel (%p230) target = $region24
        $region23: #{tpu_custom_call.1} parent=11 // pred_region
          _
        $region24: #{tpu_custom_call.1} parent=11 // pred_fallthru
          _
        // Predicated region
        $region25: #{tpu_custom_call.1} parent=11 // pred_check
          %p233 = pneg %p139
        $region26: #{tpu_custom_call.1} parent=11 // pred_check_branch
          %235 = sbr.rel (%p233) target = $region28
        $region27: #{tpu_custom_call.1} parent=11 // pred_region
          _
        $region28: #{tpu_custom_call.1} parent=11 // pred_fallthru
          _
      $region12: #{tpu_custom_call.1} parent=5 // pred_fallthru
        _
      %p236 = scmp.lt.s32.totalorder %s17, 4
      // Predicated region
      $region29: #{tpu_custom_call.1} parent=5 // pred_check
        %p237 = pneg %p236
      $region30: #{tpu_custom_call.1} parent=5 // pred_check_branch
        %239 = sbr.rel (%p237) target = $region32
      $region31: #{tpu_custom_call.1} parent=5 // pred_region
        // Predicated region
        $region33: #{tpu_custom_call.1} parent=31 // pred_check
          %p240 = pneg %p49
        $region34: #{tpu_custom_call.1} parent=31 // pred_check_branch
          %242 = sbr.rel (%p240) target = $region36
        $region35: #{tpu_custom_call.1} parent=31 // pred_region
          %s243 = sand.u32 %s39, 1
          %s244 = sand.u32 %s39, 1
          %s245 = smul.addr %s244, 32
          %s246 = scalar_lea.vmem [#allocation6], %s245
          %s247 = smul.addr %s25, 4
          %s248 = scalar_lea.vmem %s0, %s247
          // Predicated region
          $region37: #{tpu_custom_call.1} parent=35 // pred_check
            _
          $region38: #{tpu_custom_call.1} parent=35 // pred_check_branch
            %250 = sbr.rel (0) target = $region40
          $region39: #{tpu_custom_call.1} parent=35 // pred_region
            // Predicated region
            $region41: #{tpu_custom_call.1} parent=39 // pred_check
              _
            $region42: #{tpu_custom_call.1} parent=39 // pred_check_branch
              %252 = sbr.rel target = $region44
            $region43: #{tpu_custom_call.1} parent=39 // pred_region
              // Predicated region
              $region56: #{tpu_custom_call.1} parent=43 // pred_check
                _
              $region57: #{tpu_custom_call.1} parent=43 // pred_check_branch
                %281 = sbr.rel (0) target = $region59
              $region58: #{tpu_custom_call.1} parent=43 // pred_region
                loop: start=0, step=1, limit=1
                $region60: #{tpu_custom_call.1} parent=58 // loop_pre_header
                  _
                $region61: #{tpu_custom_call.1} parent=58 // loop_header
                  %s283 = sphi 0, %s287
                  %p284 = scmp.ge.s32.totalorder %s283, 1
                  %s288 = sphi %s248, %s248
                  %s289 = sphi %s246, %s246
                $region62: #{tpu_custom_call.1} parent=58 // loop_header_branch
                  %286 = sbr.rel (%p284) target = $region66
                $region63: #{tpu_custom_call.1} parent=58 // loop_body
                  _
                $region64: #{tpu_custom_call.1} parent=58 // loop_footer
                  %s287 = sadd.s32 1, %s283
                $region65: #{tpu_custom_call.1} parent=58 // loop_footer_branch
                  %282 = sbr.rel target = $region61
                $region66: #{tpu_custom_call.1} parent=58 // loop_exit
                  _
                loop: start=0, step=1, limit=1
                $region67: #{tpu_custom_call.1} parent=58 // loop_pre_header
                  _
                $region68: #{tpu_custom_call.1} parent=58 // loop_header
                  %s292 = sphi 0, %s296
                  %p293 = scmp.ge.s32.totalorder %s292, 1
                  %s297 = sphi %s248, %s248
                  %s298 = sphi %s246, %s246
                $region69: #{tpu_custom_call.1} parent=58 // loop_header_branch
                  %295 = sbr.rel (%p293) target = $region73
                $region70: #{tpu_custom_call.1} parent=58 // loop_body
                  %v299 = vld [vmem:[%s297] sm:$0xf]
                  %300 = vst [vmem:[%s298] sm:$0xf] %v299
                  %v301 = vld [vmem:[%s297 + $0x8] sm:$0xf]
                  %302 = vst [vmem:[%s298 + $0x4] sm:$0xf] %v301
                  %v303 = vld [vmem:[%s297 + $0x10] sm:$0xf]
                  %304 = vst [vmem:[%s298 + $0x8] sm:$0xf] %v303
                  %v305 = vld [vmem:[%s297 + $0x18] sm:$0xf]
                  %306 = vst [vmem:[%s298 + $0xc] sm:$0xf] %v305
                  %v307 = vld [vmem:[%s297 + $0x20] sm:$0xf]
                  %308 = vst [vmem:[%s298 + $0x10] sm:$0xf] %v307
                  %v309 = vld [vmem:[%s297 + $0x28] sm:$0xf]
                  %310 = vst [vmem:[%s298 + $0x14] sm:$0xf] %v309
                  %v311 = vld [vmem:[%s297 + $0x30] sm:$0xf]
                  %312 = vst [vmem:[%s298 + $0x18] sm:$0xf] %v311
                  %v313 = vld [vmem:[%s297 + $0x38] sm:$0xf]
                  %314 = vst [vmem:[%s298 + $0x1c] sm:$0xf] %v313
                $region71: #{tpu_custom_call.1} parent=58 // loop_footer
                  %s296 = sadd.s32 1, %s292
                $region72: #{tpu_custom_call.1} parent=58 // loop_footer_branch
                  %291 = sbr.rel target = $region68
                $region73: #{tpu_custom_call.1} parent=58 // loop_exit
                  _
              $region59: #{tpu_custom_call.1} parent=43 // pred_fallthru
                _
            $region44: #{tpu_custom_call.1} parent=39 // pred_fallthru
              _
            // Predicated region
            $region45: #{tpu_custom_call.1} parent=39 // pred_check
              _
            $region46: #{tpu_custom_call.1} parent=39 // pred_check_branch
              %254 = sbr.rel (0) target = $region48
            $region47: #{tpu_custom_call.1} parent=39 // pred_region
              loop: start=0, step=1, limit=1
              $region49: #{tpu_custom_call.1} parent=47 // loop_pre_header
                _
              $region50: #{tpu_custom_call.1} parent=47 // loop_header
                %s257 = sphi 0, %s261
                %p258 = scmp.ge.s32.totalorder %s257, 1
                %s262 = sphi %s248, %s248
                %s263 = sphi %s246, %s246
              $region51: #{tpu_custom_call.1} parent=47 // loop_header_branch
                %260 = sbr.rel (%p258) target = $region55
              $region52: #{tpu_custom_call.1} parent=47 // loop_body
                %v264 = vld [vmem:[%s262] sm:$0xf]
                %265 = vst [vmem:[%s263] sm:$0xf] %v264
                %v266 = vld [vmem:[%s262 + $0x8] sm:$0xf]
                %267 = vst [vmem:[%s263 + $0x4] sm:$0xf] %v266
                %v268 = vld [vmem:[%s262 + $0x10] sm:$0xf]
                %269 = vst [vmem:[%s263 + $0x8] sm:$0xf] %v268
                %v270 = vld [vmem:[%s262 + $0x18] sm:$0xf]
                %271 = vst [vmem:[%s263 + $0xc] sm:$0xf] %v270
                %v272 = vld [vmem:[%s262 + $0x20] sm:$0xf]
                %273 = vst [vmem:[%s263 + $0x10] sm:$0xf] %v272
                %v274 = vld [vmem:[%s262 + $0x28] sm:$0xf]
                %275 = vst [vmem:[%s263 + $0x14] sm:$0xf] %v274
                %v276 = vld [vmem:[%s262 + $0x30] sm:$0xf]
                %277 = vst [vmem:[%s263 + $0x18] sm:$0xf] %v276
                %v278 = vld [vmem:[%s262 + $0x38] sm:$0xf]
                %279 = vst [vmem:[%s263 + $0x1c] sm:$0xf] %v278
              $region53: #{tpu_custom_call.1} parent=47 // loop_footer
                %s261 = sadd.s32 1, %s257
              $region54: #{tpu_custom_call.1} parent=47 // loop_footer_branch
                %256 = sbr.rel target = $region50
              $region55: #{tpu_custom_call.1} parent=47 // loop_exit
                _
            $region48: #{tpu_custom_call.1} parent=39 // pred_fallthru
              _
          $region40: #{tpu_custom_call.1} parent=35 // pred_fallthru
            _
          %315 = vnop
        $region36: #{tpu_custom_call.1} parent=31 // pred_fallthru
          _
      $region32: #{tpu_custom_call.1} parent=5 // pred_fallthru
        _
      %p316 = scmp.le.s32.totalorder 1, %s17
      %p317 = scmp.lt.s32.totalorder %s17, 5
      %p318 = pnand %p316, %p317
      %p319 = pneg %p318
      // Predicated region
      $region74: #{tpu_custom_call.1} parent=5 // pred_check
        _
      $region75: #{tpu_custom_call.1} parent=5 // pred_check_branch
        %321 = sbr.rel (%p318) target = $region77
      $region76: #{tpu_custom_call.1} parent=5 // pred_region
        %s322 = ssub.s32 %s17, 1
        %s323 = sand.u32 %s42, 1
        %s324 = sand.u32 %s42, 1
        %s325 = smul.addr %s324, 32
        %s326 = scalar_lea.vmem [#allocation6], %s325
        // Predicated region
        $region78: #{tpu_custom_call.1} parent=76 // pred_check
          %p327 = pneg %p55
        $region79: #{tpu_custom_call.1} parent=76 // pred_check_branch
          %329 = sbr.rel (%p327) target = $region81
        $region80: #{tpu_custom_call.1} parent=76 // pred_region
          _
        $region81: #{tpu_custom_call.1} parent=76 // pred_fallthru
          _
        %s330 = sand.u32 %s42, 1
        %s331 = sand.u32 %s42, 1
        %s332 = smul.addr %s331, 32
        %s333 = scalar_lea.vmem [#allocation6], %s332
        %p334 = pneg %p55
        %p335 = pneg %p52
        %p336 = pneg %p76
        %p337 = pneg %p73
        %p338 = pneg %p97
        %p339 = pneg %p94
        %p340 = pneg %p118
        %p341 = pneg %p115
        %p342 = pneg %p139
        %p343 = pneg %p136
        %p344 = pneg %p167
        %p345 = pneg %p164
        %s346 = sand.u32 %s154, 1
        %s347 = scalar_lea.sflag [#allocation8], %s346
        %s348 = sand.u32 %s154, 1
        %s349 = smul.addr %s348, 32
        %s350 = scalar_lea.vmem [#allocation7], %s349
        %p351 = pneg %p188
        %p352 = pneg %p185
        %p353 = pneg %p209
        %p354 = pneg %p206
        %s355 = smul.u32 %s27, %s26
        %p357 = scmp.eq.s32.totalorder %s26, 0
        %p358 = scmp.eq.s32.totalorder %s27, 0
        %p359 = pnand %p357, %p358
        %p360 = pneg %p359
        // Predicated region
        $region82: #{tpu_custom_call.1} parent=76 // pred_check
          _
        $region83: #{tpu_custom_call.1} parent=76 // pred_check_branch
          %362 = sbr.rel (%p359) target = $region85
        $region84: #{tpu_custom_call.1} parent=76 // pred_region
          %vm363 = vcmask 7168
          %364 = vst.msk [vmem:[#allocation2] sm:$0xff] %vm363, 0.0
          %365 = vst.msk [vmem:[#allocation2 + $0x8] sm:$0xff] %vm363, 0.0
          %366 = vst.msk [vmem:[#allocation2 + $0x10] sm:$0xff] %vm363, 0.0
          %367 = vst.msk [vmem:[#allocation2 + $0x18] sm:$0xff] %vm363, 0.0
          %368 = vst.msk [vmem:[#allocation3] sm:$0xff] %vm363, 0.0
          %369 = vst.msk [vmem:[#allocation3 + $0x8] sm:$0xff] %vm363, 0.0
          %370 = vst.msk [vmem:[#allocation3 + $0x10] sm:$0xff] %vm363, 0.0
          %371 = vst.msk [vmem:[#allocation3 + $0x18] sm:$0xff] %vm363, 0.0
        $region85: #{tpu_custom_call.1} parent=76 // pred_fallthru
          _
        %p372 = scmp.eq.s32.totalorder %s26, 1
        %p373 = pnand %p372, %p358
        %p374 = pneg %p373
        // Predicated region
        $region86: #{tpu_custom_call.1} parent=76 // pred_check
          _
        $region87: #{tpu_custom_call.1} parent=76 // pred_check_branch
          %376 = sbr.rel (%p373) target = $region89
        $region88: #{tpu_custom_call.1} parent=76 // pred_region
          %vm377 = vcmask 7168
          %378 = vst.msk [vmem:[%s6] sm:$0xff] %vm377, 0.0
          %379 = vst.msk [vmem:[%s6 + $0x8] sm:$0xff] %vm377, 0.0
          %380 = vst.msk [vmem:[%s6 + $0x10] sm:$0xff] %vm377, 0.0
          %381 = vst.msk [vmem:[%s6 + $0x18] sm:$0xff] %vm377, 0.0
          %382 = vst.msk [vmem:[%s7] sm:$0xff] %vm377, 0.0
          %383 = vst.msk [vmem:[%s7 + $0x8] sm:$0xff] %vm377, 0.0
          %384 = vst.msk [vmem:[%s7 + $0x10] sm:$0xff] %vm377, 0.0
          %385 = vst.msk [vmem:[%s7 + $0x18] sm:$0xff] %vm377, 0.0
        $region89: #{tpu_custom_call.1} parent=76 // pred_fallthru
          _
        %v386 = vld [vmem:[%s1] sm:$0xf]
        %v387 = vld [vmem:[%s1 + $0x4] sm:$0xf]
        %v388 = vld [vmem:[%s1 + $0x8] sm:$0xf]
        %v389 = vld [vmem:[%s1 + $0xc] sm:$0xf]
        // Predicated region
        $region90: #{tpu_custom_call.1} parent=76 // pred_check
          %p390 = pneg %p357
        $region91: #{tpu_custom_call.1} parent=76 // pred_check_branch
          %392 = sbr.rel (%p390) target = $region93
        $region92: #{tpu_custom_call.1} parent=76 // pred_region
          %v393 = vld [vmem:[%s326] sm:$0xf]
          %v398 = vunpack.c.l.b16 %v386
          %v399 = vunpack.c.l.b16 %v387
          %v400 = vunpack.c.l.b16 %v388
          %v401 = vunpack.c.l.b16 %v389
          %v402 = vpack.c.b16 %v399, %v398
          %v403 = vpack.c.b16 %v401, %v400
          %vm404 = vcmask 56320
          %v406 = vsel %vm404, %v402, 0
          %v409 = vsel %vm404, %v403, 0
          %vm411 = vcmask 1042432
          %vm412 = vcmask 1043456
          %v413 = vsel %vm411, 4294967295, 65535
          %v414 = vsel %vm412, %v413, 0
          %v416 = vand.u32 %v393, %v414
          %418 = vmatprep.subr.bf16.mxu0 0
          %419 = vmatpush1.bf16.msra.mxu0 %v416
          %420 = vmatprep.subr.bf16.mxu0 0
          %421 = vmatpush1.bf16.msra.mxu0 0
          %422 = vmatprep.subr.bf16.mxu0 0
          %423 = vmatpush1.bf16.msra.mxu0 0
          %424 = vmatprep.subr.bf16.mxu0 0
          %425 = vmatpush1.bf16.msra.mxu0 0
          %426 = vmatprep.subr.bf16.mxu0 0
          %427 = vmatpush1.bf16.msra.mxu0 0
          %428 = vmatprep.subr.bf16.mxu0 0
          %429 = vmatpush1.bf16.msra.mxu0 0
          %430 = vmatprep.subr.bf16.mxu0 0
          %431 = vmatpush1.bf16.msra.mxu0 0
          %432 = vmatprep.subr.bf16.mxu0 0
          %433 = vmatpush1.bf16.msra.mxu0 0
          %434 = vmatprep.subr.bf16.mxu0 0
          %435 = vmatpush1.bf16.msra.mxu0 0
          %436 = vmatprep.subr.bf16.mxu0 0
          %437 = vmatpush1.bf16.msra.mxu0 0
          %438 = vmatprep.subr.bf16.mxu0 0
          %439 = vmatpush1.bf16.msra.mxu0 0
          %440 = vmatprep.subr.bf16.mxu0 0
          %441 = vmatpush1.bf16.msra.mxu0 0
          %442 = vmatprep.subr.bf16.mxu0 0
          %443 = vmatpush1.bf16.msra.mxu0 0
          %444 = vmatprep.subr.bf16.mxu0 0
          %445 = vmatpush1.bf16.msra.mxu0 0
          %446 = vmatprep.subr.bf16.mxu0 0
          %447 = vmatpush1.bf16.msra.mxu0 0
          %448 = vmatprep.subr.bf16.mxu0 0
          %449 = vmatpush1.bf16.msra.mxu0 0
          %450 = vmatprep.mubr.bf16.mxu0 0
          %451 = vmatmul.mubr.bf16.gmra.mrb[0].mxu0 %v406
          %v452 = vpop.f32.mrb[0].mxu0
          %v453 = vadd.f32 0.0, %v452
          %v454 = vpop.f32.mrb[0].mxu0
          %v455 = vpop.f32.mrb[0].mxu0
          %v456 = vadd.f32 0.0, %v455
          %v457 = vpop.f32.mrb[0].mxu0
          %458 = vmatprep.mubr.bf16.mxu0 0
          %459 = vmatmul.mubr.bf16.gmra.mrb[0].mxu0 %v409
          %v460 = vpop.f32.mrb[0].mxu0
          %v461 = vadd.f32 0.0, %v460
          %v462 = vpop.f32.mrb[0].mxu0
          %v463 = vpop.f32.mrb[0].mxu0
          %v464 = vadd.f32 0.0, %v463
          %v465 = vpop.f32.mrb[0].mxu0
          %466 = vdwg.mxu0
          %v467 = vmul.f32 %v453, %v453
          %v468 = vmul.f32 %v456, %v456
          %v469 = vmul.f32 %v461, %v461
          %v470 = vmul.f32 %v464, %v464
          %s471 = scalar_lea.vmem %s326, 4 [#allocation6]
          %v472 = vld [vmem:[%s471] sm:$0xf]
          %v474 = vand.u32 %v472, %v414
          %476 = vmatprep.subr.bf16.mxu0 0
          %477 = vmatpush1.bf16.msra.mxu0 %v474
          %478 = vmatprep.subr.bf16.mxu0 0
          %479 = vmatpush1.bf16.msra.mxu0 0
          %480 = vmatprep.subr.bf16.mxu0 0
          %481 = vmatpush1.bf16.msra.mxu0 0
          %482 = vmatprep.subr.bf16.mxu0 0
          %483 = vmatpush1.bf16.msra.mxu0 0
          %484 = vmatprep.subr.bf16.mxu0 0
          %485 = vmatpush1.bf16.msra.mxu0 0
          %486 = vmatprep.subr.bf16.mxu0 0
          %487 = vmatpush1.bf16.msra.mxu0 0
          %488 = vmatprep.subr.bf16.mxu0 0
          %489 = vmatpush1.bf16.msra.mxu0 0
          %490 = vmatprep.subr.bf16.mxu0 0
          %491 = vmatpush1.bf16.msra.mxu0 0
          %492 = vmatprep.subr.bf16.mxu0 0
          %493 = vmatpush1.bf16.msra.mxu0 0
          %494 = vmatprep.subr.bf16.mxu0 0
          %495 = vmatpush1.bf16.msra.mxu0 0
          %496 = vmatprep.subr.bf16.mxu0 0
          %497 = vmatpush1.bf16.msra.mxu0 0
          %498 = vmatprep.subr.bf16.mxu0 0
          %499 = vmatpush1.bf16.msra.mxu0 0
          %500 = vmatprep.subr.bf16.mxu0 0
          %501 = vmatpush1.bf16.msra.mxu0 0
          %502 = vmatprep.subr.bf16.mxu0 0
          %503 = vmatpush1.bf16.msra.mxu0 0
          %504 = vmatprep.subr.bf16.mxu0 0
          %505 = vmatpush1.bf16.msra.mxu0 0
          %506 = vmatprep.subr.bf16.mxu0 0
          %507 = vmatpush1.bf16.msra.mxu0 0
          %508 = vmatprep.mubr.bf16.mxu0 0
          %509 = vmatmul.mubr.bf16.gmra.mrb[0].mxu0 %v406
          %v510 = vpop.f32.mrb[0].mxu0
          %v511 = vadd.f32 0.0, %v510
          %v512 = vpop.f32.mrb[0].mxu0
          %v513 = vpop.f32.mrb[0].mxu0
          %v514 = vadd.f32 0.0, %v513
          %v515 = vpop.f32.mrb[0].mxu0
          %516 = vmatprep.mubr.bf16.mxu0 0
          %517 = vmatmul.mubr.bf16.gmra.mrb[0].mxu0 %v409
          %v518 = vpop.f32.mrb[0].mxu0
          %v519 = vadd.f32 0.0, %v518
          %v520 = vpop.f32.mrb[0].mxu0
          %v521 = vpop.f32.mrb[0].mxu0
          %v522 = vadd.f32 0.0, %v521
          %v523 = vpop.f32.mrb[0].mxu0
          %524 = vdwg.mxu0
          %v525 = vadd.f32 %v453, %v511
          %v526 = vadd.f32 %v456, %v514
          %v527 = vadd.f32 %v461, %v519
          %v528 = vadd.f32 %v464, %v522
          %v529 = vmul.f32 %v511, %v511
          %v530 = vmul.f32 %v514, %v514
          %v531 = vmul.f32 %v519, %v519
          %v532 = vmul.f32 %v522, %v522
          %v533 = vadd.f32 %v467, %v529
          %v534 = vadd.f32 %v468, %v530
          %v535 = vadd.f32 %v469, %v531
          %v536 = vadd.f32 %v470, %v532
          %s537 = scalar_lea.vmem %s326, 8 [#allocation6]
          %v538 = vld [vmem:[%s537] sm:$0xf]
          %v540 = vand.u32 %v538, %v414
          %542 = vmatprep.subr.bf16.mxu0 0
          %543 = vmatpush1.bf16.msra.mxu0 %v540
          %544 = vmatprep.subr.bf16.mxu0 0
          %545 = vmatpush1.bf16.msra.mxu0 0
          %546 = vmatprep.subr.bf16.mxu0 0
          %547 = vmatpush1.bf16.msra.mxu0 0
          %548 = vmatprep.subr.bf16.mxu0 0
          %549 = vmatpush1.bf16.msra.mxu0 0
          %550 = vmatprep.subr.bf16.mxu0 0
          %551 = vmatpush1.bf16.msra.mxu0 0
          %552 = vmatprep.subr.bf16.mxu0 0
          %553 = vmatpush1.bf16.msra.mxu0 0
          %554 = vmatprep.subr.bf16.mxu0 0
          %555 = vmatpush1.bf16.msra.mxu0 0
          %556 = vmatprep.subr.bf16.mxu0 0
          %557 = vmatpush1.bf16.msra.mxu0 0
          %558 = vmatprep.subr.bf16.mxu0 0
          %559 = vmatpush1.bf16.msra.mxu0 0
          %560 = vmatprep.subr.bf16.mxu0 0
          %561 = vmatpush1.bf16.msra.mxu0 0
          %562 = vmatprep.subr.bf16.mxu0 0
          %563 = vmatpush1.bf16.msra.mxu0 0
          %564 = vmatprep.subr.bf16.mxu0 0
          %565 = vmatpush1.bf16.msra.mxu0 0
          %566 = vmatprep.subr.bf16.mxu0 0
          %567 = vmatpush1.bf16.msra.mxu0 0
          %568 = vmatprep.subr.bf16.mxu0 0
          %569 = vmatpush1.bf16.msra.mxu0 0
          %570 = vmatprep.subr.bf16.mxu0 0
          %571 = vmatpush1.bf16.msra.mxu0 0
          %572 = vmatprep.subr.bf16.mxu0 0
          %573 = vmatpush1.bf16.msra.mxu0 0
          %574 = vmatprep.mubr.bf16.mxu0 0
          %575 = vmatmul.mubr.bf16.gmra.mrb[0].mxu0 %v406
          %v576 = vpop.f32.mrb[0].mxu0
          %v577 = vadd.f32 0.0, %v576
          %v578 = vpop.f32.mrb[0].mxu0
          %v579 = vpop.f32.mrb[0].mxu0
          %v580 = vadd.f32 0.0, %v579
          %v581 = vpop.f32.mrb[0].mxu0
          %582 = vmatprep.mubr.bf16.mxu0 0
          %583 = vmatmul.mubr.bf16.gmra.mrb[0].mxu0 %v409
          %v584 = vpop.f32.mrb[0].mxu0
          %v585 = vadd.f32 0.0, %v584
          %v586 = vpop.f32.mrb[0].mxu0
          %v587 = vpop.f32.mrb[0].mxu0
          %v588 = vadd.f32 0.0, %v587
          %v589 = vpop.f32.mrb[0].mxu0
          %590 = vdwg.mxu0
          %v591 = vadd.f32 %v525, %v577
          %v592 = vadd.f32 %v526, %v580
          %v593 = vadd.f32 %v527, %v585
          %v594 = vadd.f32 %v528, %v588
          %v595 = vmul.f32 %v577, %v577
          %v596 = vmul.f32 %v580, %v580
          %v597 = vmul.f32 %v585, %v585
          %v598 = vmul.f32 %v588, %v588
          %v599 = vadd.f32 %v533, %v595
          %v600 = vadd.f32 %v534, %v596
          %v601 = vadd.f32 %v535, %v597
          %v602 = vadd.f32 %v536, %v598
          %s603 = scalar_lea.vmem %s326, 12 [#allocation6]
          %v604 = vld [vmem:[%s603] sm:$0xf]
          %v606 = vand.u32 %v604, %v414
          %608 = vmatprep.subr.bf16.mxu0 0
          %609 = vmatpush1.bf16.msra.mxu0 %v606
          %610 = vmatprep.subr.bf16.mxu0 0
          %611 = vmatpush1.bf16.msra.mxu0 0
          %612 = vmatprep.subr.bf16.mxu0 0
          %613 = vmatpush1.bf16.msra.mxu0 0
          %614 = vmatprep.subr.bf16.mxu0 0
          %615 = vmatpush1.bf16.msra.mxu0 0
          %616 = vmatprep.subr.bf16.mxu0 0
          %617 = vmatpush1.bf16.msra.mxu0 0
          %618 = vmatprep.subr.bf16.mxu0 0
          %619 = vmatpush1.bf16.msra.mxu0 0
          %620 = vmatprep.subr.bf16.mxu0 0
          %621 = vmatpush1.bf16.msra.mxu0 0
          %622 = vmatprep.subr.bf16.mxu0 0
          %623 = vmatpush1.bf16.msra.mxu0 0
          %624 = vmatprep.subr.bf16.mxu0 0
          %625 = vmatpush1.bf16.msra.mxu0 0
          %626 = vmatprep.subr.bf16.mxu0 0
          %627 = vmatpush1.bf16.msra.mxu0 0
          %628 = vmatprep.subr.bf16.mxu0 0
          %629 = vmatpush1.bf16.msra.mxu0 0
          %630 = vmatprep.subr.bf16.mxu0 0
          %631 = vmatpush1.bf16.msra.mxu0 0
          %632 = vmatprep.subr.bf16.mxu0 0
          %633 = vmatpush1.bf16.msra.mxu0 0
          %634 = vmatprep.subr.bf16.mxu0 0
          %635 = vmatpush1.bf16.msra.mxu0 0
          %636 = vmatprep.subr.bf16.mxu0 0
          %637 = vmatpush1.bf16.msra.mxu0 0
          %638 = vmatprep.subr.bf16.mxu0 0
          %639 = vmatpush1.bf16.msra.mxu0 0
          %640 = vmatprep.mubr.bf16.mxu0 0
          %641 = vmatmul.mubr.bf16.gmra.mrb[0].mxu0 %v406
          %v642 = vpop.f32.mrb[0].mxu0
          %v643 = vadd.f32 0.0, %v642
          %v644 = vpop.f32.mrb[0].mxu0
          %v645 = vpop.f32.mrb[0].mxu0
          %v646 = vadd.f32 0.0, %v645
          %v647 = vpop.f32.mrb[0].mxu0
          %648 = vmatprep.mubr.bf16.mxu0 0
          %649 = vmatmul.mubr.bf16.gmra.mrb[0].mxu0 %v409
          %v650 = vpop.f32.mrb[0].mxu0
          %v651 = vadd.f32 0.0, %v650
          %v652 = vpop.f32.mrb[0].mxu0
          %v653 = vpop.f32.mrb[0].mxu0
          %v654 = vadd.f32 0.0, %v653
          %v655 = vpop.f32.mrb[0].mxu0
          %656 = vdwg.mxu0
          %v657 = vadd.f32 %v591, %v643
          %v658 = vadd.f32 %v592, %v646
          %v659 = vadd.f32 %v593, %v651
          %v660 = vadd.f32 %v594, %v654
          %v661 = vmul.f32 %v643, %v643
          %v662 = vmul.f32 %v646, %v646
          %v663 = vmul.f32 %v651, %v651
          %v664 = vmul.f32 %v654, %v654
          %v665 = vadd.f32 %v599, %v661
          %v666 = vadd.f32 %v600, %v662
          %v667 = vadd.f32 %v601, %v663
          %v668 = vadd.f32 %v602, %v664
          %s669 = scalar_lea.vmem %s326, 16 [#allocation6]
          %v670 = vld [vmem:[%s669] sm:$0xf]
          %v672 = vand.u32 %v670, %v414
          %674 = vmatprep.subr.bf16.mxu0 0
          %675 = vmatpush1.bf16.msra.mxu0 %v672
          %676 = vmatprep.subr.bf16.mxu0 0
          %677 = vmatpush1.bf16.msra.mxu0 0
          %678 = vmatprep.subr.bf16.mxu0 0
          %679 = vmatpush1.bf16.msra.mxu0 0
          %680 = vmatprep.subr.bf16.mxu0 0
          %681 = vmatpush1.bf16.msra.mxu0 0
          %682 = vmatprep.subr.bf16.mxu0 0
          %683 = vmatpush1.bf16.msra.mxu0 0
          %684 = vmatprep.subr.bf16.mxu0 0
          %685 = vmatpush1.bf16.msra.mxu0 0
          %686 = vmatprep.subr.bf16.mxu0 0
          %687 = vmatpush1.bf16.msra.mxu0 0
          %688 = vmatprep.subr.bf16.mxu0 0
          %689 = vmatpush1.bf16.msra.mxu0 0
          %690 = vmatprep.subr.bf16.mxu0 0
          %691 = vmatpush1.bf16.msra.mxu0 0
          %692 = vmatprep.subr.bf16.mxu0 0
          %693 = vmatpush1.bf16.msra.mxu0 0
          %694 = vmatprep.subr.bf16.mxu0 0
          %695 = vmatpush1.bf16.msra.mxu0 0
          %696 = vmatprep.subr.bf16.mxu0 0
          %697 = vmatpush1.bf16.msra.mxu0 0
          %698 = vmatprep.subr.bf16.mxu0 0
          %699 = vmatpush1.bf16.msra.mxu0 0
          %700 = vmatprep.subr.bf16.mxu0 0
          %701 = vmatpush1.bf16.msra.mxu0 0
          %702 = vmatprep.subr.bf16.mxu0 0
          %703 = vmatpush1.bf16.msra.mxu0 0
          %704 = vmatprep.subr.bf16.mxu0 0
          %705 = vmatpush1.bf16.msra.mxu0 0
          %706 = vmatprep.mubr.bf16.mxu0 0
          %707 = vmatmul.mubr.bf16.gmra.mrb[0].mxu0 %v406
          %v708 = vpop.f32.mrb[0].mxu0
          %v709 = vadd.f32 0.0, %v708
          %v710 = vpop.f32.mrb[0].mxu0
          %v711 = vpop.f32.mrb[0].mxu0
          %v712 = vadd.f32 0.0, %v711
          %v713 = vpop.f32.mrb[0].mxu0
          %714 = vmatprep.mubr.bf16.mxu0 0
          %715 = vmatmul.mubr.bf16.gmra.mrb[0].mxu0 %v409
          %v716 = vpop.f32.mrb[0].mxu0
          %v717 = vadd.f32 0.0, %v716
          %v718 = vpop.f32.mrb[0].mxu0
          %v719 = vpop.f32.mrb[0].mxu0
          %v720 = vadd.f32 0.0, %v719
          %v721 = vpop.f32.mrb[0].mxu0
          %722 = vdwg.mxu0
          %v723 = vadd.f32 %v657, %v709
          %v724 = vadd.f32 %v658, %v712
          %v725 = vadd.f32 %v659, %v717
          %v726 = vadd.f32 %v660, %v720
          %v727 = vmul.f32 %v709, %v709
          %v728 = vmul.f32 %v712, %v712
          %v729 = vmul.f32 %v717, %v717
          %v730 = vmul.f32 %v720, %v720
          %v731 = vadd.f32 %v665, %v727
          %v732 = vadd.f32 %v666, %v728
          %v733 = vadd.f32 %v667, %v729
          %v734 = vadd.f32 %v668, %v730
          %s735 = scalar_lea.vmem %s326, 20 [#allocation6]
          %v736 = vld [vmem:[%s735] sm:$0xf]
          %v738 = vand.u32 %v736, %v414
          %740 = vmatprep.subr.bf16.mxu0 0
          %741 = vmatpush1.bf16.msra.mxu0 %v738
          %742 = vmatprep.subr.bf16.mxu0 0
          %743 = vmatpush1.bf16.msra.mxu0 0
          %744 = vmatprep.subr.bf16.mxu0 0
          %745 = vmatpush1.bf16.msra.mxu0 0
          %746 = vmatprep.subr.bf16.mxu0 0
          %747 = vmatpush1.bf16.msra.mxu0 0
          %748 = vmatprep.subr.bf16.mxu0 0
          %749 = vmatpush1.bf16.msra.mxu0 0
          %750 = vmatprep.subr.bf16.mxu0 0
          %751 = vmatpush1.bf16.msra.mxu0 0
          %752 = vmatprep.subr.bf16.mxu0 0
          %753 = vmatpush1.bf16.msra.mxu0 0
          %754 = vmatprep.subr.bf16.mxu0 0
          %755 = vmatpush1.bf16.msra.mxu0 0
          %756 = vmatprep.subr.bf16.mxu0 0
          %757 = vmatpush1.bf16.msra.mxu0 0
          %758 = vmatprep.subr.bf16.mxu0 0
          %759 = vmatpush1.bf16.msra.mxu0 0
          %760 = vmatprep.subr.bf16.mxu0 0
          %761 = vmatpush1.bf16.msra.mxu0 0
          %762 = vmatprep.subr.bf16.mxu0 0
          %763 = vmatpush1.bf16.msra.mxu0 0
          %764 = vmatprep.subr.bf16.mxu0 0
          %765 = vmatpush1.bf16.msra.mxu0 0
          %766 = vmatprep.subr.bf16.mxu0 0
          %767 = vmatpush1.bf16.msra.mxu0 0
          %768 = vmatprep.subr.bf16.mxu0 0
          %769 = vmatpush1.bf16.msra.mxu0 0
          %770 = vmatprep.subr.bf16.mxu0 0
          %771 = vmatpush1.bf16.msra.mxu0 0
          %772 = vmatprep.mubr.bf16.mxu0 0
          %773 = vmatmul.mubr.bf16.gmra.mrb[0].mxu0 %v406
          %v774 = vpop.f32.mrb[0].mxu0
          %v775 = vadd.f32 0.0, %v774
          %v776 = vpop.f32.mrb[0].mxu0
          %v777 = vpop.f32.mrb[0].mxu0
          %v778 = vadd.f32 0.0, %v777
          %v779 = vpop.f32.mrb[0].mxu0
          %780 = vmatprep.mubr.bf16.mxu0 0
          %781 = vmatmul.mubr.bf16.gmra.mrb[0].mxu0 %v409
          %v782 = vpop.f32.mrb[0].mxu0
          %v783 = vadd.f32 0.0, %v782
          %v784 = vpop.f32.mrb[0].mxu0
          %v785 = vpop.f32.mrb[0].mxu0
          %v786 = vadd.f32 0.0, %v785
          %v787 = vpop.f32.mrb[0].mxu0
          %788 = vdwg.mxu0
          %v789 = vadd.f32 %v723, %v775
          %v790 = vadd.f32 %v724, %v778
          %v791 = vadd.f32 %v725, %v783
          %v792 = vadd.f32 %v726, %v786
          %v793 = vmul.f32 %v775, %v775
          %v794 = vmul.f32 %v778, %v778
          %v795 = vmul.f32 %v783, %v783
          %v796 = vmul.f32 %v786, %v786
          %v797 = vadd.f32 %v731, %v793
          %v798 = vadd.f32 %v732, %v794
          %v799 = vadd.f32 %v733, %v795
          %v800 = vadd.f32 %v734, %v796
          %s801 = scalar_lea.vmem %s326, 24 [#allocation6]
          %v802 = vld [vmem:[%s801] sm:$0xf]
          %v804 = vand.u32 %v802, %v414
          %806 = vmatprep.subr.bf16.mxu0 0
          %807 = vmatpush1.bf16.msra.mxu0 %v804
          %808 = vmatprep.subr.bf16.mxu0 0
          %809 = vmatpush1.bf16.msra.mxu0 0
          %810 = vmatprep.subr.bf16.mxu0 0
          %811 = vmatpush1.bf16.msra.mxu0 0
          %812 = vmatprep.subr.bf16.mxu0 0
          %813 = vmatpush1.bf16.msra.mxu0 0
          %814 = vmatprep.subr.bf16.mxu0 0
          %815 = vmatpush1.bf16.msra.mxu0 0
          %816 = vmatprep.subr.bf16.mxu0 0
          %817 = vmatpush1.bf16.msra.mxu0 0
          %818 = vmatprep.subr.bf16.mxu0 0
          %819 = vmatpush1.bf16.msra.mxu0 0
          %820 = vmatprep.subr.bf16.mxu0 0
          %821 = vmatpush1.bf16.msra.mxu0 0
          %822 = vmatprep.subr.bf16.mxu0 0
          %823 = vmatpush1.bf16.msra.mxu0 0
          %824 = vmatprep.subr.bf16.mxu0 0
          %825 = vmatpush1.bf16.msra.mxu0 0
          %826 = vmatprep.subr.bf16.mxu0 0
          %827 = vmatpush1.bf16.msra.mxu0 0
          %828 = vmatprep.subr.bf16.mxu0 0
          %829 = vmatpush1.bf16.msra.mxu0 0
          %830 = vmatprep.subr.bf16.mxu0 0
          %831 = vmatpush1.bf16.msra.mxu0 0
          %832 = vmatprep.subr.bf16.mxu0 0
          %833 = vmatpush1.bf16.msra.mxu0 0
          %834 = vmatprep.subr.bf16.mxu0 0
          %835 = vmatpush1.bf16.msra.mxu0 0
          %836 = vmatprep.subr.bf16.mxu0 0
          %837 = vmatpush1.bf16.msra.mxu0 0
          %838 = vmatprep.mubr.bf16.mxu0 0
          %839 = vmatmul.mubr.bf16.gmra.mrb[0].mxu0 %v406
          %v840 = vpop.f32.mrb[0].mxu0
          %v841 = vadd.f32 0.0, %v840
          %v842 = vpop.f32.mrb[0].mxu0
          %v843 = vpop.f32.mrb[0].mxu0
          %v844 = vadd.f32 0.0, %v843
          %v845 = vpop.f32.mrb[0].mxu0
          %846 = vmatprep.mubr.bf16.mxu0 0
          %847 = vmatmul.mubr.bf16.gmra.mrb[0].mxu0 %v409
          %v848 = vpop.f32.mrb[0].mxu0
          %v849 = vadd.f32 0.0, %v848
          %v850 = vpop.f32.mrb[0].mxu0
          %v851 = vpop.f32.mrb[0].mxu0
          %v852 = vadd.f32 0.0, %v851
          %v853 = vpop.f32.mrb[0].mxu0
          %854 = vdwg.mxu0
          %v855 = vadd.f32 %v789, %v841
          %v856 = vadd.f32 %v790, %v844
          %v857 = vadd.f32 %v791, %v849
          %v858 = vadd.f32 %v792, %v852
          %v859 = vmul.f32 %v841, %v841
          %v860 = vmul.f32 %v844, %v844
          %v861 = vmul.f32 %v849, %v849
          %v862 = vmul.f32 %v852, %v852
          %v863 = vadd.f32 %v797, %v859
          %v864 = vadd.f32 %v798, %v860
          %v865 = vadd.f32 %v799, %v861
          %v866 = vadd.f32 %v800, %v862
          %s867 = scalar_lea.vmem %s326, 28 [#allocation6]
          %v868 = vld [vmem:[%s867] sm:$0xf]
          %v870 = vand.u32 %v868, %v414
          %872 = vmatprep.subr.bf16.mxu0 0
          %873 = vmatpush1.bf16.msra.mxu0 %v870
          %874 = vmatprep.subr.bf16.mxu0 0
          %875 = vmatpush1.bf16.msra.mxu0 0
          %876 = vmatprep.subr.bf16.mxu0 0
          %877 = vmatpush1.bf16.msra.mxu0 0
          %878 = vmatprep.subr.bf16.mxu0 0
          %879 = vmatpush1.bf16.msra.mxu0 0
          %880 = vmatprep.subr.bf16.mxu0 0
          %881 = vmatpush1.bf16.msra.mxu0 0
          %882 = vmatprep.subr.bf16.mxu0 0
          %883 = vmatpush1.bf16.msra.mxu0 0
          %884 = vmatprep.subr.bf16.mxu0 0
          %885 = vmatpush1.bf16.msra.mxu0 0
          %886 = vmatprep.subr.bf16.mxu0 0
          %887 = vmatpush1.bf16.msra.mxu0 0
          %888 = vmatprep.subr.bf16.mxu0 0
          %889 = vmatpush1.bf16.msra.mxu0 0
          %890 = vmatprep.subr.bf16.mxu0 0
          %891 = vmatpush1.bf16.msra.mxu0 0
          %892 = vmatprep.subr.bf16.mxu0 0
          %893 = vmatpush1.bf16.msra.mxu0 0
          %894 = vmatprep.subr.bf16.mxu0 0
          %895 = vmatpush1.bf16.msra.mxu0 0
          %896 = vmatprep.subr.bf16.mxu0 0
          %897 = vmatpush1.bf16.msra.mxu0 0
          %898 = vmatprep.subr.bf16.mxu0 0
          %899 = vmatpush1.bf16.msra.mxu0 0
          %900 = vmatprep.subr.bf16.mxu0 0
          %901 = vmatpush1.bf16.msra.mxu0 0
          %902 = vmatprep.subr.bf16.mxu0 0
          %903 = vmatpush1.bf16.msra.mxu0 0
          %904 = vmatprep.mubr.bf16.mxu0 0
          %905 = vmatmul.mubr.bf16.gmra.mrb[0].mxu0 %v406
          %v906 = vpop.f32.mrb[0].mxu0
          %v907 = vadd.f32 0.0, %v906
          %v908 = vpop.f32.mrb[0].mxu0
          %v909 = vpop.f32.mrb[0].mxu0
          %v910 = vadd.f32 0.0, %v909
          %v911 = vpop.f32.mrb[0].mxu0
          %912 = vmatprep.mubr.bf16.mxu0 0
          %913 = vmatmul.mubr.bf16.gmra.mrb[0].mxu0 %v409
          %v914 = vpop.f32.mrb[0].mxu0
          %v915 = vadd.f32 0.0, %v914
          %v916 = vpop.f32.mrb[0].mxu0
          %v917 = vpop.f32.mrb[0].mxu0
          %v918 = vadd.f32 0.0, %v917
          %v919 = vpop.f32.mrb[0].mxu0
          %920 = vdwg.mxu0
          %v921 = vadd.f32 %v855, %v907
          %v922 = vadd.f32 %v856, %v910
          %v923 = vadd.f32 %v857, %v915
          %v924 = vadd.f32 %v858, %v918
          %v925 = vmul.f32 %v907, %v907
          %v926 = vmul.f32 %v910, %v910
          %v927 = vmul.f32 %v915, %v915
          %v928 = vmul.f32 %v918, %v918
          %v929 = vadd.f32 %v863, %v925
          %v930 = vadd.f32 %v864, %v926
          %v931 = vadd.f32 %v865, %v927
          %v932 = vadd.f32 %v866, %v928
          %933 = vadd.xlane.f32.xlu0 %v921
          %v934 = vpop.xlane.xlu0 %933
          %935 = vadd.xlane.f32.xlu0 %v922
          %v936 = vpop.xlane.xlu0 %935
          %937 = vadd.xlane.f32.xlu0 %v923
          %v938 = vpop.xlane.xlu0 %937
          %939 = vadd.xlane.f32.xlu0 %v924
          %v940 = vpop.xlane.xlu0 %939
          %941 = vadd.xlane.f32.xlu0 %v929
          %v942 = vpop.xlane.xlu0 %941
          %943 = vadd.xlane.f32.xlu0 %v930
          %v944 = vpop.xlane.xlu0 %943
          %945 = vadd.xlane.f32.xlu0 %v931
          %v946 = vpop.xlane.xlu0 %945
          %947 = vadd.xlane.f32.xlu0 %v932
          %v948 = vpop.xlane.xlu0 %947
          %v949 = vld [vmem:[#allocation2] sm:$0xff]
          %v950 = vld [vmem:[#allocation2 + $0x8] sm:$0xff]
          %v951 = vld [vmem:[#allocation2 + $0x10] sm:$0xff]
          %v952 = vld [vmem:[#allocation2 + $0x18] sm:$0xff]
          %v953 = vadd.f32 %v949, %v934
          %v954 = vadd.f32 %v950, %v936
          %v955 = vadd.f32 %v951, %v938
          %v956 = vadd.f32 %v952, %v940
          %vm957 = vcmask 7168
          %958 = vst.msk [vmem:[#allocation2] sm:$0xff] %vm957, %v953
          %959 = vst.msk [vmem:[#allocation2 + $0x8] sm:$0xff] %vm957, %v954
          %960 = vst.msk [vmem:[#allocation2 + $0x10] sm:$0xff] %vm957, %v955
          %961 = vst.msk [vmem:[#allocation2 + $0x18] sm:$0xff] %vm957, %v956
          %v962 = vld [vmem:[#allocation3] sm:$0xff]
          %v963 = vld [vmem:[#allocation3 + $0x8] sm:$0xff]
          %v964 = vld [vmem:[#allocation3 + $0x10] sm:$0xff]
          %v965 = vld [vmem:[#allocation3 + $0x18] sm:$0xff]
          %v966 = vadd.f32 %v962, %v942
          %v967 = vadd.f32 %v963, %v944
          %v968 = vadd.f32 %v964, %v946
          %v969 = vadd.f32 %v965, %v948
          %970 = vst.msk [vmem:[#allocation3] sm:$0xff] %vm957, %v966
          %971 = vst.msk [vmem:[#allocation3 + $0x8] sm:$0xff] %vm957, %v967
          %972 = vst.msk [vmem:[#allocation3 + $0x10] sm:$0xff] %vm957, %v968
          %973 = vst.msk [vmem:[#allocation3 + $0x18] sm:$0xff] %vm957, %v969
          %p974 = scmp.eq.s32.totalorder %s27, 1
          // Predicated region
          $region94: #{tpu_custom_call.1} parent=92 // pred_check
            %p975 = pneg %p974
          $region95: #{tpu_custom_call.1} parent=92 // pred_check_branch
            %977 = sbr.rel (%p975) target = $region97
          $region96: #{tpu_custom_call.1} parent=92 // pred_region
            %v978 = vld [vmem:[#allocation2] sm:$0xff]
            %v979 = vld [vmem:[#allocation2 + $0x8] sm:$0xff]
            %v980 = vld [vmem:[#allocation2 + $0x10] sm:$0xff]
            %v981 = vld [vmem:[#allocation2 + $0x18] sm:$0xff]
            %v982 = vmul.f32 %v978, 0.00086805556
            %v983 = vmul.f32 %v979, 0.00086805556
            %v984 = vmul.f32 %v980, 0.00086805556
            %v985 = vmul.f32 %v981, 0.00086805556
            %v986 = vld [vmem:[#allocation3] sm:$0xff]
            %v987 = vld [vmem:[#allocation3 + $0x8] sm:$0xff]
            %v988 = vld [vmem:[#allocation3 + $0x10] sm:$0xff]
            %v989 = vld [vmem:[#allocation3 + $0x18] sm:$0xff]
            %v990 = vmul.f32 %v986, 0.00086805556
            %v991 = vmul.f32 %v987, 0.00086805556
            %v992 = vmul.f32 %v988, 0.00086805556
            %v993 = vmul.f32 %v989, 0.00086805556
            %v994 = vmul.f32 %v982, %v982
            %v995 = vmul.f32 %v983, %v983
            %v996 = vmul.f32 %v984, %v984
            %v997 = vmul.f32 %v985, %v985
            %v998 = vsub.f32 %v990, %v994
            %v999 = vsub.f32 %v991, %v995
            %v1000 = vsub.f32 %v992, %v996
            %v1001 = vsub.f32 %v993, %v997
            %v1002 = vmax.f32 %v998, 0.0
            %v1003 = vmax.f32 %v999, 0.0
            %v1004 = vmax.f32 %v1000, 0.0
            %v1005 = vmax.f32 %v1001, 0.0
            %v1006 = vld [vmem:[%s2] sm:$0xff]
            %v1007 = vld [vmem:[%s2 + $0x8] sm:$0xff]
            %v1008 = vld [vmem:[%s2 + $0x10] sm:$0xff]
            %v1009 = vld [vmem:[%s2 + $0x18] sm:$0xff]
            %v1010 = vadd.f32 %v1002, 1e-05
            %v1011 = vadd.f32 %v1003, 1e-05
            %v1012 = vadd.f32 %v1004, 1e-05
            %v1013 = vadd.f32 %v1005, 1e-05
            %v1014 = vrsqrt.pop %v1010
            %v1015 = vrsqrt.pop %v1011
            %v1016 = vrsqrt.pop %v1012
            %v1017 = vrsqrt.pop %v1013
            %v1018 = vmul.f32 %v1006, %v1014
            %v1019 = vmul.f32 %v1007, %v1015
            %v1020 = vmul.f32 %v1008, %v1016
            %v1021 = vmul.f32 %v1009, %v1017
            %1022 = vst.msk [vmem:[#allocation4] sm:$0xff] %vm957, %v1018
            %1023 = vst.msk [vmem:[#allocation4 + $0x8] sm:$0xff] %vm957, %v1019
            %1024 = vst.msk [vmem:[#allocation4 + $0x10] sm:$0xff] %vm957, %v1020
            %1025 = vst.msk [vmem:[#allocation4 + $0x18] sm:$0xff] %vm957, %v1021
            %v1026 = vld [vmem:[%s3] sm:$0xff]
            %v1027 = vld [vmem:[%s3 + $0x8] sm:$0xff]
            %v1028 = vld [vmem:[%s3 + $0x10] sm:$0xff]
            %v1029 = vld [vmem:[%s3 + $0x18] sm:$0xff]
            %v1030 = vmul.f32 %v982, %v1018
            %v1031 = vmul.f32 %v983, %v1019
            %v1032 = vmul.f32 %v984, %v1020
            %v1033 = vmul.f32 %v985, %v1021
            %v1034 = vsub.f32 %v1026, %v1030
            %v1035 = vsub.f32 %v1027, %v1031
            %v1036 = vsub.f32 %v1028, %v1032
            %v1037 = vsub.f32 %v1029, %v1033
            %1038 = vst.msk [vmem:[#allocation5] sm:$0xff] %vm957, %v1034
            %1039 = vst.msk [vmem:[#allocation5 + $0x8] sm:$0xff] %vm957, %v1035
            %1040 = vst.msk [vmem:[#allocation5 + $0x10] sm:$0xff] %vm957, %v1036
            %1041 = vst.msk [vmem:[#allocation5 + $0x18] sm:$0xff] %vm957, %v1037
          $region97: #{tpu_custom_call.1} parent=92 // pred_fallthru
            _
        $region93: #{tpu_custom_call.1} parent=76 // pred_fallthru
          _
        // Predicated region
        $region98: #{tpu_custom_call.1} parent=76 // pred_check
          %p1042 = pneg %p372
        $region99: #{tpu_custom_call.1} parent=76 // pred_check_branch
          %1044 = sbr.rel (%p1042) target = $region101
        $region100: #{tpu_custom_call.1} parent=76 // pred_region
          %v1045 = vld [vmem:[#allocation4] sm:$0xff]
          %v1046 = vld [vmem:[#allocation4 + $0x8] sm:$0xff]
          %v1047 = vld [vmem:[#allocation4 + $0x10] sm:$0xff]
          %v1048 = vld [vmem:[#allocation4 + $0x18] sm:$0xff]
          %v1049 = vld [vmem:[#allocation5] sm:$0xff]
          %v1050 = vld [vmem:[#allocation5 + $0x8] sm:$0xff]
          %v1051 = vld [vmem:[#allocation5 + $0x10] sm:$0xff]
          %v1052 = vld [vmem:[#allocation5 + $0x18] sm:$0xff]
          %v1053 = vld [vmem:[%s4] sm:$0xff]
          %v1054 = vld [vmem:[%s4 + $0x8] sm:$0xff]
          %v1055 = vld [vmem:[%s4 + $0x10] sm:$0xff]
          %v1056 = vld [vmem:[%s4 + $0x18] sm:$0xff]
          %v1057 = vld [vmem:[%s326] sm:$0xf]
          %v1062 = vunpack.c.l.b16 %v386
          %v1063 = vunpack.c.l.b16 %v387
          %v1064 = vunpack.c.l.b16 %v388
          %v1065 = vunpack.c.l.b16 %v389
          %v1066 = vpack.c.b16 %v1063, %v1062
          %v1067 = vpack.c.b16 %v1065, %v1064
          %vm1068 = vcmask 56320
          %v1070 = vsel %vm1068, %v1066, 0
          %v1073 = vsel %vm1068, %v1067, 0
          %vm1075 = vcmask 1042432
          %vm1076 = vcmask 1043456
          %v1077 = vsel %vm1075, 4294967295, 65535
          %v1078 = vsel %vm1076, %v1077, 0
          %v1080 = vand.u32 %v1057, %v1078
          %1082 = vmatprep.subr.bf16.mxu0 0
          %1083 = vmatpush1.bf16.msra.mxu0 %v1080
          %1084 = vmatprep.subr.bf16.mxu0 0
          %1085 = vmatpush1.bf16.msra.mxu0 0
          %1086 = vmatprep.subr.bf16.mxu0 0
          %1087 = vmatpush1.bf16.msra.mxu0 0
          %1088 = vmatprep.subr.bf16.mxu0 0
          %1089 = vmatpush1.bf16.msra.mxu0 0
          %1090 = vmatprep.subr.bf16.mxu0 0
          %1091 = vmatpush1.bf16.msra.mxu0 0
          %1092 = vmatprep.subr.bf16.mxu0 0
          %1093 = vmatpush1.bf16.msra.mxu0 0
          %1094 = vmatprep.subr.bf16.mxu0 0
          %1095 = vmatpush1.bf16.msra.mxu0 0
          %1096 = vmatprep.subr.bf16.mxu0 0
          %1097 = vmatpush1.bf16.msra.mxu0 0
          %1098 = vmatprep.subr.bf16.mxu0 0
          %1099 = vmatpush1.bf16.msra.mxu0 0
          %1100 = vmatprep.subr.bf16.mxu0 0
          %1101 = vmatpush1.bf16.msra.mxu0 0
          %1102 = vmatprep.subr.bf16.mxu0 0
          %1103 = vmatpush1.bf16.msra.mxu0 0
          %1104 = vmatprep.subr.bf16.mxu0 0
          %1105 = vmatpush1.bf16.msra.mxu0 0
          %1106 = vmatprep.subr.bf16.mxu0 0
          %1107 = vmatpush1.bf16.msra.mxu0 0
          %1108 = vmatprep.subr.bf16.mxu0 0
          %1109 = vmatpush1.bf16.msra.mxu0 0
          %1110 = vmatprep.subr.bf16.mxu0 0
          %1111 = vmatpush1.bf16.msra.mxu0 0
          %1112 = vmatprep.subr.bf16.mxu0 0
          %1113 = vmatpush1.bf16.msra.mxu0 0
          %1114 = vmatprep.mubr.bf16.mxu0 0
          %1115 = vmatmul.mubr.bf16.gmra.mrb[0].mxu0 %v1070
          %v1116 = vpop.f32.mrb[0].mxu0
          %v1117 = vadd.f32 0.0, %v1116
          %v1118 = vpop.f32.mrb[0].mxu0
          %v1119 = vpop.f32.mrb[0].mxu0
          %v1120 = vadd.f32 0.0, %v1119
          %v1121 = vpop.f32.mrb[0].mxu0
          %1122 = vmatprep.mubr.bf16.mxu0 0
          %1123 = vmatmul.mubr.bf16.gmra.mrb[0].mxu0 %v1073
          %v1124 = vpop.f32.mrb[0].mxu0
          %v1125 = vadd.f32 0.0, %v1124
          %v1126 = vpop.f32.mrb[0].mxu0
          %v1127 = vpop.f32.mrb[0].mxu0
          %v1128 = vadd.f32 0.0, %v1127
          %v1129 = vpop.f32.mrb[0].mxu0
          %1130 = vdwg.mxu0
          %1132 = vset.pattern.permute.xlu0 0
          %1133 = vperm.xlu0 %1132, %v1045
          %v1134 = vpop.permute.xlu0 %1133
          %1137 = vset.pattern.permute.xlu0 0
          %1138 = vperm.xlu0 %1137, %v1046
          %v1139 = vpop.permute.xlu0 %1138
          %1142 = vset.pattern.permute.xlu0 0
          %1143 = vperm.xlu0 %1142, %v1047
          %v1144 = vpop.permute.xlu0 %1143
          %1147 = vset.pattern.permute.xlu0 0
          %1148 = vperm.xlu0 %1147, %v1048
          %v1149 = vpop.permute.xlu0 %1148
          %v1151 = vmul.f32 %v1117, %v1134
          %v1152 = vmul.f32 %v1120, %v1139
          %v1153 = vmul.f32 %v1125, %v1144
          %v1154 = vmul.f32 %v1128, %v1149
          %1156 = vset.pattern.permute.xlu0 0
          %1157 = vperm.xlu0 %1156, %v1049
          %v1158 = vpop.permute.xlu0 %1157
          %1161 = vset.pattern.permute.xlu0 0
          %1162 = vperm.xlu0 %1161, %v1050
          %v1163 = vpop.permute.xlu0 %1162
          %1166 = vset.pattern.permute.xlu0 0
          %1167 = vperm.xlu0 %1166, %v1051
          %v1168 = vpop.permute.xlu0 %1167
          %1171 = vset.pattern.permute.xlu0 0
          %1172 = vperm.xlu0 %1171, %v1052
          %v1173 = vpop.permute.xlu0 %1172
          %v1175 = vadd.f32 %v1151, %v1158
          %v1176 = vadd.f32 %v1152, %v1163
          %v1177 = vadd.f32 %v1153, %v1168
          %v1178 = vadd.f32 %v1154, %v1173
          %v1179 = vmul.f32 %v1175, 0.01
          %v1180 = vmul.f32 %v1176, 0.01
          %v1181 = vmul.f32 %v1177, 0.01
          %v1182 = vmul.f32 %v1178, 0.01
          %v1183 = vmax.f32 %v1175, %v1179
          %v1184 = vmax.f32 %v1176, %v1180
          %v1185 = vmax.f32 %v1177, %v1181
          %v1186 = vmax.f32 %v1178, %v1182
          %vm1187 = vcmask 261120
          %v1189 = vsel %vm1187, %v1053, 0
          %v1192 = vsel %vm1187, %v1054, 0
          %v1195 = vsel %vm1187, %v1055, 0
          %v1198 = vsel %vm1187, %v1056, 0
          %1200 = vmatprep.subr.mxu0 0.0
          %1201 = vmatpush1.msra.mxu0 %v1183
          %1202 = vmatprep.subr.mxu0 0.0
          %1203 = vmatpush1.msra.mxu0 %v1184
          %1204 = vmatprep.subr.mxu0 0.0
          %1205 = vmatpush1.msra.mxu0 %v1185
          %1206 = vmatprep.subr.mxu0 0.0
          %1207 = vmatpush1.msra.mxu0 %v1186
          %1208 = vmatprep.subr.mxu0 0.0
          %1209 = vmatpush1.msra.mxu0 0.0
          %1210 = vmatprep.subr.mxu0 0.0
          %1211 = vmatpush1.msra.mxu0 0.0
          %1212 = vmatprep.subr.mxu0 0.0
          %1213 = vmatpush1.msra.mxu0 0.0
          %1214 = vmatprep.subr.mxu0 0.0
          %1215 = vmatpush1.msra.mxu0 0.0
          %1216 = vmatprep.subr.mxu0 0.0
          %1217 = vmatpush1.msra.mxu0 0.0
          %1218 = vmatprep.subr.mxu0 0.0
          %1219 = vmatpush1.msra.mxu0 0.0
          %1220 = vmatprep.subr.mxu0 0.0
          %1221 = vmatpush1.msra.mxu0 0.0
          %1222 = vmatprep.subr.mxu0 0.0
          %1223 = vmatpush1.msra.mxu0 0.0
          %1224 = vmatprep.subr.mxu0 0.0
          %1225 = vmatpush1.msra.mxu0 0.0
          %1226 = vmatprep.subr.mxu0 0.0
          %1227 = vmatpush1.msra.mxu0 0.0
          %1228 = vmatprep.subr.mxu0 0.0
          %1229 = vmatpush1.msra.mxu0 0.0
          %1230 = vmatprep.subr.mxu0 0.0
          %1231 = vmatpush1.msra.mxu0 0.0
          %1232 = vmatprep.subr.mxu0 0.0
          %1233 = vmatpush1.msra.mxu0 0.0
          %1234 = vmatprep.subr.mxu0 0.0
          %1235 = vmatpush1.msra.mxu0 0.0
          %1236 = vmatprep.subr.mxu0 0.0
          %1237 = vmatpush1.msra.mxu0 0.0
          %1238 = vmatprep.subr.mxu0 0.0
          %1239 = vmatpush1.msra.mxu0 0.0
          %1240 = vmatprep.subr.mxu0 0.0
          %1241 = vmatpush1.msra.mxu0 0.0
          %1242 = vmatprep.subr.mxu0 0.0
          %1243 = vmatpush1.msra.mxu0 0.0
          %1244 = vmatprep.subr.mxu0 0.0
          %1245 = vmatpush1.msra.mxu0 0.0
          %1246 = vmatprep.subr.mxu0 0.0
          %1247 = vmatpush1.msra.mxu0 0.0
          %1248 = vmatprep.subr.mxu0 0.0
          %1249 = vmatpush1.msra.mxu0 0.0
          %1250 = vmatprep.subr.mxu0 0.0
          %1251 = vmatpush1.msra.mxu0 0.0
          %1252 = vmatprep.subr.mxu0 0.0
          %1253 = vmatpush1.msra.mxu0 0.0
          %1254 = vmatprep.subr.mxu0 0.0
          %1255 = vmatpush1.msra.mxu0 0.0
          %1256 = vmatprep.subr.mxu0 0.0
          %1257 = vmatpush1.msra.mxu0 0.0
          %1258 = vmatprep.subr.mxu0 0.0
          %1259 = vmatpush1.msra.mxu0 0.0
          %1260 = vmatprep.subr.mxu0 0.0
          %1261 = vmatpush1.msra.mxu0 0.0
          %1262 = vmatprep.subr.mxu0 0.0
          %1263 = vmatpush1.msra.mxu0 0.0
          %1264 = vmatprep.mubr.f32.mxu0 0.0
          %1265 = vmatmul.mubr.f32.gmra.mrb[0].mxu0 %v1189
          %v1266 = vpop.f32.mrb[0].mxu0
          %v1267 = vadd.f32 0.0, %v1266
          %v1268 = vpop.f32.mrb[0].mxu0
          %1269 = vmatprep.mubr.f32.mxu0 0.0
          %1270 = vmatmul.mubr.f32.gmra.mrb[0].mxu0 %v1192
          %v1271 = vpop.f32.mrb[0].mxu0
          %v1272 = vadd.f32 0.0, %v1271
          %v1273 = vpop.f32.mrb[0].mxu0
          %1274 = vmatprep.mubr.f32.mxu0 0.0
          %1275 = vmatmul.mubr.f32.gmra.mrb[0].mxu0 %v1195
          %v1276 = vpop.f32.mrb[0].mxu0
          %v1277 = vadd.f32 0.0, %v1276
          %v1278 = vpop.f32.mrb[0].mxu0
          %1279 = vmatprep.mubr.f32.mxu0 0.0
          %1280 = vmatmul.mubr.f32.gmra.mrb[0].mxu0 %v1198
          %v1281 = vpop.f32.mrb[0].mxu0
          %v1282 = vadd.f32 0.0, %v1281
          %v1283 = vpop.f32.mrb[0].mxu0
          %1284 = vdwg.mxu0
          %v1285 = vmul.f32 %v1267, %v1267
          %v1286 = vmul.f32 %v1272, %v1272
          %v1287 = vmul.f32 %v1277, %v1277
          %v1288 = vmul.f32 %v1282, %v1282
          %s1289 = scalar_lea.vmem %s326, 4 [#allocation6]
          %v1290 = vld [vmem:[%s1289] sm:$0xf]
          %v1292 = vand.u32 %v1290, %v1078
          %1294 = vmatprep.subr.bf16.mxu0 0
          %1295 = vmatpush1.bf16.msra.mxu0 %v1292
          %1296 = vmatprep.subr.bf16.mxu0 0
          %1297 = vmatpush1.bf16.msra.mxu0 0
          %1298 = vmatprep.subr.bf16.mxu0 0
          %1299 = vmatpush1.bf16.msra.mxu0 0
          %1300 = vmatprep.subr.bf16.mxu0 0
          %1301 = vmatpush1.bf16.msra.mxu0 0
          %1302 = vmatprep.subr.bf16.mxu0 0
          %1303 = vmatpush1.bf16.msra.mxu0 0
          %1304 = vmatprep.subr.bf16.mxu0 0
          %1305 = vmatpush1.bf16.msra.mxu0 0
          %1306 = vmatprep.subr.bf16.mxu0 0
          %1307 = vmatpush1.bf16.msra.mxu0 0
          %1308 = vmatprep.subr.bf16.mxu0 0
          %1309 = vmatpush1.bf16.msra.mxu0 0
          %1310 = vmatprep.subr.bf16.mxu0 0
          %1311 = vmatpush1.bf16.msra.mxu0 0
          %1312 = vmatprep.subr.bf16.mxu0 0
          %1313 = vmatpush1.bf16.msra.mxu0 0
          %1314 = vmatprep.subr.bf16.mxu0 0
          %1315 = vmatpush1.bf16.msra.mxu0 0
          %1316 = vmatprep.subr.bf16.mxu0 0
          %1317 = vmatpush1.bf16.msra.mxu0 0
          %1318 = vmatprep.subr.bf16.mxu0 0
          %1319 = vmatpush1.bf16.msra.mxu0 0
          %1320 = vmatprep.subr.bf16.mxu0 0
          %1321 = vmatpush1.bf16.msra.mxu0 0
          %1322 = vmatprep.subr.bf16.mxu0 0
          %1323 = vmatpush1.bf16.msra.mxu0 0
          %1324 = vmatprep.subr.bf16.mxu0 0
          %1325 = vmatpush1.bf16.msra.mxu0 0
          %1326 = vmatprep.mubr.bf16.mxu0 0
          %1327 = vmatmul.mubr.bf16.gmra.mrb[0].mxu0 %v1070
          %v1328 = vpop.f32.mrb[0].mxu0
          %v1329 = vadd.f32 0.0, %v1328
          %v1330 = vpop.f32.mrb[0].mxu0
          %v1331 = vpop.f32.mrb[0].mxu0
          %v1332 = vadd.f32 0.0, %v1331
          %v1333 = vpop.f32.mrb[0].mxu0
          %1334 = vmatprep.mubr.bf16.mxu0 0
          %1335 = vmatmul.mubr.bf16.gmra.mrb[0].mxu0 %v1073
          %v1336 = vpop.f32.mrb[0].mxu0
          %v1337 = vadd.f32 0.0, %v1336
          %v1338 = vpop.f32.mrb[0].mxu0
          %v1339 = vpop.f32.mrb[0].mxu0
          %v1340 = vadd.f32 0.0, %v1339
          %v1341 = vpop.f32.mrb[0].mxu0
          %1342 = vdwg.mxu0
          %v1343 = vmul.f32 %v1329, %v1134
          %v1344 = vmul.f32 %v1332, %v1139
          %v1345 = vmul.f32 %v1337, %v1144
          %v1346 = vmul.f32 %v1340, %v1149
          %v1347 = vadd.f32 %v1343, %v1158
          %v1348 = vadd.f32 %v1344, %v1163
          %v1349 = vadd.f32 %v1345, %v1168
          %v1350 = vadd.f32 %v1346, %v1173
          %v1351 = vmul.f32 %v1347, 0.01
          %v1352 = vmul.f32 %v1348, 0.01
          %v1353 = vmul.f32 %v1349, 0.01
          %v1354 = vmul.f32 %v1350, 0.01
          %v1355 = vmax.f32 %v1347, %v1351
          %v1356 = vmax.f32 %v1348, %v1352
          %v1357 = vmax.f32 %v1349, %v1353
          %v1358 = vmax.f32 %v1350, %v1354
          %1359 = vmatprep.subr.mxu0 0.0
          %1360 = vmatpush1.msra.mxu0 %v1355
          %1361 = vmatprep.subr.mxu0 0.0
          %1362 = vmatpush1.msra.mxu0 %v1356
          %1363 = vmatprep.subr.mxu0 0.0
          %1364 = vmatpush1.msra.mxu0 %v1357
          %1365 = vmatprep.subr.mxu0 0.0
          %1366 = vmatpush1.msra.mxu0 %v1358
          %1367 = vmatprep.subr.mxu0 0.0
          %1368 = vmatpush1.msra.mxu0 0.0
          %1369 = vmatprep.subr.mxu0 0.0
          %1370 = vmatpush1.msra.mxu0 0.0
          %1371 = vmatprep.subr.mxu0 0.0
          %1372 = vmatpush1.msra.mxu0 0.0
          %1373 = vmatprep.subr.mxu0 0.0
          %1374 = vmatpush1.msra.mxu0 0.0
          %1375 = vmatprep.subr.mxu0 0.0
          %1376 = vmatpush1.msra.mxu0 0.0
          %1377 = vmatprep.subr.mxu0 0.0
          %1378 = vmatpush1.msra.mxu0 0.0
          %1379 = vmatprep.subr.mxu0 0.0
          %1380 = vmatpush1.msra.mxu0 0.0
          %1381 = vmatprep.subr.mxu0 0.0
          %1382 = vmatpush1.msra.mxu0 0.0
          %1383 = vmatprep.subr.mxu0 0.0
          %1384 = vmatpush1.msra.mxu0 0.0
          %1385 = vmatprep.subr.mxu0 0.0
          %1386 = vmatpush1.msra.mxu0 0.0
          %1387 = vmatprep.subr.mxu0 0.0
          %1388 = vmatpush1.msra.mxu0 0.0
          %1389 = vmatprep.subr.mxu0 0.0
          %1390 = vmatpush1.msra.mxu0 0.0
          %1391 = vmatprep.subr.mxu0 0.0
          %1392 = vmatpush1.msra.mxu0 0.0
          %1393 = vmatprep.subr.mxu0 0.0
          %1394 = vmatpush1.msra.mxu0 0.0
          %1395 = vmatprep.subr.mxu0 0.0
          %1396 = vmatpush1.msra.mxu0 0.0
          %1397 = vmatprep.subr.mxu0 0.0
          %1398 = vmatpush1.msra.mxu0 0.0
          %1399 = vmatprep.subr.mxu0 0.0
          %1400 = vmatpush1.msra.mxu0 0.0
          %1401 = vmatprep.subr.mxu0 0.0
          %1402 = vmatpush1.msra.mxu0 0.0
          %1403 = vmatprep.subr.mxu0 0.0
          %1404 = vmatpush1.msra.mxu0 0.0
          %1405 = vmatprep.subr.mxu0 0.0
          %1406 = vmatpush1.msra.mxu0 0.0
          %1407 = vmatprep.subr.mxu0 0.0
          %1408 = vmatpush1.msra.mxu0 0.0
          %1409 = vmatprep.subr.mxu0 0.0
          %1410 = vmatpush1.msra.mxu0 0.0
          %1411 = vmatprep.subr.mxu0 0.0
          %1412 = vmatpush1.msra.mxu0 0.0
          %1413 = vmatprep.subr.mxu0 0.0
          %1414 = vmatpush1.msra.mxu0 0.0
          %1415 = vmatprep.subr.mxu0 0.0
          %1416 = vmatpush1.msra.mxu0 0.0
          %1417 = vmatprep.subr.mxu0 0.0
          %1418 = vmatpush1.msra.mxu0 0.0
          %1419 = vmatprep.subr.mxu0 0.0
          %1420 = vmatpush1.msra.mxu0 0.0
          %1421 = vmatprep.subr.mxu0 0.0
          %1422 = vmatpush1.msra.mxu0 0.0
          %1423 = vmatprep.mubr.f32.mxu0 0.0
          %1424 = vmatmul.mubr.f32.gmra.mrb[0].mxu0 %v1189
          %v1425 = vpop.f32.mrb[0].mxu0
          %v1426 = vadd.f32 0.0, %v1425
          %v1427 = vpop.f32.mrb[0].mxu0
          %1428 = vmatprep.mubr.f32.mxu0 0.0
          %1429 = vmatmul.mubr.f32.gmra.mrb[0].mxu0 %v1192
          %v1430 = vpop.f32.mrb[0].mxu0
          %v1431 = vadd.f32 0.0, %v1430
          %v1432 = vpop.f32.mrb[0].mxu0
          %1433 = vmatprep.mubr.f32.mxu0 0.0
          %1434 = vmatmul.mubr.f32.gmra.mrb[0].mxu0 %v1195
          %v1435 = vpop.f32.mrb[0].mxu0
          %v1436 = vadd.f32 0.0, %v1435
          %v1437 = vpop.f32.mrb[0].mxu0
          %1438 = vmatprep.mubr.f32.mxu0 0.0
          %1439 = vmatmul.mubr.f32.gmra.mrb[0].mxu0 %v1198
          %v1440 = vpop.f32.mrb[0].mxu0
          %v1441 = vadd.f32 0.0, %v1440
          %v1442 = vpop.f32.mrb[0].mxu0
          %1443 = vdwg.mxu0
          %v1444 = vmax.f32 %v1267, %v1426
          %v1445 = vmax.f32 %v1272, %v1431
          %v1446 = vmax.f32 %v1277, %v1436
          %v1447 = vmax.f32 %v1282, %v1441
          %v1448 = vadd.f32 %v1267, %v1426
          %v1449 = vadd.f32 %v1272, %v1431
          %v1450 = vadd.f32 %v1277, %v1436
          %v1451 = vadd.f32 %v1282, %v1441
          %v1452 = vmul.f32 %v1426, %v1426
          %v1453 = vmul.f32 %v1431, %v1431
          %v1454 = vmul.f32 %v1436, %v1436
          %v1455 = vmul.f32 %v1441, %v1441
          %v1456 = vadd.f32 %v1285, %v1452
          %v1457 = vadd.f32 %v1286, %v1453
          %v1458 = vadd.f32 %v1287, %v1454
          %v1459 = vadd.f32 %v1288, %v1455
          %s1460 = scalar_lea.vmem %s326, 8 [#allocation6]
          %v1461 = vld [vmem:[%s1460] sm:$0xf]
          %v1463 = vand.u32 %v1461, %v1078
          %1465 = vmatprep.subr.bf16.mxu0 0
          %1466 = vmatpush1.bf16.msra.mxu0 %v1463
          %1467 = vmatprep.subr.bf16.mxu0 0
          %1468 = vmatpush1.bf16.msra.mxu0 0
          %1469 = vmatprep.subr.bf16.mxu0 0
          %1470 = vmatpush1.bf16.msra.mxu0 0
          %1471 = vmatprep.subr.bf16.mxu0 0
          %1472 = vmatpush1.bf16.msra.mxu0 0
          %1473 = vmatprep.subr.bf16.mxu0 0
          %1474 = vmatpush1.bf16.msra.mxu0 0
          %1475 = vmatprep.subr.bf16.mxu0 0
          %1476 = vmatpush1.bf16.msra.mxu0 0
          %1477 = vmatprep.subr.bf16.mxu0 0
          %1478 = vmatpush1.bf16.msra.mxu0 0
          %1479 = vmatprep.subr.bf16.mxu0 0
          %1480 = vmatpush1.bf16.msra.mxu0 0
          %1481 = vmatprep.subr.bf16.mxu0 0
          %1482 = vmatpush1.bf16.msra.mxu0 0
          %1483 = vmatprep.subr.bf16.mxu0 0
          %1484 = vmatpush1.bf16.msra.mxu0 0
          %1485 = vmatprep.subr.bf16.mxu0 0
          %1486 = vmatpush1.bf16.msra.mxu0 0
          %1487 = vmatprep.subr.bf16.mxu0 0
          %1488 = vmatpush1.bf16.msra.mxu0 0
          %1489 = vmatprep.subr.bf16.mxu0 0
          %1490 = vmatpush1.bf16.msra.mxu0 0
          %1491 = vmatprep.subr.bf16.mxu0 0
          %1492 = vmatpush1.bf16.msra.mxu0 0
          %1493 = vmatprep.subr.bf16.mxu0 0
          %1494 = vmatpush1.bf16.msra.mxu0 0
          %1495 = vmatprep.subr.bf16.mxu0 0
          %1496 = vmatpush1.bf16.msra.mxu0 0
          %1497 = vmatprep.mubr.bf16.mxu0 0
          %1498 = vmatmul.mubr.bf16.gmra.mrb[0].mxu0 %v1070
          %v1499 = vpop.f32.mrb[0].mxu0
          %v1500 = vadd.f32 0.0, %v1499
          %v1501 = vpop.f32.mrb[0].mxu0
          %v1502 = vpop.f32.mrb[0].mxu0
          %v1503 = vadd.f32 0.0, %v1502
          %v1504 = vpop.f32.mrb[0].mxu0
          %1505 = vmatprep.mubr.bf16.mxu0 0
          %1506 = vmatmul.mubr.bf16.gmra.mrb[0].mxu0 %v1073
          %v1507 = vpop.f32.mrb[0].mxu0
          %v1508 = vadd.f32 0.0, %v1507
          %v1509 = vpop.f32.mrb[0].mxu0
          %v1510 = vpop.f32.mrb[0].mxu0
          %v1511 = vadd.f32 0.0, %v1510
          %v1512 = vpop.f32.mrb[0].mxu0
          %1513 = vdwg.mxu0
          %v1514 = vmul.f32 %v1500, %v1134
          %v1515 = vmul.f32 %v1503, %v1139
          %v1516 = vmul.f32 %v1508, %v1144
          %v1517 = vmul.f32 %v1511, %v1149
          %v1518 = vadd.f32 %v1514, %v1158
          %v1519 = vadd.f32 %v1515, %v1163
          %v1520 = vadd.f32 %v1516, %v1168
          %v1521 = vadd.f32 %v1517, %v1173
          %v1522 = vmul.f32 %v1518, 0.01
          %v1523 = vmul.f32 %v1519, 0.01
          %v1524 = vmul.f32 %v1520, 0.01
          %v1525 = vmul.f32 %v1521, 0.01
          %v1526 = vmax.f32 %v1518, %v1522
          %v1527 = vmax.f32 %v1519, %v1523
          %v1528 = vmax.f32 %v1520, %v1524
          %v1529 = vmax.f32 %v1521, %v1525
          %1530 = vmatprep.subr.mxu0 0.0
          %1531 = vmatpush1.msra.mxu0 %v1526
          %1532 = vmatprep.subr.mxu0 0.0
          %1533 = vmatpush1.msra.mxu0 %v1527
          %1534 = vmatprep.subr.mxu0 0.0
          %1535 = vmatpush1.msra.mxu0 %v1528
          %1536 = vmatprep.subr.mxu0 0.0
          %1537 = vmatpush1.msra.mxu0 %v1529
          %1538 = vmatprep.subr.mxu0 0.0
          %1539 = vmatpush1.msra.mxu0 0.0
          %1540 = vmatprep.subr.mxu0 0.0
          %1541 = vmatpush1.msra.mxu0 0.0
          %1542 = vmatprep.subr.mxu0 0.0
          %1543 = vmatpush1.msra.mxu0 0.0
          %1544 = vmatprep.subr.mxu0 0.0
          %1545 = vmatpush1.msra.mxu0 0.0
          %1546 = vmatprep.subr.mxu0 0.0
          %1547 = vmatpush1.msra.mxu0 0.0
          %1548 = vmatprep.subr.mxu0 0.0
          %1549 = vmatpush1.msra.mxu0 0.0
          %1550 = vmatprep.subr.mxu0 0.0
          %1551 = vmatpush1.msra.mxu0 0.0
          %1552 = vmatprep.subr.mxu0 0.0
          %1553 = vmatpush1.msra.mxu0 0.0
          %1554 = vmatprep.subr.mxu0 0.0
          %1555 = vmatpush1.msra.mxu0 0.0
          %1556 = vmatprep.subr.mxu0 0.0
          %1557 = vmatpush1.msra.mxu0 0.0
          %1558 = vmatprep.subr.mxu0 0.0
          %1559 = vmatpush1.msra.mxu0 0.0
          %1560 = vmatprep.subr.mxu0 0.0
          %1561 = vmatpush1.msra.mxu0 0.0
          %1562 = vmatprep.subr.mxu0 0.0
          %1563 = vmatpush1.msra.mxu0 0.0
          %1564 = vmatprep.subr.mxu0 0.0
          %1565 = vmatpush1.msra.mxu0 0.0
          %1566 = vmatprep.subr.mxu0 0.0
          %1567 = vmatpush1.msra.mxu0 0.0
          %1568 = vmatprep.subr.mxu0 0.0
          %1569 = vmatpush1.msra.mxu0 0.0
          %1570 = vmatprep.subr.mxu0 0.0
          %1571 = vmatpush1.msra.mxu0 0.0
          %1572 = vmatprep.subr.mxu0 0.0
          %1573 = vmatpush1.msra.mxu0 0.0
          %1574 = vmatprep.subr.mxu0 0.0
          %1575 = vmatpush1.msra.mxu0 0.0
          %1576 = vmatprep.subr.mxu0 0.0
          %1577 = vmatpush1.msra.mxu0 0.0
          %1578 = vmatprep.subr.mxu0 0.0
          %1579 = vmatpush1.msra.mxu0 0.0
          %1580 = vmatprep.subr.mxu0 0.0
          %1581 = vmatpush1.msra.mxu0 0.0
          %1582 = vmatprep.subr.mxu0 0.0
          %1583 = vmatpush1.msra.mxu0 0.0
          %1584 = vmatprep.subr.mxu0 0.0
          %1585 = vmatpush1.msra.mxu0 0.0
          %1586 = vmatprep.subr.mxu0 0.0
          %1587 = vmatpush1.msra.mxu0 0.0
          %1588 = vmatprep.subr.mxu0 0.0
          %1589 = vmatpush1.msra.mxu0 0.0
          %1590 = vmatprep.subr.mxu0 0.0
          %1591 = vmatpush1.msra.mxu0 0.0
          %1592 = vmatprep.subr.mxu0 0.0
          %1593 = vmatpush1.msra.mxu0 0.0
          %1594 = vmatprep.mubr.f32.mxu0 0.0
          %1595 = vmatmul.mubr.f32.gmra.mrb[0].mxu0 %v1189
          %v1596 = vpop.f32.mrb[0].mxu0
          %v1597 = vadd.f32 0.0, %v1596
          %v1598 = vpop.f32.mrb[0].mxu0
          %1599 = vmatprep.mubr.f32.mxu0 0.0
          %1600 = vmatmul.mubr.f32.gmra.mrb[0].mxu0 %v1192
          %v1601 = vpop.f32.mrb[0].mxu0
          %v1602 = vadd.f32 0.0, %v1601
          %v1603 = vpop.f32.mrb[0].mxu0
          %1604 = vmatprep.mubr.f32.mxu0 0.0
          %1605 = vmatmul.mubr.f32.gmra.mrb[0].mxu0 %v1195
          %v1606 = vpop.f32.mrb[0].mxu0
          %v1607 = vadd.f32 0.0, %v1606
          %v1608 = vpop.f32.mrb[0].mxu0
          %1609 = vmatprep.mubr.f32.mxu0 0.0
          %1610 = vmatmul.mubr.f32.gmra.mrb[0].mxu0 %v1198
          %v1611 = vpop.f32.mrb[0].mxu0
          %v1612 = vadd.f32 0.0, %v1611
          %v1613 = vpop.f32.mrb[0].mxu0
          %1614 = vdwg.mxu0
          %v1615 = vmax.f32 %v1444, %v1597
          %v1616 = vmax.f32 %v1445, %v1602
          %v1617 = vmax.f32 %v1446, %v1607
          %v1618 = vmax.f32 %v1447, %v1612
          %v1619 = vadd.f32 %v1448, %v1597
          %v1620 = vadd.f32 %v1449, %v1602
          %v1621 = vadd.f32 %v1450, %v1607
          %v1622 = vadd.f32 %v1451, %v1612
          %v1623 = vmul.f32 %v1597, %v1597
          %v1624 = vmul.f32 %v1602, %v1602
          %v1625 = vmul.f32 %v1607, %v1607
          %v1626 = vmul.f32 %v1612, %v1612
          %v1627 = vadd.f32 %v1456, %v1623
          %v1628 = vadd.f32 %v1457, %v1624
          %v1629 = vadd.f32 %v1458, %v1625
          %v1630 = vadd.f32 %v1459, %v1626
          %s1631 = scalar_lea.vmem %s326, 12 [#allocation6]
          %v1632 = vld [vmem:[%s1631] sm:$0xf]
          %v1634 = vand.u32 %v1632, %v1078
          %1636 = vmatprep.subr.bf16.mxu0 0
          %1637 = vmatpush1.bf16.msra.mxu0 %v1634
          %1638 = vmatprep.subr.bf16.mxu0 0
          %1639 = vmatpush1.bf16.msra.mxu0 0
          %1640 = vmatprep.subr.bf16.mxu0 0
          %1641 = vmatpush1.bf16.msra.mxu0 0
          %1642 = vmatprep.subr.bf16.mxu0 0
          %1643 = vmatpush1.bf16.msra.mxu0 0
          %1644 = vmatprep.subr.bf16.mxu0 0
          %1645 = vmatpush1.bf16.msra.mxu0 0
          %1646 = vmatprep.subr.bf16.mxu0 0
          %1647 = vmatpush1.bf16.msra.mxu0 0
          %1648 = vmatprep.subr.bf16.mxu0 0
          %1649 = vmatpush1.bf16.msra.mxu0 0
          %1650 = vmatprep.subr.bf16.mxu0 0
          %1651 = vmatpush1.bf16.msra.mxu0 0
          %1652 = vmatprep.subr.bf16.mxu0 0
          %1653 = vmatpush1.bf16.msra.mxu0 0
          %1654 = vmatprep.subr.bf16.mxu0 0
          %1655 = vmatpush1.bf16.msra.mxu0 0
          %1656 = vmatprep.subr.bf16.mxu0 0
          %1657 = vmatpush1.bf16.msra.mxu0 0
          %1658 = vmatprep.subr.bf16.mxu0 0
          %1659 = vmatpush1.bf16.msra.mxu0 0
          %1660 = vmatprep.subr.bf16.mxu0 0
          %1661 = vmatpush1.bf16.msra.mxu0 0
          %1662 = vmatprep.subr.bf16.mxu0 0
          %1663 = vmatpush1.bf16.msra.mxu0 0
          %1664 = vmatprep.subr.bf16.mxu0 0
          %1665 = vmatpush1.bf16.msra.mxu0 0
          %1666 = vmatprep.subr.bf16.mxu0 0
          %1667 = vmatpush1.bf16.msra.mxu0 0
          %1668 = vmatprep.mubr.bf16.mxu0 0
          %1669 = vmatmul.mubr.bf16.gmra.mrb[0].mxu0 %v1070
          %v1670 = vpop.f32.mrb[0].mxu0
          %v1671 = vadd.f32 0.0, %v1670
          %v1672 = vpop.f32.mrb[0].mxu0
          %v1673 = vpop.f32.mrb[0].mxu0
          %v1674 = vadd.f32 0.0, %v1673
          %v1675 = vpop.f32.mrb[0].mxu0
          %1676 = vmatprep.mubr.bf16.mxu0 0
          %1677 = vmatmul.mubr.bf16.gmra.mrb[0].mxu0 %v1073
          %v1678 = vpop.f32.mrb[0].mxu0
          %v1679 = vadd.f32 0.0, %v1678
          %v1680 = vpop.f32.mrb[0].mxu0
          %v1681 = vpop.f32.mrb[0].mxu0
          %v1682 = vadd.f32 0.0, %v1681
          %v1683 = vpop.f32.mrb[0].mxu0
          %1684 = vdwg.mxu0
          %v1685 = vmul.f32 %v1671, %v1134
          %v1686 = vmul.f32 %v1674, %v1139
          %v1687 = vmul.f32 %v1679, %v1144
          %v1688 = vmul.f32 %v1682, %v1149
          %v1689 = vadd.f32 %v1685, %v1158
          %v1690 = vadd.f32 %v1686, %v1163
          %v1691 = vadd.f32 %v1687, %v1168
          %v1692 = vadd.f32 %v1688, %v1173
          %v1693 = vmul.f32 %v1689, 0.01
          %v1694 = vmul.f32 %v1690, 0.01
          %v1695 = vmul.f32 %v1691, 0.01
          %v1696 = vmul.f32 %v1692, 0.01
          %v1697 = vmax.f32 %v1689, %v1693
          %v1698 = vmax.f32 %v1690, %v1694
          %v1699 = vmax.f32 %v1691, %v1695
          %v1700 = vmax.f32 %v1692, %v1696
          %1701 = vmatprep.subr.mxu0 0.0
          %1702 = vmatpush1.msra.mxu0 %v1697
          %1703 = vmatprep.subr.mxu0 0.0
          %1704 = vmatpush1.msra.mxu0 %v1698
          %1705 = vmatprep.subr.mxu0 0.0
          %1706 = vmatpush1.msra.mxu0 %v1699
          %1707 = vmatprep.subr.mxu0 0.0
          %1708 = vmatpush1.msra.mxu0 %v1700
          %1709 = vmatprep.subr.mxu0 0.0
          %1710 = vmatpush1.msra.mxu0 0.0
          %1711 = vmatprep.subr.mxu0 0.0
          %1712 = vmatpush1.msra.mxu0 0.0
          %1713 = vmatprep.subr.mxu0 0.0
          %1714 = vmatpush1.msra.mxu0 0.0
          %1715 = vmatprep.subr.mxu0 0.0
          %1716 = vmatpush1.msra.mxu0 0.0
          %1717 = vmatprep.subr.mxu0 0.0
          %1718 = vmatpush1.msra.mxu0 0.0
          %1719 = vmatprep.subr.mxu0 0.0
          %1720 = vmatpush1.msra.mxu0 0.0
          %1721 = vmatprep.subr.mxu0 0.0
          %1722 = vmatpush1.msra.mxu0 0.0
          %1723 = vmatprep.subr.mxu0 0.0
          %1724 = vmatpush1.msra.mxu0 0.0
          %1725 = vmatprep.subr.mxu0 0.0
          %1726 = vmatpush1.msra.mxu0 0.0
          %1727 = vmatprep.subr.mxu0 0.0
          %1728 = vmatpush1.msra.mxu0 0.0
          %1729 = vmatprep.subr.mxu0 0.0
          %1730 = vmatpush1.msra.mxu0 0.0
          %1731 = vmatprep.subr.mxu0 0.0
          %1732 = vmatpush1.msra.mxu0 0.0
          %1733 = vmatprep.subr.mxu0 0.0
          %1734 = vmatpush1.msra.mxu0 0.0
          %1735 = vmatprep.subr.mxu0 0.0
          %1736 = vmatpush1.msra.mxu0 0.0
          %1737 = vmatprep.subr.mxu0 0.0
          %1738 = vmatpush1.msra.mxu0 0.0
          %1739 = vmatprep.subr.mxu0 0.0
          %1740 = vmatpush1.msra.mxu0 0.0
          %1741 = vmatprep.subr.mxu0 0.0
          %1742 = vmatpush1.msra.mxu0 0.0
          %1743 = vmatprep.subr.mxu0 0.0
          %1744 = vmatpush1.msra.mxu0 0.0
          %1745 = vmatprep.subr.mxu0 0.0
          %1746 = vmatpush1.msra.mxu0 0.0
          %1747 = vmatprep.subr.mxu0 0.0
          %1748 = vmatpush1.msra.mxu0 0.0
          %1749 = vmatprep.subr.mxu0 0.0
          %1750 = vmatpush1.msra.mxu0 0.0
          %1751 = vmatprep.subr.mxu0 0.0
          %1752 = vmatpush1.msra.mxu0 0.0
          %1753 = vmatprep.subr.mxu0 0.0
          %1754 = vmatpush1.msra.mxu0 0.0
          %1755 = vmatprep.subr.mxu0 0.0
          %1756 = vmatpush1.msra.mxu0 0.0
          %1757 = vmatprep.subr.mxu0 0.0
          %1758 = vmatpush1.msra.mxu0 0.0
          %1759 = vmatprep.subr.mxu0 0.0
          %1760 = vmatpush1.msra.mxu0 0.0
          %1761 = vmatprep.subr.mxu0 0.0
          %1762 = vmatpush1.msra.mxu0 0.0
          %1763 = vmatprep.subr.mxu0 0.0
          %1764 = vmatpush1.msra.mxu0 0.0
          %1765 = vmatprep.mubr.f32.mxu0 0.0
          %1766 = vmatmul.mubr.f32.gmra.mrb[0].mxu0 %v1189
          %v1767 = vpop.f32.mrb[0].mxu0
          %v1768 = vadd.f32 0.0, %v1767
          %v1769 = vpop.f32.mrb[0].mxu0
          %1770 = vmatprep.mubr.f32.mxu0 0.0
          %1771 = vmatmul.mubr.f32.gmra.mrb[0].mxu0 %v1192
          %v1772 = vpop.f32.mrb[0].mxu0
          %v1773 = vadd.f32 0.0, %v1772
          %v1774 = vpop.f32.mrb[0].mxu0
          %1775 = vmatprep.mubr.f32.mxu0 0.0
          %1776 = vmatmul.mubr.f32.gmra.mrb[0].mxu0 %v1195
          %v1777 = vpop.f32.mrb[0].mxu0
          %v1778 = vadd.f32 0.0, %v1777
          %v1779 = vpop.f32.mrb[0].mxu0
          %1780 = vmatprep.mubr.f32.mxu0 0.0
          %1781 = vmatmul.mubr.f32.gmra.mrb[0].mxu0 %v1198
          %v1782 = vpop.f32.mrb[0].mxu0
          %v1783 = vadd.f32 0.0, %v1782
          %v1784 = vpop.f32.mrb[0].mxu0
          %1785 = vdwg.mxu0
          %v1786 = vmax.f32 %v1615, %v1768
          %v1787 = vmax.f32 %v1616, %v1773
          %v1788 = vmax.f32 %v1617, %v1778
          %v1789 = vmax.f32 %v1618, %v1783
          %v1790 = vadd.f32 %v1619, %v1768
          %v1791 = vadd.f32 %v1620, %v1773
          %v1792 = vadd.f32 %v1621, %v1778
          %v1793 = vadd.f32 %v1622, %v1783
          %v1794 = vmul.f32 %v1768, %v1768
          %v1795 = vmul.f32 %v1773, %v1773
          %v1796 = vmul.f32 %v1778, %v1778
          %v1797 = vmul.f32 %v1783, %v1783
          %v1798 = vadd.f32 %v1627, %v1794
          %v1799 = vadd.f32 %v1628, %v1795
          %v1800 = vadd.f32 %v1629, %v1796
          %v1801 = vadd.f32 %v1630, %v1797
          %s1802 = scalar_lea.vmem %s326, 16 [#allocation6]
          %v1803 = vld [vmem:[%s1802] sm:$0xf]
          %v1805 = vand.u32 %v1803, %v1078
          %1807 = vmatprep.subr.bf16.mxu0 0
          %1808 = vmatpush1.bf16.msra.mxu0 %v1805
          %1809 = vmatprep.subr.bf16.mxu0 0
          %1810 = vmatpush1.bf16.msra.mxu0 0
          %1811 = vmatprep.subr.bf16.mxu0 0
          %1812 = vmatpush1.bf16.msra.mxu0 0
          %1813 = vmatprep.subr.bf16.mxu0 0
          %1814 = vmatpush1.bf16.msra.mxu0 0
          %1815 = vmatprep.subr.bf16.mxu0 0
          %1816 = vmatpush1.bf16.msra.mxu0 0
          %1817 = vmatprep.subr.bf16.mxu0 0
          %1818 = vmatpush1.bf16.msra.mxu0 0
          %1819 = vmatprep.subr.bf16.mxu0 0
          %1820 = vmatpush1.bf16.msra.mxu0 0
          %1821 = vmatprep.subr.bf16.mxu0 0
          %1822 = vmatpush1.bf16.msra.mxu0 0
          %1823 = vmatprep.subr.bf16.mxu0 0
          %1824 = vmatpush1.bf16.msra.mxu0 0
          %1825 = vmatprep.subr.bf16.mxu0 0
          %1826 = vmatpush1.bf16.msra.mxu0 0
          %1827 = vmatprep.subr.bf16.mxu0 0
          %1828 = vmatpush1.bf16.msra.mxu0 0
          %1829 = vmatprep.subr.bf16.mxu0 0
          %1830 = vmatpush1.bf16.msra.mxu0 0
          %1831 = vmatprep.subr.bf16.mxu0 0
          %1832 = vmatpush1.bf16.msra.mxu0 0
          %1833 = vmatprep.subr.bf16.mxu0 0
          %1834 = vmatpush1.bf16.msra.mxu0 0
          %1835 = vmatprep.subr.bf16.mxu0 0
          %1836 = vmatpush1.bf16.msra.mxu0 0
          %1837 = vmatprep.subr.bf16.mxu0 0
          %1838 = vmatpush1.bf16.msra.mxu0 0
          %1839 = vmatprep.mubr.bf16.mxu0 0
          %1840 = vmatmul.mubr.bf16.gmra.mrb[0].mxu0 %v1070
          %v1841 = vpop.f32.mrb[0].mxu0
          %v1842 = vadd.f32 0.0, %v1841
          %v1843 = vpop.f32.mrb[0].mxu0
          %v1844 = vpop.f32.mrb[0].mxu0
          %v1845 = vadd.f32 0.0, %v1844
          %v1846 = vpop.f32.mrb[0].mxu0
          %1847 = vmatprep.mubr.bf16.mxu0 0
          %1848 = vmatmul.mubr.bf16.gmra.mrb[0].mxu0 %v1073
          %v1849 = vpop.f32.mrb[0].mxu0
          %v1850 = vadd.f32 0.0, %v1849
          %v1851 = vpop.f32.mrb[0].mxu0
          %v1852 = vpop.f32.mrb[0].mxu0
          %v1853 = vadd.f32 0.0, %v1852
          %v1854 = vpop.f32.mrb[0].mxu0
          %1855 = vdwg.mxu0
          %v1856 = vmul.f32 %v1842, %v1134
          %v1857 = vmul.f32 %v1845, %v1139
          %v1858 = vmul.f32 %v1850, %v1144
          %v1859 = vmul.f32 %v1853, %v1149
          %v1860 = vadd.f32 %v1856, %v1158
          %v1861 = vadd.f32 %v1857, %v1163
          %v1862 = vadd.f32 %v1858, %v1168
          %v1863 = vadd.f32 %v1859, %v1173
          %v1864 = vmul.f32 %v1860, 0.01
          %v1865 = vmul.f32 %v1861, 0.01
          %v1866 = vmul.f32 %v1862, 0.01
          %v1867 = vmul.f32 %v1863, 0.01
          %v1868 = vmax.f32 %v1860, %v1864
          %v1869 = vmax.f32 %v1861, %v1865
          %v1870 = vmax.f32 %v1862, %v1866
          %v1871 = vmax.f32 %v1863, %v1867
          %1872 = vmatprep.subr.mxu0 0.0
          %1873 = vmatpush1.msra.mxu0 %v1868
          %1874 = vmatprep.subr.mxu0 0.0
          %1875 = vmatpush1.msra.mxu0 %v1869
          %1876 = vmatprep.subr.mxu0 0.0
          %1877 = vmatpush1.msra.mxu0 %v1870
          %1878 = vmatprep.subr.mxu0 0.0
          %1879 = vmatpush1.msra.mxu0 %v1871
          %1880 = vmatprep.subr.mxu0 0.0
          %1881 = vmatpush1.msra.mxu0 0.0
          %1882 = vmatprep.subr.mxu0 0.0
          %1883 = vmatpush1.msra.mxu0 0.0
          %1884 = vmatprep.subr.mxu0 0.0
          %1885 = vmatpush1.msra.mxu0 0.0
          %1886 = vmatprep.subr.mxu0 0.0
          %1887 = vmatpush1.msra.mxu0 0.0
          %1888 = vmatprep.subr.mxu0 0.0
          %1889 = vmatpush1.msra.mxu0 0.0
          %1890 = vmatprep.subr.mxu0 0.0
          %1891 = vmatpush1.msra.mxu0 0.0
          %1892 = vmatprep.subr.mxu0 0.0
          %1893 = vmatpush1.msra.mxu0 0.0
          %1894 = vmatprep.subr.mxu0 0.0
          %1895 = vmatpush1.msra.mxu0 0.0
          %1896 = vmatprep.subr.mxu0 0.0
          %1897 = vmatpush1.msra.mxu0 0.0
          %1898 = vmatprep.subr.mxu0 0.0
          %1899 = vmatpush1.msra.mxu0 0.0
          %1900 = vmatprep.subr.mxu0 0.0
          %1901 = vmatpush1.msra.mxu0 0.0
          %1902 = vmatprep.subr.mxu0 0.0
          %1903 = vmatpush1.msra.mxu0 0.0
          %1904 = vmatprep.subr.mxu0 0.0
          %1905 = vmatpush1.msra.mxu0 0.0
          %1906 = vmatprep.subr.mxu0 0.0
          %1907 = vmatpush1.msra.mxu0 0.0
          %1908 = vmatprep.subr.mxu0 0.0
          %1909 = vmatpush1.msra.mxu0 0.0
          %1910 = vmatprep.subr.mxu0 0.0
          %1911 = vmatpush1.msra.mxu0 0.0
          %1912 = vmatprep.subr.mxu0 0.0
          %1913 = vmatpush1.msra.mxu0 0.0
          %1914 = vmatprep.subr.mxu0 0.0
          %1915 = vmatpush1.msra.mxu0 0.0
          %1916 = vmatprep.subr.mxu0 0.0
          %1917 = vmatpush1.msra.mxu0 0.0
          %1918 = vmatprep.subr.mxu0 0.0
          %1919 = vmatpush1.msra.mxu0 0.0
          %1920 = vmatprep.subr.mxu0 0.0
          %1921 = vmatpush1.msra.mxu0 0.0
          %1922 = vmatprep.subr.mxu0 0.0
          %1923 = vmatpush1.msra.mxu0 0.0
          %1924 = vmatprep.subr.mxu0 0.0
          %1925 = vmatpush1.msra.mxu0 0.0
          %1926 = vmatprep.subr.mxu0 0.0
          %1927 = vmatpush1.msra.mxu0 0.0
          %1928 = vmatprep.subr.mxu0 0.0
          %1929 = vmatpush1.msra.mxu0 0.0
          %1930 = vmatprep.subr.mxu0 0.0
          %1931 = vmatpush1.msra.mxu0 0.0
          %1932 = vmatprep.subr.mxu0 0.0
          %1933 = vmatpush1.msra.mxu0 0.0
          %1934 = vmatprep.subr.mxu0 0.0
          %1935 = vmatpush1.msra.mxu0 0.0
          %1936 = vmatprep.mubr.f32.mxu0 0.0
          %1937 = vmatmul.mubr.f32.gmra.mrb[0].mxu0 %v1189
          %v1938 = vpop.f32.mrb[0].mxu0
          %v1939 = vadd.f32 0.0, %v1938
          %v1940 = vpop.f32.mrb[0].mxu0
          %1941 = vmatprep.mubr.f32.mxu0 0.0
          %1942 = vmatmul.mubr.f32.gmra.mrb[0].mxu0 %v1192
          %v1943 = vpop.f32.mrb[0].mxu0
          %v1944 = vadd.f32 0.0, %v1943
          %v1945 = vpop.f32.mrb[0].mxu0
          %1946 = vmatprep.mubr.f32.mxu0 0.0
          %1947 = vmatmul.mubr.f32.gmra.mrb[0].mxu0 %v1195
          %v1948 = vpop.f32.mrb[0].mxu0
          %v1949 = vadd.f32 0.0, %v1948
          %v1950 = vpop.f32.mrb[0].mxu0
          %1951 = vmatprep.mubr.f32.mxu0 0.0
          %1952 = vmatmul.mubr.f32.gmra.mrb[0].mxu0 %v1198
          %v1953 = vpop.f32.mrb[0].mxu0
          %v1954 = vadd.f32 0.0, %v1953
          %v1955 = vpop.f32.mrb[0].mxu0
          %1956 = vdwg.mxu0
          %v1957 = vmax.f32 %v1786, %v1939
          %v1958 = vmax.f32 %v1787, %v1944
          %v1959 = vmax.f32 %v1788, %v1949
          %v1960 = vmax.f32 %v1789, %v1954
          %v1961 = vadd.f32 %v1790, %v1939
          %v1962 = vadd.f32 %v1791, %v1944
          %v1963 = vadd.f32 %v1792, %v1949
          %v1964 = vadd.f32 %v1793, %v1954
          %v1965 = vmul.f32 %v1939, %v1939
          %v1966 = vmul.f32 %v1944, %v1944
          %v1967 = vmul.f32 %v1949, %v1949
          %v1968 = vmul.f32 %v1954, %v1954
          %v1969 = vadd.f32 %v1798, %v1965
          %v1970 = vadd.f32 %v1799, %v1966
          %v1971 = vadd.f32 %v1800, %v1967
          %v1972 = vadd.f32 %v1801, %v1968
          %s1973 = scalar_lea.vmem %s326, 20 [#allocation6]
          %v1974 = vld [vmem:[%s1973] sm:$0xf]
          %v1976 = vand.u32 %v1974, %v1078
          %1978 = vmatprep.subr.bf16.mxu0 0
          %1979 = vmatpush1.bf16.msra.mxu0 %v1976
          %1980 = vmatprep.subr.bf16.mxu0 0
          %1981 = vmatpush1.bf16.msra.mxu0 0
          %1982 = vmatprep.subr.bf16.mxu0 0
          %1983 = vmatpush1.bf16.msra.mxu0 0
          %1984 = vmatprep.subr.bf16.mxu0 0
          %1985 = vmatpush1.bf16.msra.mxu0 0
          %1986 = vmatprep.subr.bf16.mxu0 0
          %1987 = vmatpush1.bf16.msra.mxu0 0
          %1988 = vmatprep.subr.bf16.mxu0 0
          %1989 = vmatpush1.bf16.msra.mxu0 0
          %1990 = vmatprep.subr.bf16.mxu0 0
          %1991 = vmatpush1.bf16.msra.mxu0 0
          %1992 = vmatprep.subr.bf16.mxu0 0
          %1993 = vmatpush1.bf16.msra.mxu0 0
          %1994 = vmatprep.subr.bf16.mxu0 0
          %1995 = vmatpush1.bf16.msra.mxu0 0
          %1996 = vmatprep.subr.bf16.mxu0 0
          %1997 = vmatpush1.bf16.msra.mxu0 0
          %1998 = vmatprep.subr.bf16.mxu0 0
          %1999 = vmatpush1.bf16.msra.mxu0 0
          %2000 = vmatprep.subr.bf16.mxu0 0
          %2001 = vmatpush1.bf16.msra.mxu0 0
          %2002 = vmatprep.subr.bf16.mxu0 0
          %2003 = vmatpush1.bf16.msra.mxu0 0
          %2004 = vmatprep.subr.bf16.mxu0 0
          %2005 = vmatpush1.bf16.msra.mxu0 0
          %2006 = vmatprep.subr.bf16.mxu0 0
          %2007 = vmatpush1.bf16.msra.mxu0 0
          %2008 = vmatprep.subr.bf16.mxu0 0
          %2009 = vmatpush1.bf16.msra.mxu0 0
          %2010 = vmatprep.mubr.bf16.mxu0 0
          %2011 = vmatmul.mubr.bf16.gmra.mrb[0].mxu0 %v1070
          %v2012 = vpop.f32.mrb[0].mxu0
          %v2013 = vadd.f32 0.0, %v2012
          %v2014 = vpop.f32.mrb[0].mxu0
          %v2015 = vpop.f32.mrb[0].mxu0
          %v2016 = vadd.f32 0.0, %v2015
          %v2017 = vpop.f32.mrb[0].mxu0
          %2018 = vmatprep.mubr.bf16.mxu0 0
          %2019 = vmatmul.mubr.bf16.gmra.mrb[0].mxu0 %v1073
          %v2020 = vpop.f32.mrb[0].mxu0
          %v2021 = vadd.f32 0.0, %v2020
          %v2022 = vpop.f32.mrb[0].mxu0
          %v2023 = vpop.f32.mrb[0].mxu0
          %v2024 = vadd.f32 0.0, %v2023
          %v2025 = vpop.f32.mrb[0].mxu0
          %2026 = vdwg.mxu0
          %v2027 = vmul.f32 %v2013, %v1134
          %v2028 = vmul.f32 %v2016, %v1139
          %v2029 = vmul.f32 %v2021, %v1144
          %v2030 = vmul.f32 %v2024, %v1149
          %v2031 = vadd.f32 %v2027, %v1158
          %v2032 = vadd.f32 %v2028, %v1163
          %v2033 = vadd.f32 %v2029, %v1168
          %v2034 = vadd.f32 %v2030, %v1173
          %v2035 = vmul.f32 %v2031, 0.01
          %v2036 = vmul.f32 %v2032, 0.01
          %v2037 = vmul.f32 %v2033, 0.01
          %v2038 = vmul.f32 %v2034, 0.01
          %v2039 = vmax.f32 %v2031, %v2035
          %v2040 = vmax.f32 %v2032, %v2036
          %v2041 = vmax.f32 %v2033, %v2037
          %v2042 = vmax.f32 %v2034, %v2038
          %2043 = vmatprep.subr.mxu0 0.0
          %2044 = vmatpush1.msra.mxu0 %v2039
          %2045 = vmatprep.subr.mxu0 0.0
          %2046 = vmatpush1.msra.mxu0 %v2040
          %2047 = vmatprep.subr.mxu0 0.0
          %2048 = vmatpush1.msra.mxu0 %v2041
          %2049 = vmatprep.subr.mxu0 0.0
          %2050 = vmatpush1.msra.mxu0 %v2042
          %2051 = vmatprep.subr.mxu0 0.0
          %2052 = vmatpush1.msra.mxu0 0.0
          %2053 = vmatprep.subr.mxu0 0.0
          %2054 = vmatpush1.msra.mxu0 0.0
          %2055 = vmatprep.subr.mxu0 0.0
          %2056 = vmatpush1.msra.mxu0 0.0
          %2057 = vmatprep.subr.mxu0 0.0
          %2058 = vmatpush1.msra.mxu0 0.0
          %2059 = vmatprep.subr.mxu0 0.0
          %2060 = vmatpush1.msra.mxu0 0.0
          %2061 = vmatprep.subr.mxu0 0.0
          %2062 = vmatpush1.msra.mxu0 0.0
          %2063 = vmatprep.subr.mxu0 0.0
          %2064 = vmatpush1.msra.mxu0 0.0
          %2065 = vmatprep.subr.mxu0 0.0
          %2066 = vmatpush1.msra.mxu0 0.0
          %2067 = vmatprep.subr.mxu0 0.0
          %2068 = vmatpush1.msra.mxu0 0.0
          %2069 = vmatprep.subr.mxu0 0.0
          %2070 = vmatpush1.msra.mxu0 0.0
          %2071 = vmatprep.subr.mxu0 0.0
          %2072 = vmatpush1.msra.mxu0 0.0
          %2073 = vmatprep.subr.mxu0 0.0
          %2074 = vmatpush1.msra.mxu0 0.0
          %2075 = vmatprep.subr.mxu0 0.0
          %2076 = vmatpush1.msra.mxu0 0.0
          %2077 = vmatprep.subr.mxu0 0.0
          %2078 = vmatpush1.msra.mxu0 0.0
          %2079 = vmatprep.subr.mxu0 0.0
          %2080 = vmatpush1.msra.mxu0 0.0
          %2081 = vmatprep.subr.mxu0 0.0
          %2082 = vmatpush1.msra.mxu0 0.0
          %2083 = vmatprep.subr.mxu0 0.0
          %2084 = vmatpush1.msra.mxu0 0.0
          %2085 = vmatprep.subr.mxu0 0.0
          %2086 = vmatpush1.msra.mxu0 0.0
          %2087 = vmatprep.subr.mxu0 0.0
          %2088 = vmatpush1.msra.mxu0 0.0
          %2089 = vmatprep.subr.mxu0 0.0
          %2090 = vmatpush1.msra.mxu0 0.0
          %2091 = vmatprep.subr.mxu0 0.0
          %2092 = vmatpush1.msra.mxu0 0.0
          %2093 = vmatprep.subr.mxu0 0.0
          %2094 = vmatpush1.msra.mxu0 0.0
          %2095 = vmatprep.subr.mxu0 0.0
          %2096 = vmatpush1.msra.mxu0 0.0
          %2097 = vmatprep.subr.mxu0 0.0
          %2098 = vmatpush1.msra.mxu0 0.0
          %2099 = vmatprep.subr.mxu0 0.0
          %2100 = vmatpush1.msra.mxu0 0.0
          %2101 = vmatprep.subr.mxu0 0.0
          %2102 = vmatpush1.msra.mxu0 0.0
          %2103 = vmatprep.subr.mxu0 0.0
          %2104 = vmatpush1.msra.mxu0 0.0
          %2105 = vmatprep.subr.mxu0 0.0
          %2106 = vmatpush1.msra.mxu0 0.0
          %2107 = vmatprep.mubr.f32.mxu0 0.0
          %2108 = vmatmul.mubr.f32.gmra.mrb[0].mxu0 %v1189
          %v2109 = vpop.f32.mrb[0].mxu0
          %v2110 = vadd.f32 0.0, %v2109
          %v2111 = vpop.f32.mrb[0].mxu0
          %2112 = vmatprep.mubr.f32.mxu0 0.0
          %2113 = vmatmul.mubr.f32.gmra.mrb[0].mxu0 %v1192
          %v2114 = vpop.f32.mrb[0].mxu0
          %v2115 = vadd.f32 0.0, %v2114
          %v2116 = vpop.f32.mrb[0].mxu0
          %2117 = vmatprep.mubr.f32.mxu0 0.0
          %2118 = vmatmul.mubr.f32.gmra.mrb[0].mxu0 %v1195
          %v2119 = vpop.f32.mrb[0].mxu0
          %v2120 = vadd.f32 0.0, %v2119
          %v2121 = vpop.f32.mrb[0].mxu0
          %2122 = vmatprep.mubr.f32.mxu0 0.0
          %2123 = vmatmul.mubr.f32.gmra.mrb[0].mxu0 %v1198
          %v2124 = vpop.f32.mrb[0].mxu0
          %v2125 = vadd.f32 0.0, %v2124
          %v2126 = vpop.f32.mrb[0].mxu0
          %2127 = vdwg.mxu0
          %v2128 = vmax.f32 %v1957, %v2110
          %v2129 = vmax.f32 %v1958, %v2115
          %v2130 = vmax.f32 %v1959, %v2120
          %v2131 = vmax.f32 %v1960, %v2125
          %v2132 = vadd.f32 %v1961, %v2110
          %v2133 = vadd.f32 %v1962, %v2115
          %v2134 = vadd.f32 %v1963, %v2120
          %v2135 = vadd.f32 %v1964, %v2125
          %v2136 = vmul.f32 %v2110, %v2110
          %v2137 = vmul.f32 %v2115, %v2115
          %v2138 = vmul.f32 %v2120, %v2120
          %v2139 = vmul.f32 %v2125, %v2125
          %v2140 = vadd.f32 %v1969, %v2136
          %v2141 = vadd.f32 %v1970, %v2137
          %v2142 = vadd.f32 %v1971, %v2138
          %v2143 = vadd.f32 %v1972, %v2139
          %s2144 = scalar_lea.vmem %s326, 24 [#allocation6]
          %v2145 = vld [vmem:[%s2144] sm:$0xf]
          %v2147 = vand.u32 %v2145, %v1078
          %2149 = vmatprep.subr.bf16.mxu0 0
          %2150 = vmatpush1.bf16.msra.mxu0 %v2147
          %2151 = vmatprep.subr.bf16.mxu0 0
          %2152 = vmatpush1.bf16.msra.mxu0 0
          %2153 = vmatprep.subr.bf16.mxu0 0
          %2154 = vmatpush1.bf16.msra.mxu0 0
          %2155 = vmatprep.subr.bf16.mxu0 0
          %2156 = vmatpush1.bf16.msra.mxu0 0
          %2157 = vmatprep.subr.bf16.mxu0 0
          %2158 = vmatpush1.bf16.msra.mxu0 0
          %2159 = vmatprep.subr.bf16.mxu0 0
          %2160 = vmatpush1.bf16.msra.mxu0 0
          %2161 = vmatprep.subr.bf16.mxu0 0
          %2162 = vmatpush1.bf16.msra.mxu0 0
          %2163 = vmatprep.subr.bf16.mxu0 0
          %2164 = vmatpush1.bf16.msra.mxu0 0
          %2165 = vmatprep.subr.bf16.mxu0 0
          %2166 = vmatpush1.bf16.msra.mxu0 0
          %2167 = vmatprep.subr.bf16.mxu0 0
          %2168 = vmatpush1.bf16.msra.mxu0 0
          %2169 = vmatprep.subr.bf16.mxu0 0
          %2170 = vmatpush1.bf16.msra.mxu0 0
          %2171 = vmatprep.subr.bf16.mxu0 0
          %2172 = vmatpush1.bf16.msra.mxu0 0
          %2173 = vmatprep.subr.bf16.mxu0 0
          %2174 = vmatpush1.bf16.msra.mxu0 0
          %2175 = vmatprep.subr.bf16.mxu0 0
          %2176 = vmatpush1.bf16.msra.mxu0 0
          %2177 = vmatprep.subr.bf16.mxu0 0
          %2178 = vmatpush1.bf16.msra.mxu0 0
          %2179 = vmatprep.subr.bf16.mxu0 0
          %2180 = vmatpush1.bf16.msra.mxu0 0
          %2181 = vmatprep.mubr.bf16.mxu0 0
          %2182 = vmatmul.mubr.bf16.gmra.mrb[0].mxu0 %v1070
          %v2183 = vpop.f32.mrb[0].mxu0
          %v2184 = vadd.f32 0.0, %v2183
          %v2185 = vpop.f32.mrb[0].mxu0
          %v2186 = vpop.f32.mrb[0].mxu0
          %v2187 = vadd.f32 0.0, %v2186
          %v2188 = vpop.f32.mrb[0].mxu0
          %2189 = vmatprep.mubr.bf16.mxu0 0
          %2190 = vmatmul.mubr.bf16.gmra.mrb[0].mxu0 %v1073
          %v2191 = vpop.f32.mrb[0].mxu0
          %v2192 = vadd.f32 0.0, %v2191
          %v2193 = vpop.f32.mrb[0].mxu0
          %v2194 = vpop.f32.mrb[0].mxu0
          %v2195 = vadd.f32 0.0, %v2194
          %v2196 = vpop.f32.mrb[0].mxu0
          %2197 = vdwg.mxu0
          %v2198 = vmul.f32 %v2184, %v1134
          %v2199 = vmul.f32 %v2187, %v1139
          %v2200 = vmul.f32 %v2192, %v1144
          %v2201 = vmul.f32 %v2195, %v1149
          %v2202 = vadd.f32 %v2198, %v1158
          %v2203 = vadd.f32 %v2199, %v1163
          %v2204 = vadd.f32 %v2200, %v1168
          %v2205 = vadd.f32 %v2201, %v1173
          %v2206 = vmul.f32 %v2202, 0.01
          %v2207 = vmul.f32 %v2203, 0.01
          %v2208 = vmul.f32 %v2204, 0.01
          %v2209 = vmul.f32 %v2205, 0.01
          %v2210 = vmax.f32 %v2202, %v2206
          %v2211 = vmax.f32 %v2203, %v2207
          %v2212 = vmax.f32 %v2204, %v2208
          %v2213 = vmax.f32 %v2205, %v2209
          %2214 = vmatprep.subr.mxu0 0.0
          %2215 = vmatpush1.msra.mxu0 %v2210
          %2216 = vmatprep.subr.mxu0 0.0
          %2217 = vmatpush1.msra.mxu0 %v2211
          %2218 = vmatprep.subr.mxu0 0.0
          %2219 = vmatpush1.msra.mxu0 %v2212
          %2220 = vmatprep.subr.mxu0 0.0
          %2221 = vmatpush1.msra.mxu0 %v2213
          %2222 = vmatprep.subr.mxu0 0.0
          %2223 = vmatpush1.msra.mxu0 0.0
          %2224 = vmatprep.subr.mxu0 0.0
          %2225 = vmatpush1.msra.mxu0 0.0
          %2226 = vmatprep.subr.mxu0 0.0
          %2227 = vmatpush1.msra.mxu0 0.0
          %2228 = vmatprep.subr.mxu0 0.0
          %2229 = vmatpush1.msra.mxu0 0.0
          %2230 = vmatprep.subr.mxu0 0.0
          %2231 = vmatpush1.msra.mxu0 0.0
          %2232 = vmatprep.subr.mxu0 0.0
          %2233 = vmatpush1.msra.mxu0 0.0
          %2234 = vmatprep.subr.mxu0 0.0
          %2235 = vmatpush1.msra.mxu0 0.0
          %2236 = vmatprep.subr.mxu0 0.0
          %2237 = vmatpush1.msra.mxu0 0.0
          %2238 = vmatprep.subr.mxu0 0.0
          %2239 = vmatpush1.msra.mxu0 0.0
          %2240 = vmatprep.subr.mxu0 0.0
          %2241 = vmatpush1.msra.mxu0 0.0
          %2242 = vmatprep.subr.mxu0 0.0
          %2243 = vmatpush1.msra.mxu0 0.0
          %2244 = vmatprep.subr.mxu0 0.0
          %2245 = vmatpush1.msra.mxu0 0.0
          %2246 = vmatprep.subr.mxu0 0.0
          %2247 = vmatpush1.msra.mxu0 0.0
          %2248 = vmatprep.subr.mxu0 0.0
          %2249 = vmatpush1.msra.mxu0 0.0
          %2250 = vmatprep.subr.mxu0 0.0
          %2251 = vmatpush1.msra.mxu0 0.0
          %2252 = vmatprep.subr.mxu0 0.0
          %2253 = vmatpush1.msra.mxu0 0.0
          %2254 = vmatprep.subr.mxu0 0.0
          %2255 = vmatpush1.msra.mxu0 0.0
          %2256 = vmatprep.subr.mxu0 0.0
          %2257 = vmatpush1.msra.mxu0 0.0
          %2258 = vmatprep.subr.mxu0 0.0
          %2259 = vmatpush1.msra.mxu0 0.0
          %2260 = vmatprep.subr.mxu0 0.0
          %2261 = vmatpush1.msra.mxu0 0.0
          %2262 = vmatprep.subr.mxu0 0.0
          %2263 = vmatpush1.msra.mxu0 0.0
          %2264 = vmatprep.subr.mxu0 0.0
          %2265 = vmatpush1.msra.mxu0 0.0
          %2266 = vmatprep.subr.mxu0 0.0
          %2267 = vmatpush1.msra.mxu0 0.0
          %2268 = vmatprep.subr.mxu0 0.0
          %2269 = vmatpush1.msra.mxu0 0.0
          %2270 = vmatprep.subr.mxu0 0.0
          %2271 = vmatpush1.msra.mxu0 0.0
          %2272 = vmatprep.subr.mxu0 0.0
          %2273 = vmatpush1.msra.mxu0 0.0
          %2274 = vmatprep.subr.mxu0 0.0
          %2275 = vmatpush1.msra.mxu0 0.0
          %2276 = vmatprep.subr.mxu0 0.0
          %2277 = vmatpush1.msra.mxu0 0.0
          %2278 = vmatprep.mubr.f32.mxu0 0.0
          %2279 = vmatmul.mubr.f32.gmra.mrb[0].mxu0 %v1189
          %v2280 = vpop.f32.mrb[0].mxu0
          %v2281 = vadd.f32 0.0, %v2280
          %v2282 = vpop.f32.mrb[0].mxu0
          %2283 = vmatprep.mubr.f32.mxu0 0.0
          %2284 = vmatmul.mubr.f32.gmra.mrb[0].mxu0 %v1192
          %v2285 = vpop.f32.mrb[0].mxu0
          %v2286 = vadd.f32 0.0, %v2285
          %v2287 = vpop.f32.mrb[0].mxu0
          %2288 = vmatprep.mubr.f32.mxu0 0.0
          %2289 = vmatmul.mubr.f32.gmra.mrb[0].mxu0 %v1195
          %v2290 = vpop.f32.mrb[0].mxu0
          %v2291 = vadd.f32 0.0, %v2290
          %v2292 = vpop.f32.mrb[0].mxu0
          %2293 = vmatprep.mubr.f32.mxu0 0.0
          %2294 = vmatmul.mubr.f32.gmra.mrb[0].mxu0 %v1198
          %v2295 = vpop.f32.mrb[0].mxu0
          %v2296 = vadd.f32 0.0, %v2295
          %v2297 = vpop.f32.mrb[0].mxu0
          %2298 = vdwg.mxu0
          %v2299 = vmax.f32 %v2128, %v2281
          %v2300 = vmax.f32 %v2129, %v2286
          %v2301 = vmax.f32 %v2130, %v2291
          %v2302 = vmax.f32 %v2131, %v2296
          %v2303 = vadd.f32 %v2132, %v2281
          %v2304 = vadd.f32 %v2133, %v2286
          %v2305 = vadd.f32 %v2134, %v2291
          %v2306 = vadd.f32 %v2135, %v2296
          %v2307 = vmul.f32 %v2281, %v2281
          %v2308 = vmul.f32 %v2286, %v2286
          %v2309 = vmul.f32 %v2291, %v2291
          %v2310 = vmul.f32 %v2296, %v2296
          %v2311 = vadd.f32 %v2140, %v2307
          %v2312 = vadd.f32 %v2141, %v2308
          %v2313 = vadd.f32 %v2142, %v2309
          %v2314 = vadd.f32 %v2143, %v2310
          %s2315 = scalar_lea.vmem %s326, 28 [#allocation6]
          %v2316 = vld [vmem:[%s2315] sm:$0xf]
          %v2318 = vand.u32 %v2316, %v1078
          %2320 = vmatprep.subr.bf16.mxu0 0
          %2321 = vmatpush1.bf16.msra.mxu0 %v2318
          %2322 = vmatprep.subr.bf16.mxu0 0
          %2323 = vmatpush1.bf16.msra.mxu0 0
          %2324 = vmatprep.subr.bf16.mxu0 0
          %2325 = vmatpush1.bf16.msra.mxu0 0
          %2326 = vmatprep.subr.bf16.mxu0 0
          %2327 = vmatpush1.bf16.msra.mxu0 0
          %2328 = vmatprep.subr.bf16.mxu0 0
          %2329 = vmatpush1.bf16.msra.mxu0 0
          %2330 = vmatprep.subr.bf16.mxu0 0
          %2331 = vmatpush1.bf16.msra.mxu0 0
          %2332 = vmatprep.subr.bf16.mxu0 0
          %2333 = vmatpush1.bf16.msra.mxu0 0
          %2334 = vmatprep.subr.bf16.mxu0 0
          %2335 = vmatpush1.bf16.msra.mxu0 0
          %2336 = vmatprep.subr.bf16.mxu0 0
          %2337 = vmatpush1.bf16.msra.mxu0 0
          %2338 = vmatprep.subr.bf16.mxu0 0
          %2339 = vmatpush1.bf16.msra.mxu0 0
          %2340 = vmatprep.subr.bf16.mxu0 0
          %2341 = vmatpush1.bf16.msra.mxu0 0
          %2342 = vmatprep.subr.bf16.mxu0 0
          %2343 = vmatpush1.bf16.msra.mxu0 0
          %2344 = vmatprep.subr.bf16.mxu0 0
          %2345 = vmatpush1.bf16.msra.mxu0 0
          %2346 = vmatprep.subr.bf16.mxu0 0
          %2347 = vmatpush1.bf16.msra.mxu0 0
          %2348 = vmatprep.subr.bf16.mxu0 0
          %2349 = vmatpush1.bf16.msra.mxu0 0
          %2350 = vmatprep.subr.bf16.mxu0 0
          %2351 = vmatpush1.bf16.msra.mxu0 0
          %2352 = vmatprep.mubr.bf16.mxu0 0
          %2353 = vmatmul.mubr.bf16.gmra.mrb[0].mxu0 %v1070
          %v2354 = vpop.f32.mrb[0].mxu0
          %v2355 = vadd.f32 0.0, %v2354
          %v2356 = vpop.f32.mrb[0].mxu0
          %v2357 = vpop.f32.mrb[0].mxu0
          %v2358 = vadd.f32 0.0, %v2357
          %v2359 = vpop.f32.mrb[0].mxu0
          %2360 = vmatprep.mubr.bf16.mxu0 0
          %2361 = vmatmul.mubr.bf16.gmra.mrb[0].mxu0 %v1073
          %v2362 = vpop.f32.mrb[0].mxu0
          %v2363 = vadd.f32 0.0, %v2362
          %v2364 = vpop.f32.mrb[0].mxu0
          %v2365 = vpop.f32.mrb[0].mxu0
          %v2366 = vadd.f32 0.0, %v2365
          %v2367 = vpop.f32.mrb[0].mxu0
          %2368 = vdwg.mxu0
          %v2369 = vmul.f32 %v2355, %v1134
          %v2370 = vmul.f32 %v2358, %v1139
          %v2371 = vmul.f32 %v2363, %v1144
          %v2372 = vmul.f32 %v2366, %v1149
          %v2373 = vadd.f32 %v2369, %v1158
          %v2374 = vadd.f32 %v2370, %v1163
          %v2375 = vadd.f32 %v2371, %v1168
          %v2376 = vadd.f32 %v2372, %v1173
          %v2377 = vmul.f32 %v2373, 0.01
          %v2378 = vmul.f32 %v2374, 0.01
          %v2379 = vmul.f32 %v2375, 0.01
          %v2380 = vmul.f32 %v2376, 0.01
          %v2381 = vmax.f32 %v2373, %v2377
          %v2382 = vmax.f32 %v2374, %v2378
          %v2383 = vmax.f32 %v2375, %v2379
          %v2384 = vmax.f32 %v2376, %v2380
          %2385 = vmatprep.subr.mxu0 0.0
          %2386 = vmatpush1.msra.mxu0 %v2381
          %2387 = vmatprep.subr.mxu0 0.0
          %2388 = vmatpush1.msra.mxu0 %v2382
          %2389 = vmatprep.subr.mxu0 0.0
          %2390 = vmatpush1.msra.mxu0 %v2383
          %2391 = vmatprep.subr.mxu0 0.0
          %2392 = vmatpush1.msra.mxu0 %v2384
          %2393 = vmatprep.subr.mxu0 0.0
          %2394 = vmatpush1.msra.mxu0 0.0
          %2395 = vmatprep.subr.mxu0 0.0
          %2396 = vmatpush1.msra.mxu0 0.0
          %2397 = vmatprep.subr.mxu0 0.0
          %2398 = vmatpush1.msra.mxu0 0.0
          %2399 = vmatprep.subr.mxu0 0.0
          %2400 = vmatpush1.msra.mxu0 0.0
          %2401 = vmatprep.subr.mxu0 0.0
          %2402 = vmatpush1.msra.mxu0 0.0
          %2403 = vmatprep.subr.mxu0 0.0
          %2404 = vmatpush1.msra.mxu0 0.0
          %2405 = vmatprep.subr.mxu0 0.0
          %2406 = vmatpush1.msra.mxu0 0.0
          %2407 = vmatprep.subr.mxu0 0.0
          %2408 = vmatpush1.msra.mxu0 0.0
          %2409 = vmatprep.subr.mxu0 0.0
          %2410 = vmatpush1.msra.mxu0 0.0
          %2411 = vmatprep.subr.mxu0 0.0
          %2412 = vmatpush1.msra.mxu0 0.0
          %2413 = vmatprep.subr.mxu0 0.0
          %2414 = vmatpush1.msra.mxu0 0.0
          %2415 = vmatprep.subr.mxu0 0.0
          %2416 = vmatpush1.msra.mxu0 0.0
          %2417 = vmatprep.subr.mxu0 0.0
          %2418 = vmatpush1.msra.mxu0 0.0
          %2419 = vmatprep.subr.mxu0 0.0
          %2420 = vmatpush1.msra.mxu0 0.0
          %2421 = vmatprep.subr.mxu0 0.0
          %2422 = vmatpush1.msra.mxu0 0.0
          %2423 = vmatprep.subr.mxu0 0.0
          %2424 = vmatpush1.msra.mxu0 0.0
          %2425 = vmatprep.subr.mxu0 0.0
          %2426 = vmatpush1.msra.mxu0 0.0
          %2427 = vmatprep.subr.mxu0 0.0
          %2428 = vmatpush1.msra.mxu0 0.0
          %2429 = vmatprep.subr.mxu0 0.0
          %2430 = vmatpush1.msra.mxu0 0.0
          %2431 = vmatprep.subr.mxu0 0.0
          %2432 = vmatpush1.msra.mxu0 0.0
          %2433 = vmatprep.subr.mxu0 0.0
          %2434 = vmatpush1.msra.mxu0 0.0
          %2435 = vmatprep.subr.mxu0 0.0
          %2436 = vmatpush1.msra.mxu0 0.0
          %2437 = vmatprep.subr.mxu0 0.0
          %2438 = vmatpush1.msra.mxu0 0.0
          %2439 = vmatprep.subr.mxu0 0.0
          %2440 = vmatpush1.msra.mxu0 0.0
          %2441 = vmatprep.subr.mxu0 0.0
          %2442 = vmatpush1.msra.mxu0 0.0
          %2443 = vmatprep.subr.mxu0 0.0
          %2444 = vmatpush1.msra.mxu0 0.0
          %2445 = vmatprep.subr.mxu0 0.0
          %2446 = vmatpush1.msra.mxu0 0.0
          %2447 = vmatprep.subr.mxu0 0.0
          %2448 = vmatpush1.msra.mxu0 0.0
          %2449 = vmatprep.mubr.f32.mxu0 0.0
          %2450 = vmatmul.mubr.f32.gmra.mrb[0].mxu0 %v1189
          %v2451 = vpop.f32.mrb[0].mxu0
          %v2452 = vadd.f32 0.0, %v2451
          %v2453 = vpop.f32.mrb[0].mxu0
          %2454 = vmatprep.mubr.f32.mxu0 0.0
          %2455 = vmatmul.mubr.f32.gmra.mrb[0].mxu0 %v1192
          %v2456 = vpop.f32.mrb[0].mxu0
          %v2457 = vadd.f32 0.0, %v2456
          %v2458 = vpop.f32.mrb[0].mxu0
          %2459 = vmatprep.mubr.f32.mxu0 0.0
          %2460 = vmatmul.mubr.f32.gmra.mrb[0].mxu0 %v1195
          %v2461 = vpop.f32.mrb[0].mxu0
          %v2462 = vadd.f32 0.0, %v2461
          %v2463 = vpop.f32.mrb[0].mxu0
          %2464 = vmatprep.mubr.f32.mxu0 0.0
          %2465 = vmatmul.mubr.f32.gmra.mrb[0].mxu0 %v1198
          %v2466 = vpop.f32.mrb[0].mxu0
          %v2467 = vadd.f32 0.0, %v2466
          %v2468 = vpop.f32.mrb[0].mxu0
          %2469 = vdwg.mxu0
          %v2470 = vmax.f32 %v2299, %v2452
          %v2471 = vmax.f32 %v2300, %v2457
          %v2472 = vmax.f32 %v2301, %v2462
          %v2473 = vmax.f32 %v2302, %v2467
          %v2474 = vadd.f32 %v2303, %v2452
          %v2475 = vadd.f32 %v2304, %v2457
          %v2476 = vadd.f32 %v2305, %v2462
          %v2477 = vadd.f32 %v2306, %v2467
          %v2478 = vmul.f32 %v2452, %v2452
          %v2479 = vmul.f32 %v2457, %v2457
          %v2480 = vmul.f32 %v2462, %v2462
          %v2481 = vmul.f32 %v2467, %v2467
          %v2482 = vadd.f32 %v2311, %v2478
          %v2483 = vadd.f32 %v2312, %v2479
          %v2484 = vadd.f32 %v2313, %v2480
          %v2485 = vadd.f32 %v2314, %v2481
          %2486 = vst [vmem:[%s350] sm:$0xff] %v2470
          %2487 = vst [vmem:[%s350 + $0x8] sm:$0xff] %v2471
          %2488 = vst [vmem:[%s350 + $0x10] sm:$0xff] %v2472
          %2489 = vst [vmem:[%s350 + $0x18] sm:$0xff] %v2473
          %v2490 = vlaneseq
          %v2491 = vand.u32 %v2490, 127
          %s2492 = smul.u32 %s27, 128
          %v2493 = vstv %s2492
          %v2494 = vadd.s32 %v2493, %v2491
          %vm2495 = vcmp.lt.s32.totalorder %v2494, 144
          %v2496 = vsel %vm2495, 1, 0
          %v2497 = vcvt.s32.f32 %v2496
          %v2498 = vmul.f32 %v2474, %v2497
          %v2499 = vmul.f32 %v2475, %v2497
          %v2500 = vmul.f32 %v2476, %v2497
          %v2501 = vmul.f32 %v2477, %v2497
          %v2502 = vmul.f32 %v2482, %v2497
          %v2503 = vmul.f32 %v2483, %v2497
          %v2504 = vmul.f32 %v2484, %v2497
          %v2505 = vmul.f32 %v2485, %v2497
          %2506 = vadd.xlane.f32.xlu0 %v2498
          %v2507 = vpop.xlane.xlu0 %2506
          %2508 = vadd.xlane.f32.xlu0 %v2499
          %v2509 = vpop.xlane.xlu0 %2508
          %2510 = vadd.xlane.f32.xlu0 %v2500
          %v2511 = vpop.xlane.xlu0 %2510
          %2512 = vadd.xlane.f32.xlu0 %v2501
          %v2513 = vpop.xlane.xlu0 %2512
          %2514 = vadd.xlane.f32.xlu0 %v2502
          %v2515 = vpop.xlane.xlu0 %2514
          %2516 = vadd.xlane.f32.xlu0 %v2503
          %v2517 = vpop.xlane.xlu0 %2516
          %2518 = vadd.xlane.f32.xlu0 %v2504
          %v2519 = vpop.xlane.xlu0 %2518
          %2520 = vadd.xlane.f32.xlu0 %v2505
          %v2521 = vpop.xlane.xlu0 %2520
          %v2522 = vld [vmem:[%s6] sm:$0xff]
          %v2523 = vld [vmem:[%s6 + $0x8] sm:$0xff]
          %v2524 = vld [vmem:[%s6 + $0x10] sm:$0xff]
          %v2525 = vld [vmem:[%s6 + $0x18] sm:$0xff]
          %v2526 = vadd.f32 %v2522, %v2507
          %v2527 = vadd.f32 %v2523, %v2509
          %v2528 = vadd.f32 %v2524, %v2511
          %v2529 = vadd.f32 %v2525, %v2513
          %vm2530 = vcmask 7168
          %2531 = vst.msk [vmem:[%s6] sm:$0xff] %vm2530, %v2526
          %2532 = vst.msk [vmem:[%s6 + $0x8] sm:$0xff] %vm2530, %v2527
          %2533 = vst.msk [vmem:[%s6 + $0x10] sm:$0xff] %vm2530, %v2528
          %2534 = vst.msk [vmem:[%s6 + $0x18] sm:$0xff] %vm2530, %v2529
          %v2535 = vld [vmem:[%s7] sm:$0xff]
          %v2536 = vld [vmem:[%s7 + $0x8] sm:$0xff]
          %v2537 = vld [vmem:[%s7 + $0x10] sm:$0xff]
          %v2538 = vld [vmem:[%s7 + $0x18] sm:$0xff]
          %v2539 = vadd.f32 %v2535, %v2515
          %v2540 = vadd.f32 %v2536, %v2517
          %v2541 = vadd.f32 %v2537, %v2519
          %v2542 = vadd.f32 %v2538, %v2521
          %2543 = vst.msk [vmem:[%s7] sm:$0xff] %vm2530, %v2539
          %2544 = vst.msk [vmem:[%s7 + $0x8] sm:$0xff] %vm2530, %v2540
          %2545 = vst.msk [vmem:[%s7 + $0x10] sm:$0xff] %vm2530, %v2541
          %2546 = vst.msk [vmem:[%s7 + $0x18] sm:$0xff] %vm2530, %v2542
        $region101: #{tpu_custom_call.1} parent=76 // pred_fallthru
          _
        %s2547 = sand.u32 %s154, 1
        %s2548 = scalar_lea.sflag [#allocation8], %s2547
        %s2549 = sand.u32 %s154, 1
        %s2550 = smul.addr %s2549, 32
        %s2551 = scalar_lea.vmem [#allocation7], %s2550
        // Predicated region
        $region102: #{tpu_custom_call.1} parent=76 // pred_check
          %p2552 = pneg %p164
        $region103: #{tpu_custom_call.1} parent=76 // pred_check_branch
          %2554 = sbr.rel (%p2552) target = $region105
        $region104: #{tpu_custom_call.1} parent=76 // pred_region
          %s2555 = smul.u32 %s27, %s26
          %s2557 = ssub.s32 512, 512
          %2558 = vsyncadd %s2548, %s2557
          %s2559 = smul.addr %s2555, 128
          %s2560 = scalar_lea.hbm %s5, %s2559
          %s2561 = sshll.u32 %s2551, 4
          %s2562 = int_to_ptr.vmem [resolvable:$true] %s2561
          %2567 = dma.vmem_to_hbm [thread:$0]  %s2562, 512, %s2560, %s2548, 128, 256, 8
        $region105: #{tpu_custom_call.1} parent=76 // pred_fallthru
          _
        // Predicated region
        $region106: #{tpu_custom_call.1} parent=76 // pred_check
          %p2568 = pneg %p185
        $region107: #{tpu_custom_call.1} parent=76 // pred_check_branch
          %2570 = sbr.rel (%p2568) target = $region109
        $region108: #{tpu_custom_call.1} parent=76 // pred_region
          _
        $region109: #{tpu_custom_call.1} parent=76 // pred_fallthru
          _
        // Predicated region
        $region110: #{tpu_custom_call.1} parent=76 // pred_check
          %p2571 = pneg %p206
        $region111: #{tpu_custom_call.1} parent=76 // pred_check_branch
          %2573 = sbr.rel (%p2571) target = $region113
        $region112: #{tpu_custom_call.1} parent=76 // pred_region
          _
        $region113: #{tpu_custom_call.1} parent=76 // pred_fallthru
          _
        // Predicated region
        $region114: #{tpu_custom_call.1} parent=76 // pred_check
          %p2574 = pneg %p185
        $region115: #{tpu_custom_call.1} parent=76 // pred_check_branch
          %2576 = sbr.rel (%p2574) target = $region117
        $region116: #{tpu_custom_call.1} parent=76 // pred_region
          _
        $region117: #{tpu_custom_call.1} parent=76 // pred_fallthru
          _
        // Predicated region
        $region118: #{tpu_custom_call.1} parent=76 // pred_check
          %p2577 = pneg %p206
        $region119: #{tpu_custom_call.1} parent=76 // pred_check_branch
          %2579 = sbr.rel (%p2577) target = $region121
        $region120: #{tpu_custom_call.1} parent=76 // pred_region
          _
        $region121: #{tpu_custom_call.1} parent=76 // pred_fallthru
          _
      $region77: #{tpu_custom_call.1} parent=5 // pred_fallthru
        _
      %p2580 = scmp.le.s32.totalorder 2, %s17
      // Predicated region
      $region122: #{tpu_custom_call.1} parent=5 // pred_check
        %p2581 = pneg %p2580
      $region123: #{tpu_custom_call.1} parent=5 // pred_check_branch
        %2583 = sbr.rel (%p2581) target = $region125
      $region124: #{tpu_custom_call.1} parent=5 // pred_region
        %s2584 = ssub.s32 %s17, 2
        // Predicated region
        $region126: #{tpu_custom_call.1} parent=124 // pred_check
          %p2585 = pneg %p170
        $region127: #{tpu_custom_call.1} parent=124 // pred_check_branch
          %2587 = sbr.rel (%p2585) target = $region129
        $region128: #{tpu_custom_call.1} parent=124 // pred_region
          %s2588 = sand.u32 %s155, 1
          %s2589 = scalar_lea.sflag [#allocation8], %s2588
          %s2590 = sand.u32 %s155, 1
          %s2591 = smul.addr %s2590, 32
          %s2592 = scalar_lea.vmem [#allocation7], %s2591
          %2593 = dma.done %s2589, 512
        $region129: #{tpu_custom_call.1} parent=124 // pred_fallthru
          _
      $region125: #{tpu_custom_call.1} parent=5 // pred_fallthru
        _
    $region6: #{tpu_custom_call.1} parent=1 // loop_footer
      %s21 = sadd.s32 1, %s17
    $region7: #{tpu_custom_call.1} parent=1 // loop_footer_branch
      %16 = sbr.rel target = $region3
    $region8: #{tpu_custom_call.1} parent=1 // loop_exit
      _
    %2594 = vsyncpa [#allocation8], 1
    %s2595 = scalar_lea.sflag [#allocation8], 1
    %2596 = vsyncpa %s2595, 1

</llo_original>
